<compile_context>
chip_gen: v7x
topology: tpu7x:2x2x1
jax: 0.10.0
libtpu: 0.0.40
codegen_flags: <defaults>
</compile_context>

<pallas_src>
import jax
import jax.numpy as jnp
from jax.experimental import pallas as pl
from jax.experimental.pallas import tpu as pltpu


LAYER_SIZES = [1024, 512, 256, 128, 64, 1]


def _round_up(x, m):
    return ((x + m - 1) // m) * m


def critic_kernel(x_ref,
                  w1, b1, w2, b2, w3, b3, w4, b4, w5, b5, wo, bo,
                  out_ref):
    """Fused MLP forward: 5x (Linear + ReLU) then the value head (lane-dense)."""
    h = x_ref[...]  # (TB, in_dim) bf16

    def linear_relu(h, w_ref, b_ref):
        # bf16 x bf16 on the MXU, f32 accumulation; bias + ReLU in f32 (VPU),
        # result cast back to bf16 for the next layer.
        y = jnp.dot(h, w_ref[...], preferred_element_type=jnp.float32)
        y = jnp.maximum(y + b_ref[...], 0.0)
        return y.astype(jnp.bfloat16)

    h = linear_relu(h, w1, b1)
    h = linear_relu(h, w2, b2)
    h = linear_relu(h, w3, b3)
    h = linear_relu(h, w4, b4)
    h = linear_relu(h, w5, b5)

    # Lane-dense value head: (1, 64) @ (64, TB) -> (1, TB); batch along lanes
    # so the output store is a single full-width vst per grid step.
    v = jnp.dot(wo[...], h.T, preferred_element_type=jnp.float32) + bo[...]
    out_ref[...] = v.astype(out_ref.dtype)


def pack_critic_params(params):
    """One-time repack of raw params into the kernel layout.

    Raw layout: [w1,b1,...,w5,b5,wo,bo] with w_i (in,out) bf16, b_i (1,out) f32,
    wo (64,1) bf16, bo (1,1) f32.  Kernel layout only changes the head weight
    to a (1,64) lane row.  Done once (outside critic_forward) per the review.
    """
    wo, bo = params[-2], params[-1]
    return list(params[:-2]) + [wo.T, bo]


def critic_forward(state, kparams, *, tile_b=512):
    """state: (B, in_dim) f32; kparams: output of pack_critic_params."""
    B, D = state.shape

    # Batch tile: multiple of 128 (unmasked stores, aligned MXU M dim).
    TB = min(_round_up(tile_b, 128), _round_up(B, 128))
    # v7x has 2 TensorCores; keep >=2 parallel grid steps when the batch allows.
    if _round_up(B, TB) // TB < 2 and TB > 128:
        TB = _round_up(pl.cdiv(B, 2), 128)
    Bp = _round_up(B, TB)

    # Cast the input to bf16 once in the wrapper (halves input HBM traffic).
    x = state.astype(jnp.bfloat16)
    if Bp != B:
        x = jnp.pad(x, ((0, Bp - B), (0, 0)))

    grid = (Bp // TB,)

    # Weights/biases: full-array blocks, constant index_map -> fetched once,
    # VMEM-resident across the (parallel) batch grid.
    weight_specs = [pl.BlockSpec(p.shape, lambda i: (0, 0)) for p in kparams]
    in_specs = [pl.BlockSpec((TB, D), lambda i: (i, 0))] + weight_specs
    # Output is (1, Bp): batch along lanes, one (1, TB) block per grid step.
    out_specs = pl.BlockSpec((1, TB), lambda i: (0, i))

    out = pl.pallas_call(
        critic_kernel,
        out_shape=jax.ShapeDtypeStruct((1, Bp), jnp.float32),
        grid=grid,
        in_specs=in_specs,
        out_specs=out_specs,
        compiler_params=pltpu.CompilerParams(
            dimension_semantics=("parallel",)),
    )(x, *kparams)

    return out[0, :B].reshape(B, 1)


def init_critic_params(key, in_dim):
    """Deterministic init mirroring PyTorch defaults.

    Hidden layers: U(-1/sqrt(fan_in), 1/sqrt(fan_in)) for weight and bias
    (nn.Linear default).  Output layer: U(-0.003, 0.003) (init_layer_uniform).
    Weights stored (in_features, out_features) in bf16; biases (1, out) f32.
    """
    params = []
    fan_in = in_dim
    dims = LAYER_SIZES
    keys = jax.random.split(key, 2 * len(dims))
    for i, out_dim in enumerate(dims):
        if i == len(dims) - 1:
            bound = 0.003  # init_layer_uniform on self.out
        else:
            bound = 1.0 / (fan_in ** 0.5)
        w = jax.random.uniform(keys[2 * i], (fan_in, out_dim),
                               minval=-bound, maxval=bound,
                               dtype=jnp.float32).astype(jnp.bfloat16)
        b = jax.random.uniform(keys[2 * i + 1], (1, out_dim),
                               minval=-bound, maxval=bound, dtype=jnp.float32)
        params += [w, b]
        fan_in = out_dim
    return params


def reference_forward(state, params):
    """Pure-JAX reference mirroring the kernel's bf16-input / f32-accum math.

    Note: weights are bf16, so results differ from a full-fp32 PyTorch Critic
    by weight-quantization error (~1e-2 relative).
    """
    h = state
    for i in range(0, len(params) - 2, 2):
        y = jnp.dot(h.astype(jnp.bfloat16), params[i],
                    preferred_element_type=jnp.float32) + params[i + 1]
        h = jnp.maximum(y, 0.0)
    return jnp.dot(h.astype(jnp.bfloat16), params[-2],
                   preferred_element_type=jnp.float32) + params[-1]


if __name__ == "__main__":
    key = jax.random.PRNGKey(0)
    k_params, k_state = jax.random.split(key)

    batch = 200   # not a multiple of the tile -> exercises batch padding
    in_dim = 32   # small synthetic observation dim

    params = init_critic_params(k_params, in_dim)
    kparams = pack_critic_params(params)      # done once, not per forward
    state = jax.random.normal(k_state, (batch, in_dim), dtype=jnp.float32)

    value = critic_forward(state, kparams, tile_b=512)
    value = jax.block_until_ready(value)

    ref = reference_forward(state, params)
    assert value.shape == (batch, 1)
    assert jnp.allclose(value, ref, atol=2e-3, rtol=2e-3), "mismatch vs reference"

    print("KERNEL_OK")
</pallas_src>

<mosaic_0001>
module attributes {stable_mosaic.version = 11 : i64} {
  func.func @critic_kernel(%arg0: i32, %arg1: memref<128x32xbf16, #tpu.memory_space<vmem>>, %arg2: memref<32x1024xbf16, #tpu.memory_space<vmem>>, %arg3: memref<1x1024xf32, #tpu.memory_space<vmem>>, %arg4: memref<1024x512xbf16, #tpu.memory_space<vmem>>, %arg5: memref<1x512xf32, #tpu.memory_space<vmem>>, %arg6: memref<512x256xbf16, #tpu.memory_space<vmem>>, %arg7: memref<1x256xf32, #tpu.memory_space<vmem>>, %arg8: memref<256x128xbf16, #tpu.memory_space<vmem>>, %arg9: memref<1x128xf32, #tpu.memory_space<vmem>>, %arg10: memref<128x64xbf16, #tpu.memory_space<vmem>>, %arg11: memref<1x64xf32, #tpu.memory_space<vmem>>, %arg12: memref<1x64xbf16, #tpu.memory_space<vmem>>, %arg13: memref<1x1xf32, #tpu.memory_space<vmem>>, %arg14: memref<1x128xf32, #tpu.memory_space<vmem>>) attributes {dimension_semantics = [#tpu.dimension_semantics<parallel>], iteration_bounds = array<i64: 2>, scalar_prefetch = 0 : i64, scratch_operands = 0 : i64, tpu.core_type = #tpu.core_type<tc>, window_params = [{transform_indices = @transform_0, window_bounds = array<i64: 128, 32>}, {pipeline_mode = #tpu.pipeline_mode<synchronous>, transform_indices = @transform_1, window_bounds = array<i64: 32, 1024>}, {pipeline_mode = #tpu.pipeline_mode<synchronous>, transform_indices = @transform_2, window_bounds = array<i64: 1, 1024>}, {pipeline_mode = #tpu.pipeline_mode<synchronous>, transform_indices = @transform_3, window_bounds = array<i64: 1024, 512>}, {pipeline_mode = #tpu.pipeline_mode<synchronous>, transform_indices = @transform_4, window_bounds = array<i64: 1, 512>}, {pipeline_mode = #tpu.pipeline_mode<synchronous>, transform_indices = @transform_5, window_bounds = array<i64: 512, 256>}, {pipeline_mode = #tpu.pipeline_mode<synchronous>, transform_indices = @transform_6, window_bounds = array<i64: 1, 256>}, {pipeline_mode = #tpu.pipeline_mode<synchronous>, transform_indices = @transform_7, window_bounds = array<i64: 256, 128>}, {pipeline_mode = #tpu.pipeline_mode<synchronous>, transform_indices = @transform_8, window_bounds = array<i64: 1, 128>}, {pipeline_mode = #tpu.pipeline_mode<synchronous>, transform_indices = @transform_9, window_bounds = array<i64: 128, 64>}, {pipeline_mode = #tpu.pipeline_mode<synchronous>, transform_indices = @transform_10, window_bounds = array<i64: 1, 64>}, {pipeline_mode = #tpu.pipeline_mode<synchronous>, transform_indices = @transform_11, window_bounds = array<i64: 1, 64>}, {pipeline_mode = #tpu.pipeline_mode<synchronous>, transform_indices = @transform_12, window_bounds = array<i64: 1, 1>}, {transform_indices = @transform_13, window_bounds = array<i64: 1, 128>}]} {
    %c0 = arith.constant 0 : index
    %c0_0 = arith.constant 0 : index
    %0 = vector.load %arg1[%c0, %c0_0] : memref<128x32xbf16, #tpu.memory_space<vmem>>, vector<128x32xbf16>
    %c0_1 = arith.constant 0 : index
    %c0_2 = arith.constant 0 : index
    %1 = vector.load %arg2[%c0_1, %c0_2] : memref<32x1024xbf16, #tpu.memory_space<vmem>>, vector<32x1024xbf16>
    %cst = arith.constant dense<0.000000e+00> : vector<128x1024xf32>
    %2 = tpu.matmul %0, %1, %cst {dimension_numbers = #tpu.dot_dimension_numbers<[1], [0], [0], [1], [0, 0, 1, 1], [], []>} : vector<128x32xbf16>, vector<32x1024xbf16>, vector<128x1024xf32> -> vector<128x1024xf32>
    %c0_3 = arith.constant 0 : index
    %c0_4 = arith.constant 0 : index
    %3 = vector.load %arg3[%c0_3, %c0_4] : memref<1x1024xf32, #tpu.memory_space<vmem>>, vector<1x1024xf32>
    %4 = vector.broadcast %3 : vector<1x1024xf32> to vector<128x1024xf32>
    %5 = arith.addf %2, %4 : vector<128x1024xf32>
    %cst_5 = arith.constant 0.000000e+00 : f32
    %6 = vector.broadcast %cst_5 : f32 to vector<128x1024xf32>
    %7 = arith.maximumf %5, %6 : vector<128x1024xf32>
    %8 = arith.truncf %7 : vector<128x1024xf32> to vector<128x1024xbf16>
    %c0_6 = arith.constant 0 : index
    %c0_7 = arith.constant 0 : index
    %9 = vector.load %arg4[%c0_6, %c0_7] : memref<1024x512xbf16, #tpu.memory_space<vmem>>, vector<1024x512xbf16>
    %cst_8 = arith.constant dense<0.000000e+00> : vector<128x512xf32>
    %10 = tpu.matmul %8, %9, %cst_8 {dimension_numbers = #tpu.dot_dimension_numbers<[1], [0], [0], [1], [0, 0, 1, 1], [], []>} : vector<128x1024xbf16>, vector<1024x512xbf16>, vector<128x512xf32> -> vector<128x512xf32>
    %c0_9 = arith.constant 0 : index
    %c0_10 = arith.constant 0 : index
    %11 = vector.load %arg5[%c0_9, %c0_10] : memref<1x512xf32, #tpu.memory_space<vmem>>, vector<1x512xf32>
    %12 = vector.broadcast %11 : vector<1x512xf32> to vector<128x512xf32>
    %13 = arith.addf %10, %12 : vector<128x512xf32>
    %cst_11 = arith.constant 0.000000e+00 : f32
    %14 = vector.broadcast %cst_11 : f32 to vector<128x512xf32>
    %15 = arith.maximumf %13, %14 : vector<128x512xf32>
    %16 = arith.truncf %15 : vector<128x512xf32> to vector<128x512xbf16>
    %c0_12 = arith.constant 0 : index
    %c0_13 = arith.constant 0 : index
    %17 = vector.load %arg6[%c0_12, %c0_13] : memref<512x256xbf16, #tpu.memory_space<vmem>>, vector<512x256xbf16>
    %cst_14 = arith.constant dense<0.000000e+00> : vector<128x256xf32>
    %18 = tpu.matmul %16, %17, %cst_14 {dimension_numbers = #tpu.dot_dimension_numbers<[1], [0], [0], [1], [0, 0, 1, 1], [], []>} : vector<128x512xbf16>, vector<512x256xbf16>, vector<128x256xf32> -> vector<128x256xf32>
    %c0_15 = arith.constant 0 : index
    %c0_16 = arith.constant 0 : index
    %19 = vector.load %arg7[%c0_15, %c0_16] : memref<1x256xf32, #tpu.memory_space<vmem>>, vector<1x256xf32>
    %20 = vector.broadcast %19 : vector<1x256xf32> to vector<128x256xf32>
    %21 = arith.addf %18, %20 : vector<128x256xf32>
    %cst_17 = arith.constant 0.000000e+00 : f32
    %22 = vector.broadcast %cst_17 : f32 to vector<128x256xf32>
    %23 = arith.maximumf %21, %22 : vector<128x256xf32>
    %24 = arith.truncf %23 : vector<128x256xf32> to vector<128x256xbf16>
    %c0_18 = arith.constant 0 : index
    %c0_19 = arith.constant 0 : index
    %25 = vector.load %arg8[%c0_18, %c0_19] : memref<256x128xbf16, #tpu.memory_space<vmem>>, vector<256x128xbf16>
    %cst_20 = arith.constant dense<0.000000e+00> : vector<128x128xf32>
    %26 = tpu.matmul %24, %25, %cst_20 {dimension_numbers = #tpu.dot_dimension_numbers<[1], [0], [0], [1], [0, 0, 1, 1], [], []>} : vector<128x256xbf16>, vector<256x128xbf16>, vector<128x128xf32> -> vector<128x128xf32>
    %c0_21 = arith.constant 0 : index
    %c0_22 = arith.constant 0 : index
    %27 = vector.load %arg9[%c0_21, %c0_22] : memref<1x128xf32, #tpu.memory_space<vmem>>, vector<1x128xf32>
    %28 = vector.broadcast %27 : vector<1x128xf32> to vector<128x128xf32>
    %29 = arith.addf %26, %28 : vector<128x128xf32>
    %cst_23 = arith.constant 0.000000e+00 : f32
    %30 = vector.broadcast %cst_23 : f32 to vector<128x128xf32>
    %31 = arith.maximumf %29, %30 : vector<128x128xf32>
    %32 = arith.truncf %31 : vector<128x128xf32> to vector<128x128xbf16>
    %c0_24 = arith.constant 0 : index
    %c0_25 = arith.constant 0 : index
    %33 = vector.load %arg10[%c0_24, %c0_25] : memref<128x64xbf16, #tpu.memory_space<vmem>>, vector<128x64xbf16>
    %cst_26 = arith.constant dense<0.000000e+00> : vector<128x64xf32>
    %34 = tpu.matmul %32, %33, %cst_26 {dimension_numbers = #tpu.dot_dimension_numbers<[1], [0], [0], [1], [0, 0, 1, 1], [], []>} : vector<128x128xbf16>, vector<128x64xbf16>, vector<128x64xf32> -> vector<128x64xf32>
    %c0_27 = arith.constant 0 : index
    %c0_28 = arith.constant 0 : index
    %35 = vector.load %arg11[%c0_27, %c0_28] : memref<1x64xf32, #tpu.memory_space<vmem>>, vector<1x64xf32>
    %36 = vector.broadcast %35 : vector<1x64xf32> to vector<128x64xf32>
    %37 = arith.addf %34, %36 : vector<128x64xf32>
    %cst_29 = arith.constant 0.000000e+00 : f32
    %38 = vector.broadcast %cst_29 : f32 to vector<128x64xf32>
    %39 = arith.maximumf %37, %38 : vector<128x64xf32>
    %40 = arith.truncf %39 : vector<128x64xf32> to vector<128x64xbf16>
    %c0_30 = arith.constant 0 : index
    %c0_31 = arith.constant 0 : index
    %41 = vector.load %arg12[%c0_30, %c0_31] : memref<1x64xbf16, #tpu.memory_space<vmem>>, vector<1x64xbf16>
    %42 = tpu.transpose %40, [1, 0] : vector<128x64xbf16> -> vector<64x128xbf16>
    %cst_32 = arith.constant dense<0.000000e+00> : vector<1x128xf32>
    %43 = tpu.matmul %41, %42, %cst_32 {dimension_numbers = #tpu.dot_dimension_numbers<[1], [0], [0], [1], [0, 0, 1, 1], [], []>} : vector<1x64xbf16>, vector<64x128xbf16>, vector<1x128xf32> -> vector<1x128xf32>
    %c0_33 = arith.constant 0 : index
    %c0_34 = arith.constant 0 : index
    %44 = vector.load %arg13[%c0_33, %c0_34] : memref<1x1xf32, #tpu.memory_space<vmem>>, vector<1x1xf32>
    %45 = vector.broadcast %44 : vector<1x1xf32> to vector<1x128xf32>
    %46 = arith.addf %43, %45 : vector<1x128xf32>
    %c0_35 = arith.constant 0 : index
    %c0_36 = arith.constant 0 : index
    %47 = vector.load %arg14[%c0_35, %c0_36] : memref<1x128xf32, #tpu.memory_space<vmem>>, vector<1x128xf32>
    tpu.vector_store %arg14[%c0_35, %c0_36], %46 {strides = array<i32>} : memref<1x128xf32, #tpu.memory_space<vmem>>, vector<1x128xf32>,
    return
  }
  func.func @transform_0(%arg0: i32) -> (i32, i32) {
    %c0_i32 = arith.constant 0 : i32
    %c0_i32_0 = arith.constant 0 : i32
    return %arg0, %c0_i32 : i32, i32
  }
  func.func @transform_1(%arg0: i32) -> (i32, i32) {
    %c0_i32 = arith.constant 0 : i32
    %c0_i32_0 = arith.constant 0 : i32
    %c0_i32_1 = arith.constant 0 : i32
    return %c0_i32, %c0_i32_0 : i32, i32
  }
  func.func @transform_2(%arg0: i32) -> (i32, i32) {
    %c0_i32 = arith.constant 0 : i32
    %c0_i32_0 = arith.constant 0 : i32
    %c0_i32_1 = arith.constant 0 : i32
    return %c0_i32, %c0_i32_0 : i32, i32
  }
  func.func @transform_3(%arg0: i32) -> (i32, i32) {
    %c0_i32 = arith.constant 0 : i32
    %c0_i32_0 = arith.constant 0 : i32
    %c0_i32_1 = arith.constant 0 : i32
    return %c0_i32, %c0_i32_0 : i32, i32
  }
  func.func @transform_4(%arg0: i32) -> (i32, i32) {
    %c0_i32 = arith.constant 0 : i32
    %c0_i32_0 = arith.constant 0 : i32
    %c0_i32_1 = arith.constant 0 : i32
    return %c0_i32, %c0_i32_0 : i32, i32
  }
  func.func @transform_5(%arg0: i32) -> (i32, i32) {
    %c0_i32 = arith.constant 0 : i32
    %c0_i32_0 = arith.constant 0 : i32
    %c0_i32_1 = arith.constant 0 : i32
    return %c0_i32, %c0_i32_0 : i32, i32
  }
  func.func @transform_6(%arg0: i32) -> (i32, i32) {
    %c0_i32 = arith.constant 0 : i32
    %c0_i32_0 = arith.constant 0 : i32
    %c0_i32_1 = arith.constant 0 : i32
    return %c0_i32, %c0_i32_0 : i32, i32
  }
  func.func @transform_7(%arg0: i32) -> (i32, i32) {
    %c0_i32 = arith.constant 0 : i32
    %c0_i32_0 = arith.constant 0 : i32
    %c0_i32_1 = arith.constant 0 : i32
    return %c0_i32, %c0_i32_0 : i32, i32
  }
  func.func @transform_8(%arg0: i32) -> (i32, i32) {
    %c0_i32 = arith.constant 0 : i32
    %c0_i32_0 = arith.constant 0 : i32
    %c0_i32_1 = arith.constant 0 : i32
    return %c0_i32, %c0_i32_0 : i32, i32
  }
  func.func @transform_9(%arg0: i32) -> (i32, i32) {
    %c0_i32 = arith.constant 0 : i32
    %c0_i32_0 = arith.constant 0 : i32
    %c0_i32_1 = arith.constant 0 : i32
    return %c0_i32, %c0_i32_0 : i32, i32
  }
  func.func @transform_10(%arg0: i32) -> (i32, i32) {
    %c0_i32 = arith.constant 0 : i32
    %c0_i32_0 = arith.constant 0 : i32
    %c0_i32_1 = arith.constant 0 : i32
    return %c0_i32, %c0_i32_0 : i32, i32
  }
  func.func @transform_11(%arg0: i32) -> (i32, i32) {
    %c0_i32 = arith.constant 0 : i32
    %c0_i32_0 = arith.constant 0 : i32
    %c0_i32_1 = arith.constant 0 : i32
    return %c0_i32, %c0_i32_0 : i32, i32
  }
  func.func @transform_12(%arg0: i32) -> (i32, i32) {
    %c0_i32 = arith.constant 0 : i32
    %c0_i32_0 = arith.constant 0 : i32
    %c0_i32_1 = arith.constant 0 : i32
    return %c0_i32, %c0_i32_0 : i32, i32
  }
  func.func @transform_13(%arg0: i32) -> (i32, i32) {
    %c0_i32 = arith.constant 0 : i32
    %c0_i32_0 = arith.constant 0 : i32
    return %c0_i32, %arg0 : i32, i32
  }
}

</mosaic_0001>

<llo_original>
// kernel: tpu_custom_call.1
$region0: #{tpu_custom_call.1}
  #allocation0 [shape = 'u32[]', space=smem, size = 0x4, offset = 0x4, fixed_abs, tag = 'smem constant byte address 0x4 - core index']
  #allocation1 [shape = 'u32[144,128]{1,0:T(1,128)}', space=vmem, size = 0x12000, scoped, tag = 'internal scratch']
  #allocation2 [shape = 'f32[1,1]{1,0:T(1,128)S(1)}', space=vmem, size = 0x200, scoped, tag = 'scoped memory for tpu_custom_call.1']
  %s0 = inlined_call_operand.vmem [shape: bf16[256,32], index: 0, kind: input, shape index: {}]
  %s1 = inlined_call_operand.vmem [shape: bf16[32,1024], index: 1, kind: input, shape index: {}]
  %s2 = inlined_call_operand.hbm [shape: f32[1,1024], index: 2, kind: input, shape index: {}]
  %s3 = inlined_call_operand.hbm [shape: bf16[1024,512], index: 3, kind: input, shape index: {}]
  %s4 = inlined_call_operand.vmem [shape: f32[1,512], index: 4, kind: input, shape index: {}]
  %s5 = inlined_call_operand.hbm [shape: bf16[512,256], index: 5, kind: input, shape index: {}]
  %s6 = inlined_call_operand.hbm [shape: f32[1,256], index: 6, kind: input, shape index: {}]
  %s7 = inlined_call_operand.vmem [shape: bf16[256,128], index: 7, kind: input, shape index: {}]
  %s8 = inlined_call_operand.vmem [shape: f32[1,128], index: 8, kind: input, shape index: {}]
  %s9 = inlined_call_operand.vmem [shape: bf16[128,64], index: 9, kind: input, shape index: {}]
  %s10 = inlined_call_operand.vmem [shape: f32[1,64], index: 10, kind: input, shape index: {}]
  %s11 = inlined_call_operand.vmem [shape: bf16[1,64], index: 11, kind: input, shape index: {}]
  %s12 = inlined_call_operand.<no memory space> [shape: f32[1,1], index: 12, kind: input, shape index: {}]
  %s13 = inlined_call_operand.hbm [shape: f32[1,256], index: 13, kind: output, shape index: {}]
  %s14 = sld [smem:[#allocation0]]
  $region101: #{tpu_custom_call.1} parent=0
    _
  %s16 = ssub.s32 1, %s14
  %s17 = scalar_select 0, %s16, %s14
  %v18 = vstv %s12
  %19 = vst [vmem:[#allocation2] sm:$0x1] %v18
  $region1: #{tpu_custom_call.1} parent=0
    #allocation3 [shape = 'u8[4096]{0}', space=vmem, size = 0x1000, scoped, tag = 'input window, operand 2, single buffered']
    #allocation4 [shape = 's32[2]{0}', space=sflag, size = 0x8, scoped, tag = 'scoped memory for tpu_custom_call.1']
    #allocation5 [shape = 's32[2]{0}', space=sflag, size = 0x8, scoped, tag = 'scoped memory for tpu_custom_call.1']
    #allocation6 [shape = 'u8[1048576]{0}', space=vmem, size = 0x100000, scoped, tag = 'input window, operand 3, single buffered']
    #allocation7 [shape = 's32[1]{0}', space=sflag, size = 0x4, scoped, tag = 'scoped memory for tpu_custom_call.1']
    #allocation8 [shape = 'u8[262144]{0}', space=vmem, size = 0x40000, scoped, tag = 'input window, operand 5, single buffered']
    #allocation9 [shape = 'u8[1024]{0}', space=vmem, size = 0x400, scoped, tag = 'input window, operand 6, single buffered']
    #allocation10 [shape = 's32[1]{0}', space=sflag, size = 0x4, scoped, tag = 'scoped memory for tpu_custom_call.1']
    #allocation11 [shape = 'u8[1024]{0}', space=vmem, size = 0x400, scoped, tag = 'output window, operand 0']
    %20 = vsyncpa [#allocation4], 0
    %21 = vsyncpa [#allocation7], 0
    %22 = vsyncpa [#allocation10], 0
    %23 = vsyncpa [#allocation5], 0
    %s24 = scalar_lea.sflag [#allocation5], 1
    %25 = vsyncpa %s24, 0
    loop: start=0, step=1, limit=4
    $region2: #{tpu_custom_call.1} parent=1 // loop_pre_header
      _
    $region3: #{tpu_custom_call.1} parent=1 // loop_header
      %s27 = sphi 0, %s31
      %p28 = scmp.ge.s32.totalorder %s27, 4
      %s37 = sphi 0, %s39
      %s40 = sphi 0, %s37
      %s41 = sphi 0, %s40
      %s57 = sphi 0, %s41
      %s61 = sphi 0, %s61
      %s63 = sphi 0, %s61
      %s64 = sphi 0, %s63
      %s78 = sphi 0, %s64
      %s82 = sphi 0, %s82
      %s84 = sphi 0, %s82
      %s85 = sphi 0, %s84
      %s99 = sphi 0, %s85
      %s103 = sphi 0, %s103
      %s105 = sphi 0, %s103
      %s106 = sphi 0, %s105
      %s120 = sphi 0, %s106
      %s124 = sphi 0, %s124
      %s126 = sphi 0, %s124
      %s127 = sphi 0, %s126
      %s141 = sphi 0, %s127
      %s145 = sphi 0, %s145
      %s147 = sphi 0, %s145
      %s148 = sphi 0, %s147
      %s162 = sphi 0, %s148
      %s166 = sphi 0, %s166
      %s168 = sphi 0, %s166
      %s169 = sphi 0, %s168
      %s183 = sphi 0, %s169
      %s187 = sphi 0, %s187
      %s189 = sphi 0, %s187
      %s190 = sphi 0, %s189
      %s204 = sphi 0, %s190
      %s208 = sphi 0, %s208
      %s210 = sphi 0, %s208
      %s211 = sphi 0, %s210
      %s225 = sphi 0, %s211
      %s229 = sphi 0, %s229
      %s231 = sphi 0, %s229
      %s232 = sphi 0, %s231
      %s246 = sphi 0, %s232
      %s250 = sphi 0, %s250
      %s252 = sphi 0, %s250
      %s253 = sphi 0, %s252
      %s267 = sphi 0, %s253
      %s271 = sphi 0, %s271
      %s273 = sphi 0, %s271
      %s274 = sphi 0, %s273
      %s288 = sphi 0, %s274
      %s292 = sphi 0, %s292
      %s294 = sphi 0, %s292
      %s295 = sphi 0, %s294
      %s309 = sphi 0, %s295
      %s315 = sphi 0, %s317
      %s318 = sphi 0, %s315
      %s319 = sphi 0, %s318
      %s335 = sphi 0, %s319
    $region4: #{tpu_custom_call.1} parent=1 // loop_header_branch
      %30 = sbr.rel (%p28) target = $region8
    $region5: #{tpu_custom_call.1} parent=1 // loop_body
      %s32 = ssub.s32 %s27, 1
      %s33 = ssub.s32 %s27, 2
      %s34 = sadd.s32 %s27, 1
      %s35 = ssub.s32 %s27, %s34
      %p36 = scmp.eq.s32.totalorder %s35, 0
      %s38 = sadd.s32 %s37, 1
      %s39 = scalar_select %p36, %s37, %s38
      %p42 = pneg %p36
      %p43 = scmp.eq.s32.totalorder %s27, 1
      %p44 = por %p42, %p43
      %p45 = scmp.ne.s32.totalorder %s37, %s40
      %p46 = scmp.eq.s32.totalorder %s27, 0
      %p47 = por %p45, %p46
      %p48 = scmp.ne.s32.totalorder %s37, %s40
      %p49 = scmp.eq.s32.totalorder %s32, 1
      %p50 = por %p48, %p49
      %p51 = scmp.ne.s32.totalorder %s40, %s41
      %p52 = scmp.eq.s32.totalorder %s32, 0
      %p53 = por %p51, %p52
      %p54 = scmp.ne.s32.totalorder %s40, %s41
      %p55 = scmp.eq.s32.totalorder %s33, 1
      %p56 = por %p54, %p55
      %p58 = scmp.ne.s32.totalorder %s41, %s57
      %p59 = scmp.eq.s32.totalorder %s33, 0
      %p60 = por %p58, %p59
      %s62 = sadd.s32 %s61, 1
      %p65 = scmp.eq.s32.totalorder %s27, 1
      %p66 = scmp.ne.s32.totalorder %s61, %s63
      %p67 = scmp.eq.s32.totalorder %s27, 0
      %p68 = por %p66, %p67
      %p69 = scmp.ne.s32.totalorder %s61, %s63
      %p70 = scmp.eq.s32.totalorder %s32, 1
      %p71 = por %p69, %p70
      %p72 = scmp.ne.s32.totalorder %s63, %s64
      %p73 = scmp.eq.s32.totalorder %s32, 0
      %p74 = por %p72, %p73
      %p75 = scmp.ne.s32.totalorder %s63, %s64
      %p76 = scmp.eq.s32.totalorder %s33, 1
      %p77 = por %p75, %p76
      %p79 = scmp.ne.s32.totalorder %s64, %s78
      %p80 = scmp.eq.s32.totalorder %s33, 0
      %p81 = por %p79, %p80
      %s83 = sadd.s32 %s82, 1
      %p86 = scmp.eq.s32.totalorder %s27, 1
      %p87 = scmp.ne.s32.totalorder %s82, %s84
      %p88 = scmp.eq.s32.totalorder %s27, 0
      %p89 = por %p87, %p88
      %p90 = scmp.ne.s32.totalorder %s82, %s84
      %p91 = scmp.eq.s32.totalorder %s32, 1
      %p92 = por %p90, %p91
      %p93 = scmp.ne.s32.totalorder %s84, %s85
      %p94 = scmp.eq.s32.totalorder %s32, 0
      %p95 = por %p93, %p94
      %p96 = scmp.ne.s32.totalorder %s84, %s85
      %p97 = scmp.eq.s32.totalorder %s33, 1
      %p98 = por %p96, %p97
      %p100 = scmp.ne.s32.totalorder %s85, %s99
      %p101 = scmp.eq.s32.totalorder %s33, 0
      %p102 = por %p100, %p101
      %s104 = sadd.s32 %s103, 1
      %p107 = scmp.eq.s32.totalorder %s27, 1
      %p108 = scmp.ne.s32.totalorder %s103, %s105
      %p109 = scmp.eq.s32.totalorder %s27, 0
      %p110 = por %p108, %p109
      %p111 = scmp.ne.s32.totalorder %s103, %s105
      %p112 = scmp.eq.s32.totalorder %s32, 1
      %p113 = por %p111, %p112
      %p114 = scmp.ne.s32.totalorder %s105, %s106
      %p115 = scmp.eq.s32.totalorder %s32, 0
      %p116 = por %p114, %p115
      %p117 = scmp.ne.s32.totalorder %s105, %s106
      %p118 = scmp.eq.s32.totalorder %s33, 1
      %p119 = por %p117, %p118
      %p121 = scmp.ne.s32.totalorder %s106, %s120
      %p122 = scmp.eq.s32.totalorder %s33, 0
      %p123 = por %p121, %p122
      %s125 = sadd.s32 %s124, 1
      %p128 = scmp.eq.s32.totalorder %s27, 1
      %p129 = scmp.ne.s32.totalorder %s124, %s126
      %p130 = scmp.eq.s32.totalorder %s27, 0
      %p131 = por %p129, %p130
      %p132 = scmp.ne.s32.totalorder %s124, %s126
      %p133 = scmp.eq.s32.totalorder %s32, 1
      %p134 = por %p132, %p133
      %p135 = scmp.ne.s32.totalorder %s126, %s127
      %p136 = scmp.eq.s32.totalorder %s32, 0
      %p137 = por %p135, %p136
      %p138 = scmp.ne.s32.totalorder %s126, %s127
      %p139 = scmp.eq.s32.totalorder %s33, 1
      %p140 = por %p138, %p139
      %p142 = scmp.ne.s32.totalorder %s127, %s141
      %p143 = scmp.eq.s32.totalorder %s33, 0
      %p144 = por %p142, %p143
      %s146 = sadd.s32 %s145, 1
      %p149 = scmp.eq.s32.totalorder %s27, 1
      %p150 = scmp.ne.s32.totalorder %s145, %s147
      %p151 = scmp.eq.s32.totalorder %s27, 0
      %p152 = por %p150, %p151
      %p153 = scmp.ne.s32.totalorder %s145, %s147
      %p154 = scmp.eq.s32.totalorder %s32, 1
      %p155 = por %p153, %p154
      %p156 = scmp.ne.s32.totalorder %s147, %s148
      %p157 = scmp.eq.s32.totalorder %s32, 0
      %p158 = por %p156, %p157
      %p159 = scmp.ne.s32.totalorder %s147, %s148
      %p160 = scmp.eq.s32.totalorder %s33, 1
      %p161 = por %p159, %p160
      %p163 = scmp.ne.s32.totalorder %s148, %s162
      %p164 = scmp.eq.s32.totalorder %s33, 0
      %p165 = por %p163, %p164
      %s167 = sadd.s32 %s166, 1
      %p170 = scmp.eq.s32.totalorder %s27, 1
      %p171 = scmp.ne.s32.totalorder %s166, %s168
      %p172 = scmp.eq.s32.totalorder %s27, 0
      %p173 = por %p171, %p172
      %p174 = scmp.ne.s32.totalorder %s166, %s168
      %p175 = scmp.eq.s32.totalorder %s32, 1
      %p176 = por %p174, %p175
      %p177 = scmp.ne.s32.totalorder %s168, %s169
      %p178 = scmp.eq.s32.totalorder %s32, 0
      %p179 = por %p177, %p178
      %p180 = scmp.ne.s32.totalorder %s168, %s169
      %p181 = scmp.eq.s32.totalorder %s33, 1
      %p182 = por %p180, %p181
      %p184 = scmp.ne.s32.totalorder %s169, %s183
      %p185 = scmp.eq.s32.totalorder %s33, 0
      %p186 = por %p184, %p185
      %s188 = sadd.s32 %s187, 1
      %p191 = scmp.eq.s32.totalorder %s27, 1
      %p192 = scmp.ne.s32.totalorder %s187, %s189
      %p193 = scmp.eq.s32.totalorder %s27, 0
      %p194 = por %p192, %p193
      %p195 = scmp.ne.s32.totalorder %s187, %s189
      %p196 = scmp.eq.s32.totalorder %s32, 1
      %p197 = por %p195, %p196
      %p198 = scmp.ne.s32.totalorder %s189, %s190
      %p199 = scmp.eq.s32.totalorder %s32, 0
      %p200 = por %p198, %p199
      %p201 = scmp.ne.s32.totalorder %s189, %s190
      %p202 = scmp.eq.s32.totalorder %s33, 1
      %p203 = por %p201, %p202
      %p205 = scmp.ne.s32.totalorder %s190, %s204
      %p206 = scmp.eq.s32.totalorder %s33, 0
      %p207 = por %p205, %p206
      %s209 = sadd.s32 %s208, 1
      %p212 = scmp.eq.s32.totalorder %s27, 1
      %p213 = scmp.ne.s32.totalorder %s208, %s210
      %p214 = scmp.eq.s32.totalorder %s27, 0
      %p215 = por %p213, %p214
      %p216 = scmp.ne.s32.totalorder %s208, %s210
      %p217 = scmp.eq.s32.totalorder %s32, 1
      %p218 = por %p216, %p217
      %p219 = scmp.ne.s32.totalorder %s210, %s211
      %p220 = scmp.eq.s32.totalorder %s32, 0
      %p221 = por %p219, %p220
      %p222 = scmp.ne.s32.totalorder %s210, %s211
      %p223 = scmp.eq.s32.totalorder %s33, 1
      %p224 = por %p222, %p223
      %p226 = scmp.ne.s32.totalorder %s211, %s225
      %p227 = scmp.eq.s32.totalorder %s33, 0
      %p228 = por %p226, %p227
      %s230 = sadd.s32 %s229, 1
      %p233 = scmp.eq.s32.totalorder %s27, 1
      %p234 = scmp.ne.s32.totalorder %s229, %s231
      %p235 = scmp.eq.s32.totalorder %s27, 0
      %p236 = por %p234, %p235
      %p237 = scmp.ne.s32.totalorder %s229, %s231
      %p238 = scmp.eq.s32.totalorder %s32, 1
      %p239 = por %p237, %p238
      %p240 = scmp.ne.s32.totalorder %s231, %s232
      %p241 = scmp.eq.s32.totalorder %s32, 0
      %p242 = por %p240, %p241
      %p243 = scmp.ne.s32.totalorder %s231, %s232
      %p244 = scmp.eq.s32.totalorder %s33, 1
      %p245 = por %p243, %p244
      %p247 = scmp.ne.s32.totalorder %s232, %s246
      %p248 = scmp.eq.s32.totalorder %s33, 0
      %p249 = por %p247, %p248
      %s251 = sadd.s32 %s250, 1
      %p254 = scmp.eq.s32.totalorder %s27, 1
      %p255 = scmp.ne.s32.totalorder %s250, %s252
      %p256 = scmp.eq.s32.totalorder %s27, 0
      %p257 = por %p255, %p256
      %p258 = scmp.ne.s32.totalorder %s250, %s252
      %p259 = scmp.eq.s32.totalorder %s32, 1
      %p260 = por %p258, %p259
      %p261 = scmp.ne.s32.totalorder %s252, %s253
      %p262 = scmp.eq.s32.totalorder %s32, 0
      %p263 = por %p261, %p262
      %p264 = scmp.ne.s32.totalorder %s252, %s253
      %p265 = scmp.eq.s32.totalorder %s33, 1
      %p266 = por %p264, %p265
      %p268 = scmp.ne.s32.totalorder %s253, %s267
      %p269 = scmp.eq.s32.totalorder %s33, 0
      %p270 = por %p268, %p269
      %s272 = sadd.s32 %s271, 1
      %p275 = scmp.eq.s32.totalorder %s27, 1
      %p276 = scmp.ne.s32.totalorder %s271, %s273
      %p277 = scmp.eq.s32.totalorder %s27, 0
      %p278 = por %p276, %p277
      %p279 = scmp.ne.s32.totalorder %s271, %s273
      %p280 = scmp.eq.s32.totalorder %s32, 1
      %p281 = por %p279, %p280
      %p282 = scmp.ne.s32.totalorder %s273, %s274
      %p283 = scmp.eq.s32.totalorder %s32, 0
      %p284 = por %p282, %p283
      %p285 = scmp.ne.s32.totalorder %s273, %s274
      %p286 = scmp.eq.s32.totalorder %s33, 1
      %p287 = por %p285, %p286
      %p289 = scmp.ne.s32.totalorder %s274, %s288
      %p290 = scmp.eq.s32.totalorder %s33, 0
      %p291 = por %p289, %p290
      %s293 = sadd.s32 %s292, 1
      %p296 = scmp.eq.s32.totalorder %s27, 1
      %p297 = scmp.ne.s32.totalorder %s292, %s294
      %p298 = scmp.eq.s32.totalorder %s27, 0
      %p299 = por %p297, %p298
      %p300 = scmp.ne.s32.totalorder %s292, %s294
      %p301 = scmp.eq.s32.totalorder %s32, 1
      %p302 = por %p300, %p301
      %p303 = scmp.ne.s32.totalorder %s294, %s295
      %p304 = scmp.eq.s32.totalorder %s32, 0
      %p305 = por %p303, %p304
      %p306 = scmp.ne.s32.totalorder %s294, %s295
      %p307 = scmp.eq.s32.totalorder %s33, 1
      %p308 = por %p306, %p307
      %p310 = scmp.ne.s32.totalorder %s295, %s309
      %p311 = scmp.eq.s32.totalorder %s33, 0
      %p312 = por %p310, %p311
      %s313 = ssub.s32 %s27, %s34
      %p314 = scmp.eq.s32.totalorder %s313, 0
      %s316 = sadd.s32 %s315, 1
      %s317 = scalar_select %p314, %s315, %s316
      %p320 = pneg %p314
      %p321 = scmp.eq.s32.totalorder %s27, 1
      %p322 = por %p320, %p321
      %p323 = scmp.ne.s32.totalorder %s315, %s318
      %p324 = scmp.eq.s32.totalorder %s27, 0
      %p325 = por %p323, %p324
      %p326 = scmp.ne.s32.totalorder %s315, %s318
      %p327 = scmp.eq.s32.totalorder %s32, 1
      %p328 = por %p326, %p327
      %p329 = scmp.ne.s32.totalorder %s318, %s319
      %p330 = scmp.eq.s32.totalorder %s32, 0
      %p331 = por %p329, %p330
      %p332 = scmp.ne.s32.totalorder %s318, %s319
      %p333 = scmp.eq.s32.totalorder %s33, 1
      %p334 = por %p332, %p333
      %p336 = scmp.ne.s32.totalorder %s319, %s335
      %p337 = scmp.eq.s32.totalorder %s33, 0
      %p338 = por %p336, %p337
      %p339 = scmp.le.s32.totalorder 1, %s27
      %p340 = scmp.lt.s32.totalorder %s27, 3
      %p341 = pnand %p339, %p340
      %p342 = pneg %p341
      // Predicated region
      $region9: #{tpu_custom_call.1} parent=5 // pred_check
        _
      $region10: #{tpu_custom_call.1} parent=5 // pred_check_branch
        %344 = sbr.rel (%p341) target = $region12
      $region11: #{tpu_custom_call.1} parent=5 // pred_region
        %s345 = ssub.s32 %s27, 1
        // Predicated region
        $region13: #{tpu_custom_call.1} parent=11 // pred_check
          %p346 = pneg %p74
        $region14: #{tpu_custom_call.1} parent=11 // pred_check_branch
          %348 = sbr.rel (%p346) target = $region16
        $region15: #{tpu_custom_call.1} parent=11 // pred_region
          _
        $region16: #{tpu_custom_call.1} parent=11 // pred_fallthru
          _
        // Predicated region
        $region17: #{tpu_custom_call.1} parent=11 // pred_check
          %p349 = pneg %p95
        $region18: #{tpu_custom_call.1} parent=11 // pred_check_branch
          %351 = sbr.rel (%p349) target = $region20
        $region19: #{tpu_custom_call.1} parent=11 // pred_region
          %s353 = ssub.s32 128, 128
          %354 = vsyncadd [#allocation4], %s353
          %s356 = sshll.u32 [#allocation3], 4
          %s357 = int_to_ptr.vmem [resolvable:$true] %s356
          %359 = dma.hbm_to_vmem [thread:$0]  %s2, 128, %s357, [#allocation4]
        $region20: #{tpu_custom_call.1} parent=11 // pred_fallthru
          _
        // Predicated region
        $region21: #{tpu_custom_call.1} parent=11 // pred_check
          %p360 = pneg %p116
        $region22: #{tpu_custom_call.1} parent=11 // pred_check_branch
          %362 = sbr.rel (%p360) target = $region24
        $region23: #{tpu_custom_call.1} parent=11 // pred_region
          %s364 = ssub.s32 32768, 32768
          %365 = vsyncadd [#allocation7], %s364
          %s366 = sshll.u32 [#allocation6], 4
          %s367 = int_to_ptr.vmem [resolvable:$true] %s366
          %372 = dma.hbm_to_vmem [thread:$0]  %s3, 32768, %s367, [#allocation7], 256, 256, 16
        $region24: #{tpu_custom_call.1} parent=11 // pred_fallthru
          _
        // Predicated region
        $region25: #{tpu_custom_call.1} parent=11 // pred_check
          %p373 = pneg %p137
        $region26: #{tpu_custom_call.1} parent=11 // pred_check_branch
          %375 = sbr.rel (%p373) target = $region28
        $region27: #{tpu_custom_call.1} parent=11 // pred_region
          _
        $region28: #{tpu_custom_call.1} parent=11 // pred_fallthru
          _
        // Predicated region
        $region29: #{tpu_custom_call.1} parent=11 // pred_check
          %p376 = pneg %p158
        $region30: #{tpu_custom_call.1} parent=11 // pred_check_branch
          %378 = sbr.rel (%p376) target = $region32
        $region31: #{tpu_custom_call.1} parent=11 // pred_region
          %s380 = ssub.s32 8192, 8192
          %381 = vsyncadd [#allocation7], %s380
          %s382 = sshll.u32 [#allocation8], 4
          %s383 = int_to_ptr.vmem [resolvable:$true] %s382
          %388 = dma.hbm_to_vmem [thread:$0]  %s5, 8192, %s383, [#allocation7], 128, 128, 8
        $region32: #{tpu_custom_call.1} parent=11 // pred_fallthru
          _
        // Predicated region
        $region33: #{tpu_custom_call.1} parent=11 // pred_check
          %p389 = pneg %p179
        $region34: #{tpu_custom_call.1} parent=11 // pred_check_branch
          %391 = sbr.rel (%p389) target = $region36
        $region35: #{tpu_custom_call.1} parent=11 // pred_region
          %s393 = ssub.s32 32, 32
          %394 = vsyncadd [#allocation10], %s393
          %s396 = sshll.u32 [#allocation9], 4
          %s397 = int_to_ptr.vmem [resolvable:$true] %s396
          %399 = dma.hbm_to_vmem [thread:$0]  %s6, 32, %s397, [#allocation10]
        $region36: #{tpu_custom_call.1} parent=11 // pred_fallthru
          _
        // Predicated region
        $region37: #{tpu_custom_call.1} parent=11 // pred_check
          %p400 = pneg %p200
        $region38: #{tpu_custom_call.1} parent=11 // pred_check_branch
          %402 = sbr.rel (%p400) target = $region40
        $region39: #{tpu_custom_call.1} parent=11 // pred_region
          _
        $region40: #{tpu_custom_call.1} parent=11 // pred_fallthru
          _
        // Predicated region
        $region41: #{tpu_custom_call.1} parent=11 // pred_check
          %p403 = pneg %p221
        $region42: #{tpu_custom_call.1} parent=11 // pred_check_branch
          %405 = sbr.rel (%p403) target = $region44
        $region43: #{tpu_custom_call.1} parent=11 // pred_region
          _
        $region44: #{tpu_custom_call.1} parent=11 // pred_fallthru
          _
        // Predicated region
        $region45: #{tpu_custom_call.1} parent=11 // pred_check
          %p406 = pneg %p242
        $region46: #{tpu_custom_call.1} parent=11 // pred_check_branch
          %408 = sbr.rel (%p406) target = $region48
        $region47: #{tpu_custom_call.1} parent=11 // pred_region
          _
        $region48: #{tpu_custom_call.1} parent=11 // pred_fallthru
          _
        // Predicated region
        $region49: #{tpu_custom_call.1} parent=11 // pred_check
          %p409 = pneg %p263
        $region50: #{tpu_custom_call.1} parent=11 // pred_check_branch
          %411 = sbr.rel (%p409) target = $region52
        $region51: #{tpu_custom_call.1} parent=11 // pred_region
          _
        $region52: #{tpu_custom_call.1} parent=11 // pred_fallthru
          _
        // Predicated region
        $region53: #{tpu_custom_call.1} parent=11 // pred_check
          %p412 = pneg %p284
        $region54: #{tpu_custom_call.1} parent=11 // pred_check_branch
          %414 = sbr.rel (%p412) target = $region56
        $region55: #{tpu_custom_call.1} parent=11 // pred_region
          _
        $region56: #{tpu_custom_call.1} parent=11 // pred_fallthru
          _
        // Predicated region
        $region57: #{tpu_custom_call.1} parent=11 // pred_check
          %p415 = pneg %p305
        $region58: #{tpu_custom_call.1} parent=11 // pred_check_branch
          %417 = sbr.rel (%p415) target = $region60
        $region59: #{tpu_custom_call.1} parent=11 // pred_region
          _
        $region60: #{tpu_custom_call.1} parent=11 // pred_fallthru
          _
      $region12: #{tpu_custom_call.1} parent=5 // pred_fallthru
        _
      %p418 = scmp.lt.s32.totalorder %s27, 2
      // Predicated region
      $region61: #{tpu_custom_call.1} parent=5 // pred_check
        %p419 = pneg %p418
      $region62: #{tpu_custom_call.1} parent=5 // pred_check_branch
        %421 = sbr.rel (%p419) target = $region64
      $region63: #{tpu_custom_call.1} parent=5 // pred_region
        // Predicated region
        $region65: #{tpu_custom_call.1} parent=63 // pred_check
          %p422 = pneg %p47
        $region66: #{tpu_custom_call.1} parent=63 // pred_check_branch
          %424 = sbr.rel (%p422) target = $region68
        $region67: #{tpu_custom_call.1} parent=63 // pred_region
          %s425 = smul.u32 16, %s27
          %p426 = scmp.lt.s32.totalorder %s425, 31
          %s427 = scalar_select %p426, %s425, 31
          %s428 = smul.addr %s427, 4
          %s429 = scalar_lea.vmem %s0, %s428
          %s430 = smul.u32 16, %s27
        $region68: #{tpu_custom_call.1} parent=63 // pred_fallthru
          _
      $region64: #{tpu_custom_call.1} parent=5 // pred_fallthru
        _
      %p431 = scmp.le.s32.totalorder 1, %s27
      %p432 = scmp.lt.s32.totalorder %s27, 3
      %p433 = pnand %p431, %p432
      %p434 = pneg %p433
      // Predicated region
      $region69: #{tpu_custom_call.1} parent=5 // pred_check
        _
      $region70: #{tpu_custom_call.1} parent=5 // pred_check_branch
        %436 = sbr.rel (%p433) target = $region72
      $region71: #{tpu_custom_call.1} parent=5 // pred_region
        %s437 = ssub.s32 %s27, 1
        // Predicated region
        $region73: #{tpu_custom_call.1} parent=71 // pred_check
          %p438 = pneg %p95
        $region74: #{tpu_custom_call.1} parent=71 // pred_check_branch
          %440 = sbr.rel (%p438) target = $region76
        $region75: #{tpu_custom_call.1} parent=71 // pred_region
          %441 = dma.done [#allocation4], 128
        $region76: #{tpu_custom_call.1} parent=71 // pred_fallthru
          _
        // Predicated region
        $region77: #{tpu_custom_call.1} parent=71 // pred_check
          %p442 = pneg %p116
        $region78: #{tpu_custom_call.1} parent=71 // pred_check_branch
          %444 = sbr.rel (%p442) target = $region80
        $region79: #{tpu_custom_call.1} parent=71 // pred_region
          %445 = dma.done [#allocation7], 32768
        $region80: #{tpu_custom_call.1} parent=71 // pred_fallthru
          _
        // Predicated region
        $region81: #{tpu_custom_call.1} parent=71 // pred_check
          %p446 = pneg %p158
        $region82: #{tpu_custom_call.1} parent=71 // pred_check_branch
          %448 = sbr.rel (%p446) target = $region84
        $region83: #{tpu_custom_call.1} parent=71 // pred_region
          %449 = dma.done [#allocation7], 8192
        $region84: #{tpu_custom_call.1} parent=71 // pred_fallthru
          _
        // Predicated region
        $region85: #{tpu_custom_call.1} parent=71 // pred_check
          %p450 = pneg %p179
        $region86: #{tpu_custom_call.1} parent=71 // pred_check_branch
          %452 = sbr.rel (%p450) target = $region88
        $region87: #{tpu_custom_call.1} parent=71 // pred_region
          %453 = dma.done [#allocation10], 32
        $region88: #{tpu_custom_call.1} parent=71 // pred_fallthru
          _
        %s454 = smul.u32 16, %s32
        %p455 = scmp.lt.s32.totalorder %s454, 31
        %s456 = scalar_select %p455, %s454, 31
        %s457 = smul.addr %s456, 4
        %s458 = scalar_lea.vmem %s0, %s457
        %p459 = pneg %p53
        %p460 = pneg %p50
        %p461 = pneg %p74
        %p462 = pneg %p71
        %p463 = pneg %p95
        %p464 = pneg %p92
        %p465 = pneg %p116
        %p466 = pneg %p113
        %p467 = pneg %p137
        %p468 = pneg %p134
        %p469 = pneg %p158
        %p470 = pneg %p155
        %p471 = pneg %p179
        %p472 = pneg %p176
        %p473 = pneg %p200
        %p474 = pneg %p197
        %p475 = pneg %p221
        %p476 = pneg %p218
        %p477 = pneg %p242
        %p478 = pneg %p239
        %p479 = pneg %p263
        %p480 = pneg %p260
        %p481 = pneg %p284
        %p482 = pneg %p281
        %p483 = pneg %p305
        %p484 = pneg %p302
        %p485 = pneg %p331
        %p486 = pneg %p328
        %s487 = sand.u32 %s318, 1
        %s488 = scalar_lea.sflag [#allocation5], %s487
        %s489 = sand.u32 %s318, 1
        %s490 = scalar_lea.vmem [#allocation11], %s489
        %s491 = smul.u32 16, %s32
        %p492 = scmp.lt.s32.totalorder %s491, 31
        %s493 = scalar_select %p492, %s491, 31
        %s494 = smul.addr %s493, 4
        %s495 = scalar_lea.vmem %s0, %s494
        %s496 = smul.u32 16, %s32
        %v498 = vld [vmem:[%s495] sm:$0xf]
        %v499 = vld [vmem:[%s495 + $0x4] sm:$0xf]
        %v500 = vld [vmem:[%s495 + $0x8] sm:$0xf]
        %v501 = vld [vmem:[%s495 + $0xc] sm:$0xf]
        %v502 = vld [vmem:[%s495 + $0x10] sm:$0xf]
        %v503 = vld [vmem:[%s495 + $0x14] sm:$0xf]
        %v504 = vld [vmem:[%s495 + $0x18] sm:$0xf]
        %v505 = vld [vmem:[%s495 + $0x1c] sm:$0xf]
        %v506 = vld [vmem:[%s495 + $0x20] sm:$0xf]
        %v507 = vld [vmem:[%s495 + $0x24] sm:$0xf]
        %v508 = vld [vmem:[%s495 + $0x28] sm:$0xf]
        %v509 = vld [vmem:[%s495 + $0x2c] sm:$0xf]
        %v510 = vld [vmem:[%s495 + $0x30] sm:$0xf]
        %v511 = vld [vmem:[%s495 + $0x34] sm:$0xf]
        %v512 = vld [vmem:[%s495 + $0x38] sm:$0xf]
        %v513 = vld [vmem:[%s495 + $0x3c] sm:$0xf]
        %v514 = vld [vmem:[%s1] sm:$0xff]
        %v515 = vld [vmem:[%s1 + $0x8] sm:$0xff]
        %v516 = vld [vmem:[%s1 + $0x10] sm:$0xff]
        %v517 = vld [vmem:[%s1 + $0x18] sm:$0xff]
        %v518 = vld [vmem:[%s1 + $0x20] sm:$0xff]
        %v519 = vld [vmem:[%s1 + $0x28] sm:$0xff]
        %v520 = vld [vmem:[%s1 + $0x30] sm:$0xff]
        %v521 = vld [vmem:[%s1 + $0x38] sm:$0xff]
        %v522 = vld [vmem:[%s1 + $0x40] sm:$0xff]
        %v523 = vld [vmem:[%s1 + $0x48] sm:$0xff]
        %v524 = vld [vmem:[%s1 + $0x50] sm:$0xff]
        %v525 = vld [vmem:[%s1 + $0x58] sm:$0xff]
        %v526 = vld [vmem:[%s1 + $0x60] sm:$0xff]
        %v527 = vld [vmem:[%s1 + $0x68] sm:$0xff]
        %v528 = vld [vmem:[%s1 + $0x70] sm:$0xff]
        %v529 = vld [vmem:[%s1 + $0x78] sm:$0xff]
        %v530 = vld [vmem:[#allocation3] sm:$0xff]
        %v532 = vlaneseq
        %v533 = vshrl.u32 %v532, 7
        %v534 = vsub.s32 0, %v533
        %v535 = vrot.slane %v530, %v534
        %v536 = vlaneseq
        %v537 = vshrl.u32 %v536, 7
        %v538 = vsub.s32 1, %v537
        %v539 = vrot.slane %v530, %v538
        %v540 = vlaneseq
        %v541 = vshrl.u32 %v540, 7
        %v542 = vsub.s32 2, %v541
        %v543 = vrot.slane %v530, %v542
        %v544 = vlaneseq
        %v545 = vshrl.u32 %v544, 7
        %v546 = vsub.s32 3, %v545
        %v547 = vrot.slane %v530, %v546
        %v548 = vlaneseq
        %v549 = vshrl.u32 %v548, 7
        %v550 = vsub.s32 4, %v549
        %v551 = vrot.slane %v530, %v550
        %v552 = vlaneseq
        %v553 = vshrl.u32 %v552, 7
        %v554 = vsub.s32 5, %v553
        %v555 = vrot.slane %v530, %v554
        %v556 = vlaneseq
        %v557 = vshrl.u32 %v556, 7
        %v558 = vsub.s32 6, %v557
        %v559 = vrot.slane %v530, %v558
        %v560 = vlaneseq
        %v561 = vshrl.u32 %v560, 7
        %v562 = vsub.s32 7, %v561
        %v563 = vrot.slane %v530, %v562
        %v588 = vunpack.c.l.b16 %v498
        %v589 = vunpack.c.l.b16 %v499
        %v590 = vunpack.c.l.b16 %v500
        %v591 = vunpack.c.l.b16 %v501
        %v592 = vunpack.c.l.b16 %v502
        %v593 = vunpack.c.l.b16 %v503
        %v594 = vunpack.c.l.b16 %v504
        %v595 = vunpack.c.l.b16 %v505
        %v596 = vunpack.c.l.b16 %v506
        %v597 = vunpack.c.l.b16 %v507
        %v598 = vunpack.c.l.b16 %v508
        %v599 = vunpack.c.l.b16 %v509
        %v600 = vunpack.c.l.b16 %v510
        %v601 = vunpack.c.l.b16 %v511
        %v602 = vunpack.c.l.b16 %v512
        %v603 = vunpack.c.l.b16 %v513
        %v604 = vpack.c.b16 %v589, %v588
        %v605 = vpack.c.b16 %v591, %v590
        %v606 = vpack.c.b16 %v593, %v592
        %v607 = vpack.c.b16 %v595, %v594
        %v608 = vpack.c.b16 %v597, %v596
        %v609 = vpack.c.b16 %v599, %v598
        %v610 = vpack.c.b16 %v601, %v600
        %v611 = vpack.c.b16 %v603, %v602
        %v628 = vunpack.c.l.b16 %v514
        %v629 = vunpack.c.h.b16 %v514
        %v630 = vunpack.c.l.b16 %v515
        %v631 = vunpack.c.h.b16 %v515
        %v632 = vunpack.c.l.b16 %v516
        %v633 = vunpack.c.h.b16 %v516
        %v634 = vunpack.c.l.b16 %v517
        %v635 = vunpack.c.h.b16 %v517
        %v636 = vunpack.c.l.b16 %v518
        %v637 = vunpack.c.h.b16 %v518
        %v638 = vunpack.c.l.b16 %v519
        %v639 = vunpack.c.h.b16 %v519
        %v640 = vunpack.c.l.b16 %v520
        %v641 = vunpack.c.h.b16 %v520
        %v642 = vunpack.c.l.b16 %v521
        %v643 = vunpack.c.h.b16 %v521
        %v644 = vunpack.c.l.b16 %v522
        %v645 = vunpack.c.h.b16 %v522
        %v646 = vunpack.c.l.b16 %v523
        %v647 = vunpack.c.h.b16 %v523
        %v648 = vunpack.c.l.b16 %v524
        %v649 = vunpack.c.h.b16 %v524
        %v650 = vunpack.c.l.b16 %v525
        %v651 = vunpack.c.h.b16 %v525
        %v652 = vunpack.c.l.b16 %v526
        %v653 = vunpack.c.h.b16 %v526
        %v654 = vunpack.c.l.b16 %v527
        %v655 = vunpack.c.h.b16 %v527
        %v656 = vunpack.c.l.b16 %v528
        %v657 = vunpack.c.h.b16 %v528
        %v658 = vunpack.c.l.b16 %v529
        %v659 = vunpack.c.h.b16 %v529
        %v660 = vpack.c.b16 %v636, %v628
        %v661 = vpack.c.b16 %v637, %v629
        %v662 = vpack.c.b16 %v638, %v630
        %v663 = vpack.c.b16 %v639, %v631
        %v664 = vpack.c.b16 %v640, %v632
        %v665 = vpack.c.b16 %v641, %v633
        %v666 = vpack.c.b16 %v642, %v634
        %v667 = vpack.c.b16 %v643, %v635
        %v668 = vpack.c.b16 %v652, %v644
        %v669 = vpack.c.b16 %v653, %v645
        %v670 = vpack.c.b16 %v654, %v646
        %v671 = vpack.c.b16 %v655, %v647
        %v672 = vpack.c.b16 %v656, %v648
        %v673 = vpack.c.b16 %v657, %v649
        %v674 = vpack.c.b16 %v658, %v650
        %v675 = vpack.c.b16 %v659, %v651
        %vm692 = vcmask 261120
        %v694 = vsel %vm692, %v604, 0
        %v697 = vsel %vm692, %v605, 0
        %v700 = vsel %vm692, %v606, 0
        %v703 = vsel %vm692, %v607, 0
        %v706 = vsel %vm692, %v608, 0
        %v709 = vsel %vm692, %v609, 0
        %v712 = vsel %vm692, %v610, 0
        %v715 = vsel %vm692, %v611, 0
        %717 = vmatprep.subr.bf16.mxu0 %v661
        %718 = vmatpush1.bf16.msra.mxu0 %v660
        %719 = vmatprep.subr.bf16.mxu0 %v669
        %720 = vmatpush1.bf16.msra.mxu0 %v668
        %721 = vmatprep.subr.bf16.mxu0 0
        %722 = vmatpush1.bf16.msra.mxu0 0
        %723 = vmatprep.subr.bf16.mxu0 0
        %724 = vmatpush1.bf16.msra.mxu0 0
        %725 = vmatprep.subr.bf16.mxu0 0
        %726 = vmatpush1.bf16.msra.mxu0 0
        %727 = vmatprep.subr.bf16.mxu0 0
        %728 = vmatpush1.bf16.msra.mxu0 0
        %729 = vmatprep.subr.bf16.mxu0 0
        %730 = vmatpush1.bf16.msra.mxu0 0
        %731 = vmatprep.subr.bf16.mxu0 0
        %732 = vmatpush1.bf16.msra.mxu0 0
        %733 = vmatprep.subr.bf16.mxu0 0
        %734 = vmatpush1.bf16.msra.mxu0 0
        %735 = vmatprep.subr.bf16.mxu0 0
        %736 = vmatpush1.bf16.msra.mxu0 0
        %737 = vmatprep.subr.bf16.mxu0 0
        %738 = vmatpush1.bf16.msra.mxu0 0
        %739 = vmatprep.subr.bf16.mxu0 0
        %740 = vmatpush1.bf16.msra.mxu0 0
        %741 = vmatprep.subr.bf16.mxu0 0
        %742 = vmatpush1.bf16.msra.mxu0 0
        %743 = vmatprep.subr.bf16.mxu0 0
        %744 = vmatpush1.bf16.msra.mxu0 0
        %745 = vmatprep.subr.bf16.mxu0 0
        %746 = vmatpush1.bf16.msra.mxu0 0
        %747 = vmatprep.subr.bf16.mxu0 0
        %748 = vmatpush1.bf16.msra.mxu0 0
        %749 = vmatprep.mubr.bf16.mxu0 0
        %750 = vmatmul.mubr.bf16.gmra.mrb[0].mxu0 %v694
        %v751 = vpop.f32.mrb[0].mxu0
        %v752 = vadd.f32 %v535, %v751
        %v753 = vpop.f32.mrb[0].mxu0
        %v754 = vadd.f32 %v539, %v753
        %v755 = vpop.f32.mrb[0].mxu0
        %v756 = vadd.f32 %v535, %v755
        %v757 = vpop.f32.mrb[0].mxu0
        %v758 = vadd.f32 %v539, %v757
        %759 = vmatprep.mubr.bf16.mxu0 0
        %760 = vmatmul.mubr.bf16.gmra.mrb[0].mxu0 %v697
        %v761 = vpop.f32.mrb[0].mxu0
        %v762 = vadd.f32 %v535, %v761
        %v763 = vpop.f32.mrb[0].mxu0
        %v764 = vadd.f32 %v539, %v763
        %v765 = vpop.f32.mrb[0].mxu0
        %v766 = vadd.f32 %v535, %v765
        %v767 = vpop.f32.mrb[0].mxu0
        %v768 = vadd.f32 %v539, %v767
        %769 = vmatprep.mubr.bf16.mxu0 0
        %770 = vmatmul.mubr.bf16.gmra.mrb[0].mxu0 %v700
        %v771 = vpop.f32.mrb[0].mxu0
        %v772 = vadd.f32 %v535, %v771
        %v773 = vpop.f32.mrb[0].mxu0
        %v774 = vadd.f32 %v539, %v773
        %v775 = vpop.f32.mrb[0].mxu0
        %v776 = vadd.f32 %v535, %v775
        %v777 = vpop.f32.mrb[0].mxu0
        %v778 = vadd.f32 %v539, %v777
        %779 = vmatprep.mubr.bf16.mxu0 0
        %780 = vmatmul.mubr.bf16.gmra.mrb[0].mxu0 %v703
        %v781 = vpop.f32.mrb[0].mxu0
        %v782 = vadd.f32 %v535, %v781
        %v783 = vpop.f32.mrb[0].mxu0
        %v784 = vadd.f32 %v539, %v783
        %v785 = vpop.f32.mrb[0].mxu0
        %v786 = vadd.f32 %v535, %v785
        %v787 = vpop.f32.mrb[0].mxu0
        %v788 = vadd.f32 %v539, %v787
        %789 = vmatprep.mubr.bf16.mxu0 0
        %790 = vmatmul.mubr.bf16.gmra.mrb[0].mxu0 %v706
        %v791 = vpop.f32.mrb[0].mxu0
        %v792 = vadd.f32 %v535, %v791
        %v793 = vpop.f32.mrb[0].mxu0
        %v794 = vadd.f32 %v539, %v793
        %v795 = vpop.f32.mrb[0].mxu0
        %v796 = vadd.f32 %v535, %v795
        %v797 = vpop.f32.mrb[0].mxu0
        %v798 = vadd.f32 %v539, %v797
        %799 = vmatprep.mubr.bf16.mxu0 0
        %800 = vmatmul.mubr.bf16.gmra.mrb[0].mxu0 %v709
        %v801 = vpop.f32.mrb[0].mxu0
        %v802 = vadd.f32 %v535, %v801
        %v803 = vpop.f32.mrb[0].mxu0
        %v804 = vadd.f32 %v539, %v803
        %v805 = vpop.f32.mrb[0].mxu0
        %v806 = vadd.f32 %v535, %v805
        %v807 = vpop.f32.mrb[0].mxu0
        %v808 = vadd.f32 %v539, %v807
        %809 = vmatprep.mubr.bf16.mxu0 0
        %810 = vmatmul.mubr.bf16.gmra.mrb[0].mxu0 %v712
        %v811 = vpop.f32.mrb[0].mxu0
        %v812 = vadd.f32 %v535, %v811
        %v813 = vpop.f32.mrb[0].mxu0
        %v814 = vadd.f32 %v539, %v813
        %v815 = vpop.f32.mrb[0].mxu0
        %v816 = vadd.f32 %v535, %v815
        %v817 = vpop.f32.mrb[0].mxu0
        %v818 = vadd.f32 %v539, %v817
        %819 = vmatprep.mubr.bf16.mxu0 0
        %820 = vmatmul.mubr.bf16.gmra.mrb[0].mxu0 %v715
        %v821 = vpop.f32.mrb[0].mxu0
        %v822 = vadd.f32 %v535, %v821
        %v823 = vpop.f32.mrb[0].mxu0
        %v824 = vadd.f32 %v539, %v823
        %v825 = vpop.f32.mrb[0].mxu0
        %v826 = vadd.f32 %v535, %v825
        %v827 = vpop.f32.mrb[0].mxu0
        %v828 = vadd.f32 %v539, %v827
        %829 = vdwg.mxu0
        %830 = vmatprep.subr.bf16.mxu0 %v663
        %831 = vmatpush1.bf16.msra.mxu0 %v662
        %832 = vmatprep.subr.bf16.mxu0 %v671
        %833 = vmatpush1.bf16.msra.mxu0 %v670
        %834 = vmatprep.subr.bf16.mxu0 0
        %835 = vmatpush1.bf16.msra.mxu0 0
        %836 = vmatprep.subr.bf16.mxu0 0
        %837 = vmatpush1.bf16.msra.mxu0 0
        %838 = vmatprep.subr.bf16.mxu0 0
        %839 = vmatpush1.bf16.msra.mxu0 0
        %840 = vmatprep.subr.bf16.mxu0 0
        %841 = vmatpush1.bf16.msra.mxu0 0
        %842 = vmatprep.subr.bf16.mxu0 0
        %843 = vmatpush1.bf16.msra.mxu0 0
        %844 = vmatprep.subr.bf16.mxu0 0
        %845 = vmatpush1.bf16.msra.mxu0 0
        %846 = vmatprep.subr.bf16.mxu0 0
        %847 = vmatpush1.bf16.msra.mxu0 0
        %848 = vmatprep.subr.bf16.mxu0 0
        %849 = vmatpush1.bf16.msra.mxu0 0
        %850 = vmatprep.subr.bf16.mxu0 0
        %851 = vmatpush1.bf16.msra.mxu0 0
        %852 = vmatprep.subr.bf16.mxu0 0
        %853 = vmatpush1.bf16.msra.mxu0 0
        %854 = vmatprep.subr.bf16.mxu0 0
        %855 = vmatpush1.bf16.msra.mxu0 0
        %856 = vmatprep.subr.bf16.mxu0 0
        %857 = vmatpush1.bf16.msra.mxu0 0
        %858 = vmatprep.subr.bf16.mxu0 0
        %859 = vmatpush1.bf16.msra.mxu0 0
        %860 = vmatprep.subr.bf16.mxu0 0
        %861 = vmatpush1.bf16.msra.mxu0 0
        %862 = vmatprep.mubr.bf16.mxu0 0
        %863 = vmatmul.mubr.bf16.gmra.mrb[0].mxu0 %v694
        %v864 = vpop.f32.mrb[0].mxu0
        %v865 = vadd.f32 %v543, %v864
        %v866 = vpop.f32.mrb[0].mxu0
        %v867 = vadd.f32 %v547, %v866
        %v868 = vpop.f32.mrb[0].mxu0
        %v869 = vadd.f32 %v543, %v868
        %v870 = vpop.f32.mrb[0].mxu0
        %v871 = vadd.f32 %v547, %v870
        %872 = vmatprep.mubr.bf16.mxu0 0
        %873 = vmatmul.mubr.bf16.gmra.mrb[0].mxu0 %v697
        %v874 = vpop.f32.mrb[0].mxu0
        %v875 = vadd.f32 %v543, %v874
        %v876 = vpop.f32.mrb[0].mxu0
        %v877 = vadd.f32 %v547, %v876
        %v878 = vpop.f32.mrb[0].mxu0
        %v879 = vadd.f32 %v543, %v878
        %v880 = vpop.f32.mrb[0].mxu0
        %v881 = vadd.f32 %v547, %v880
        %882 = vmatprep.mubr.bf16.mxu0 0
        %883 = vmatmul.mubr.bf16.gmra.mrb[0].mxu0 %v700
        %v884 = vpop.f32.mrb[0].mxu0
        %v885 = vadd.f32 %v543, %v884
        %v886 = vpop.f32.mrb[0].mxu0
        %v887 = vadd.f32 %v547, %v886
        %v888 = vpop.f32.mrb[0].mxu0
        %v889 = vadd.f32 %v543, %v888
        %v890 = vpop.f32.mrb[0].mxu0
        %v891 = vadd.f32 %v547, %v890
        %892 = vmatprep.mubr.bf16.mxu0 0
        %893 = vmatmul.mubr.bf16.gmra.mrb[0].mxu0 %v703
        %v894 = vpop.f32.mrb[0].mxu0
        %v895 = vadd.f32 %v543, %v894
        %v896 = vpop.f32.mrb[0].mxu0
        %v897 = vadd.f32 %v547, %v896
        %v898 = vpop.f32.mrb[0].mxu0
        %v899 = vadd.f32 %v543, %v898
        %v900 = vpop.f32.mrb[0].mxu0
        %v901 = vadd.f32 %v547, %v900
        %902 = vmatprep.mubr.bf16.mxu0 0
        %903 = vmatmul.mubr.bf16.gmra.mrb[0].mxu0 %v706
        %v904 = vpop.f32.mrb[0].mxu0
        %v905 = vadd.f32 %v543, %v904
        %v906 = vpop.f32.mrb[0].mxu0
        %v907 = vadd.f32 %v547, %v906
        %v908 = vpop.f32.mrb[0].mxu0
        %v909 = vadd.f32 %v543, %v908
        %v910 = vpop.f32.mrb[0].mxu0
        %v911 = vadd.f32 %v547, %v910
        %912 = vmatprep.mubr.bf16.mxu0 0
        %913 = vmatmul.mubr.bf16.gmra.mrb[0].mxu0 %v709
        %v914 = vpop.f32.mrb[0].mxu0
        %v915 = vadd.f32 %v543, %v914
        %v916 = vpop.f32.mrb[0].mxu0
        %v917 = vadd.f32 %v547, %v916
        %v918 = vpop.f32.mrb[0].mxu0
        %v919 = vadd.f32 %v543, %v918
        %v920 = vpop.f32.mrb[0].mxu0
        %v921 = vadd.f32 %v547, %v920
        %922 = vmatprep.mubr.bf16.mxu0 0
        %923 = vmatmul.mubr.bf16.gmra.mrb[0].mxu0 %v712
        %v924 = vpop.f32.mrb[0].mxu0
        %v925 = vadd.f32 %v543, %v924
        %v926 = vpop.f32.mrb[0].mxu0
        %v927 = vadd.f32 %v547, %v926
        %v928 = vpop.f32.mrb[0].mxu0
        %v929 = vadd.f32 %v543, %v928
        %v930 = vpop.f32.mrb[0].mxu0
        %v931 = vadd.f32 %v547, %v930
        %932 = vmatprep.mubr.bf16.mxu0 0
        %933 = vmatmul.mubr.bf16.gmra.mrb[0].mxu0 %v715
        %v934 = vpop.f32.mrb[0].mxu0
        %v935 = vadd.f32 %v543, %v934
        %v936 = vpop.f32.mrb[0].mxu0
        %v937 = vadd.f32 %v547, %v936
        %v938 = vpop.f32.mrb[0].mxu0
        %v939 = vadd.f32 %v543, %v938
        %v940 = vpop.f32.mrb[0].mxu0
        %v941 = vadd.f32 %v547, %v940
        %942 = vdwg.mxu0
        %943 = vmatprep.subr.bf16.mxu0 %v665
        %944 = vmatpush1.bf16.msra.mxu0 %v664
        %945 = vmatprep.subr.bf16.mxu0 %v673
        %946 = vmatpush1.bf16.msra.mxu0 %v672
        %947 = vmatprep.subr.bf16.mxu0 0
        %948 = vmatpush1.bf16.msra.mxu0 0
        %949 = vmatprep.subr.bf16.mxu0 0
        %950 = vmatpush1.bf16.msra.mxu0 0
        %951 = vmatprep.subr.bf16.mxu0 0
        %952 = vmatpush1.bf16.msra.mxu0 0
        %953 = vmatprep.subr.bf16.mxu0 0
        %954 = vmatpush1.bf16.msra.mxu0 0
        %955 = vmatprep.subr.bf16.mxu0 0
        %956 = vmatpush1.bf16.msra.mxu0 0
        %957 = vmatprep.subr.bf16.mxu0 0
        %958 = vmatpush1.bf16.msra.mxu0 0
        %959 = vmatprep.subr.bf16.mxu0 0
        %960 = vmatpush1.bf16.msra.mxu0 0
        %961 = vmatprep.subr.bf16.mxu0 0
        %962 = vmatpush1.bf16.msra.mxu0 0
        %963 = vmatprep.subr.bf16.mxu0 0
        %964 = vmatpush1.bf16.msra.mxu0 0
        %965 = vmatprep.subr.bf16.mxu0 0
        %966 = vmatpush1.bf16.msra.mxu0 0
        %967 = vmatprep.subr.bf16.mxu0 0
        %968 = vmatpush1.bf16.msra.mxu0 0
        %969 = vmatprep.subr.bf16.mxu0 0
        %970 = vmatpush1.bf16.msra.mxu0 0
        %971 = vmatprep.subr.bf16.mxu0 0
        %972 = vmatpush1.bf16.msra.mxu0 0
        %973 = vmatprep.subr.bf16.mxu0 0
        %974 = vmatpush1.bf16.msra.mxu0 0
        %975 = vmatprep.mubr.bf16.mxu0 0
        %976 = vmatmul.mubr.bf16.gmra.mrb[0].mxu0 %v694
        %v977 = vpop.f32.mrb[0].mxu0
        %v978 = vadd.f32 %v551, %v977
        %v979 = vpop.f32.mrb[0].mxu0
        %v980 = vadd.f32 %v555, %v979
        %v981 = vpop.f32.mrb[0].mxu0
        %v982 = vadd.f32 %v551, %v981
        %v983 = vpop.f32.mrb[0].mxu0
        %v984 = vadd.f32 %v555, %v983
        %985 = vmatprep.mubr.bf16.mxu0 0
        %986 = vmatmul.mubr.bf16.gmra.mrb[0].mxu0 %v697
        %v987 = vpop.f32.mrb[0].mxu0
        %v988 = vadd.f32 %v551, %v987
        %v989 = vpop.f32.mrb[0].mxu0
        %v990 = vadd.f32 %v555, %v989
        %v991 = vpop.f32.mrb[0].mxu0
        %v992 = vadd.f32 %v551, %v991
        %v993 = vpop.f32.mrb[0].mxu0
        %v994 = vadd.f32 %v555, %v993
        %995 = vmatprep.mubr.bf16.mxu0 0
        %996 = vmatmul.mubr.bf16.gmra.mrb[0].mxu0 %v700
        %v997 = vpop.f32.mrb[0].mxu0
        %v998 = vadd.f32 %v551, %v997
        %v999 = vpop.f32.mrb[0].mxu0
        %v1000 = vadd.f32 %v555, %v999
        %v1001 = vpop.f32.mrb[0].mxu0
        %v1002 = vadd.f32 %v551, %v1001
        %v1003 = vpop.f32.mrb[0].mxu0
        %v1004 = vadd.f32 %v555, %v1003
        %1005 = vmatprep.mubr.bf16.mxu0 0
        %1006 = vmatmul.mubr.bf16.gmra.mrb[0].mxu0 %v703
        %v1007 = vpop.f32.mrb[0].mxu0
        %v1008 = vadd.f32 %v551, %v1007
        %v1009 = vpop.f32.mrb[0].mxu0
        %v1010 = vadd.f32 %v555, %v1009
        %v1011 = vpop.f32.mrb[0].mxu0
        %v1012 = vadd.f32 %v551, %v1011
        %v1013 = vpop.f32.mrb[0].mxu0
        %v1014 = vadd.f32 %v555, %v1013
        %1015 = vmatprep.mubr.bf16.mxu0 0
        %1016 = vmatmul.mubr.bf16.gmra.mrb[0].mxu0 %v706
        %v1017 = vpop.f32.mrb[0].mxu0
        %v1018 = vadd.f32 %v551, %v1017
        %v1019 = vpop.f32.mrb[0].mxu0
        %v1020 = vadd.f32 %v555, %v1019
        %v1021 = vpop.f32.mrb[0].mxu0
        %v1022 = vadd.f32 %v551, %v1021
        %v1023 = vpop.f32.mrb[0].mxu0
        %v1024 = vadd.f32 %v555, %v1023
        %1025 = vmatprep.mubr.bf16.mxu0 0
        %1026 = vmatmul.mubr.bf16.gmra.mrb[0].mxu0 %v709
        %v1027 = vpop.f32.mrb[0].mxu0
        %v1028 = vadd.f32 %v551, %v1027
        %v1029 = vpop.f32.mrb[0].mxu0
        %v1030 = vadd.f32 %v555, %v1029
        %v1031 = vpop.f32.mrb[0].mxu0
        %v1032 = vadd.f32 %v551, %v1031
        %v1033 = vpop.f32.mrb[0].mxu0
        %v1034 = vadd.f32 %v555, %v1033
        %1035 = vmatprep.mubr.bf16.mxu0 0
        %1036 = vmatmul.mubr.bf16.gmra.mrb[0].mxu0 %v712
        %v1037 = vpop.f32.mrb[0].mxu0
        %v1038 = vadd.f32 %v551, %v1037
        %v1039 = vpop.f32.mrb[0].mxu0
        %v1040 = vadd.f32 %v555, %v1039
        %v1041 = vpop.f32.mrb[0].mxu0
        %v1042 = vadd.f32 %v551, %v1041
        %v1043 = vpop.f32.mrb[0].mxu0
        %v1044 = vadd.f32 %v555, %v1043
        %1045 = vmatprep.mubr.bf16.mxu0 0
        %1046 = vmatmul.mubr.bf16.gmra.mrb[0].mxu0 %v715
        %v1047 = vpop.f32.mrb[0].mxu0
        %v1048 = vadd.f32 %v551, %v1047
        %v1049 = vpop.f32.mrb[0].mxu0
        %v1050 = vadd.f32 %v555, %v1049
        %v1051 = vpop.f32.mrb[0].mxu0
        %v1052 = vadd.f32 %v551, %v1051
        %v1053 = vpop.f32.mrb[0].mxu0
        %v1054 = vadd.f32 %v555, %v1053
        %1055 = vdwg.mxu0
        %1056 = vmatprep.subr.bf16.mxu0 %v667
        %1057 = vmatpush1.bf16.msra.mxu0 %v666
        %1058 = vmatprep.subr.bf16.mxu0 %v675
        %1059 = vmatpush1.bf16.msra.mxu0 %v674
        %1060 = vmatprep.subr.bf16.mxu0 0
        %1061 = vmatpush1.bf16.msra.mxu0 0
        %1062 = vmatprep.subr.bf16.mxu0 0
        %1063 = vmatpush1.bf16.msra.mxu0 0
        %1064 = vmatprep.subr.bf16.mxu0 0
        %1065 = vmatpush1.bf16.msra.mxu0 0
        %1066 = vmatprep.subr.bf16.mxu0 0
        %1067 = vmatpush1.bf16.msra.mxu0 0
        %1068 = vmatprep.subr.bf16.mxu0 0
        %1069 = vmatpush1.bf16.msra.mxu0 0
        %1070 = vmatprep.subr.bf16.mxu0 0
        %1071 = vmatpush1.bf16.msra.mxu0 0
        %1072 = vmatprep.subr.bf16.mxu0 0
        %1073 = vmatpush1.bf16.msra.mxu0 0
        %1074 = vmatprep.subr.bf16.mxu0 0
        %1075 = vmatpush1.bf16.msra.mxu0 0
        %1076 = vmatprep.subr.bf16.mxu0 0
        %1077 = vmatpush1.bf16.msra.mxu0 0
        %1078 = vmatprep.subr.bf16.mxu0 0
        %1079 = vmatpush1.bf16.msra.mxu0 0
        %1080 = vmatprep.subr.bf16.mxu0 0
        %1081 = vmatpush1.bf16.msra.mxu0 0
        %1082 = vmatprep.subr.bf16.mxu0 0
        %1083 = vmatpush1.bf16.msra.mxu0 0
        %1084 = vmatprep.subr.bf16.mxu0 0
        %1085 = vmatpush1.bf16.msra.mxu0 0
        %1086 = vmatprep.subr.bf16.mxu0 0
        %1087 = vmatpush1.bf16.msra.mxu0 0
        %1088 = vmatprep.mubr.bf16.mxu0 0
        %1089 = vmatmul.mubr.bf16.gmra.mrb[0].mxu0 %v694
        %v1090 = vpop.f32.mrb[0].mxu0
        %v1091 = vadd.f32 %v559, %v1090
        %v1092 = vpop.f32.mrb[0].mxu0
        %v1093 = vadd.f32 %v563, %v1092
        %v1094 = vpop.f32.mrb[0].mxu0
        %v1095 = vadd.f32 %v559, %v1094
        %v1096 = vpop.f32.mrb[0].mxu0
        %v1097 = vadd.f32 %v563, %v1096
        %1098 = vmatprep.mubr.bf16.mxu0 0
        %1099 = vmatmul.mubr.bf16.gmra.mrb[0].mxu0 %v697
        %v1100 = vpop.f32.mrb[0].mxu0
        %v1101 = vadd.f32 %v559, %v1100
        %v1102 = vpop.f32.mrb[0].mxu0
        %v1103 = vadd.f32 %v563, %v1102
        %v1104 = vpop.f32.mrb[0].mxu0
        %v1105 = vadd.f32 %v559, %v1104
        %v1106 = vpop.f32.mrb[0].mxu0
        %v1107 = vadd.f32 %v563, %v1106
        %1108 = vmatprep.mubr.bf16.mxu0 0
        %1109 = vmatmul.mubr.bf16.gmra.mrb[0].mxu0 %v700
        %v1110 = vpop.f32.mrb[0].mxu0
        %v1111 = vadd.f32 %v559, %v1110
        %v1112 = vpop.f32.mrb[0].mxu0
        %v1113 = vadd.f32 %v563, %v1112
        %v1114 = vpop.f32.mrb[0].mxu0
        %v1115 = vadd.f32 %v559, %v1114
        %v1116 = vpop.f32.mrb[0].mxu0
        %v1117 = vadd.f32 %v563, %v1116
        %1118 = vmatprep.mubr.bf16.mxu0 0
        %1119 = vmatmul.mubr.bf16.gmra.mrb[0].mxu0 %v703
        %v1120 = vpop.f32.mrb[0].mxu0
        %v1121 = vadd.f32 %v559, %v1120
        %v1122 = vpop.f32.mrb[0].mxu0
        %v1123 = vadd.f32 %v563, %v1122
        %v1124 = vpop.f32.mrb[0].mxu0
        %v1125 = vadd.f32 %v559, %v1124
        %v1126 = vpop.f32.mrb[0].mxu0
        %v1127 = vadd.f32 %v563, %v1126
        %1128 = vmatprep.mubr.bf16.mxu0 0
        %1129 = vmatmul.mubr.bf16.gmra.mrb[0].mxu0 %v706
        %v1130 = vpop.f32.mrb[0].mxu0
        %v1131 = vadd.f32 %v559, %v1130
        %v1132 = vpop.f32.mrb[0].mxu0
        %v1133 = vadd.f32 %v563, %v1132
        %v1134 = vpop.f32.mrb[0].mxu0
        %v1135 = vadd.f32 %v559, %v1134
        %v1136 = vpop.f32.mrb[0].mxu0
        %v1137 = vadd.f32 %v563, %v1136
        %1138 = vmatprep.mubr.bf16.mxu0 0
        %1139 = vmatmul.mubr.bf16.gmra.mrb[0].mxu0 %v709
        %v1140 = vpop.f32.mrb[0].mxu0
        %v1141 = vadd.f32 %v559, %v1140
        %v1142 = vpop.f32.mrb[0].mxu0
        %v1143 = vadd.f32 %v563, %v1142
        %v1144 = vpop.f32.mrb[0].mxu0
        %v1145 = vadd.f32 %v559, %v1144
        %v1146 = vpop.f32.mrb[0].mxu0
        %v1147 = vadd.f32 %v563, %v1146
        %1148 = vmatprep.mubr.bf16.mxu0 0
        %1149 = vmatmul.mubr.bf16.gmra.mrb[0].mxu0 %v712
        %v1150 = vpop.f32.mrb[0].mxu0
        %v1151 = vadd.f32 %v559, %v1150
        %v1152 = vpop.f32.mrb[0].mxu0
        %v1153 = vadd.f32 %v563, %v1152
        %v1154 = vpop.f32.mrb[0].mxu0
        %v1155 = vadd.f32 %v559, %v1154
        %v1156 = vpop.f32.mrb[0].mxu0
        %v1157 = vadd.f32 %v563, %v1156
        %1158 = vmatprep.mubr.bf16.mxu0 0
        %1159 = vmatmul.mubr.bf16.gmra.mrb[0].mxu0 %v715
        %v1160 = vpop.f32.mrb[0].mxu0
        %v1161 = vadd.f32 %v559, %v1160
        %v1162 = vpop.f32.mrb[0].mxu0
        %v1163 = vadd.f32 %v563, %v1162
        %v1164 = vpop.f32.mrb[0].mxu0
        %v1165 = vadd.f32 %v559, %v1164
        %v1166 = vpop.f32.mrb[0].mxu0
        %v1167 = vadd.f32 %v563, %v1166
        %1168 = vdwg.mxu0
        %v1169 = vmax.f32 %v752, 0.0
        %v1170 = vmax.f32 %v754, 0.0
        %v1171 = vmax.f32 %v865, 0.0
        %v1172 = vmax.f32 %v867, 0.0
        %v1173 = vmax.f32 %v978, 0.0
        %v1174 = vmax.f32 %v980, 0.0
        %v1175 = vmax.f32 %v1091, 0.0
        %v1176 = vmax.f32 %v1093, 0.0
        %v1177 = vmax.f32 %v756, 0.0
        %v1178 = vmax.f32 %v758, 0.0
        %v1179 = vmax.f32 %v869, 0.0
        %v1180 = vmax.f32 %v871, 0.0
        %v1181 = vmax.f32 %v982, 0.0
        %v1182 = vmax.f32 %v984, 0.0
        %v1183 = vmax.f32 %v1095, 0.0
        %v1184 = vmax.f32 %v1097, 0.0
        %v1185 = vmax.f32 %v762, 0.0
        %v1186 = vmax.f32 %v764, 0.0
        %v1187 = vmax.f32 %v875, 0.0
        %v1188 = vmax.f32 %v877, 0.0
        %v1189 = vmax.f32 %v988, 0.0
        %v1190 = vmax.f32 %v990, 0.0
        %v1191 = vmax.f32 %v1101, 0.0
        %v1192 = vmax.f32 %v1103, 0.0
        %v1193 = vmax.f32 %v766, 0.0
        %v1194 = vmax.f32 %v768, 0.0
        %v1195 = vmax.f32 %v879, 0.0
        %v1196 = vmax.f32 %v881, 0.0
        %v1197 = vmax.f32 %v992, 0.0
        %v1198 = vmax.f32 %v994, 0.0
        %v1199 = vmax.f32 %v1105, 0.0
        %v1200 = vmax.f32 %v1107, 0.0
        %v1201 = vmax.f32 %v772, 0.0
        %v1202 = vmax.f32 %v774, 0.0
        %v1203 = vmax.f32 %v885, 0.0
        %v1204 = vmax.f32 %v887, 0.0
        %v1205 = vmax.f32 %v998, 0.0
        %v1206 = vmax.f32 %v1000, 0.0
        %v1207 = vmax.f32 %v1111, 0.0
        %v1208 = vmax.f32 %v1113, 0.0
        %v1209 = vmax.f32 %v776, 0.0
        %v1210 = vmax.f32 %v778, 0.0
        %v1211 = vmax.f32 %v889, 0.0
        %v1212 = vmax.f32 %v891, 0.0
        %v1213 = vmax.f32 %v1002, 0.0
        %v1214 = vmax.f32 %v1004, 0.0
        %v1215 = vmax.f32 %v1115, 0.0
        %v1216 = vmax.f32 %v1117, 0.0
        %v1217 = vmax.f32 %v782, 0.0
        %v1218 = vmax.f32 %v784, 0.0
        %v1219 = vmax.f32 %v895, 0.0
        %v1220 = vmax.f32 %v897, 0.0
        %v1221 = vmax.f32 %v1008, 0.0
        %v1222 = vmax.f32 %v1010, 0.0
        %v1223 = vmax.f32 %v1121, 0.0
        %v1224 = vmax.f32 %v1123, 0.0
        %v1225 = vmax.f32 %v786, 0.0
        %v1226 = vmax.f32 %v788, 0.0
        %v1227 = vmax.f32 %v899, 0.0
        %v1228 = vmax.f32 %v901, 0.0
        %v1229 = vmax.f32 %v1012, 0.0
        %v1230 = vmax.f32 %v1014, 0.0
        %v1231 = vmax.f32 %v1125, 0.0
        %v1232 = vmax.f32 %v1127, 0.0
        %v1233 = vmax.f32 %v792, 0.0
        %v1234 = vmax.f32 %v794, 0.0
        %v1235 = vmax.f32 %v905, 0.0
        %v1236 = vmax.f32 %v907, 0.0
        %v1237 = vmax.f32 %v1018, 0.0
        %v1238 = vmax.f32 %v1020, 0.0
        %v1239 = vmax.f32 %v1131, 0.0
        %v1240 = vmax.f32 %v1133, 0.0
        %v1241 = vmax.f32 %v796, 0.0
        %v1242 = vmax.f32 %v798, 0.0
        %v1243 = vmax.f32 %v909, 0.0
        %v1244 = vmax.f32 %v911, 0.0
        %v1245 = vmax.f32 %v1022, 0.0
        %v1246 = vmax.f32 %v1024, 0.0
        %v1247 = vmax.f32 %v1135, 0.0
        %v1248 = vmax.f32 %v1137, 0.0
        %v1249 = vmax.f32 %v802, 0.0
        %v1250 = vmax.f32 %v804, 0.0
        %v1251 = vmax.f32 %v915, 0.0
        %v1252 = vmax.f32 %v917, 0.0
        %v1253 = vmax.f32 %v1028, 0.0
        %v1254 = vmax.f32 %v1030, 0.0
        %v1255 = vmax.f32 %v1141, 0.0
        %v1256 = vmax.f32 %v1143, 0.0
        %v1257 = vmax.f32 %v806, 0.0
        %v1258 = vmax.f32 %v808, 0.0
        %v1259 = vmax.f32 %v919, 0.0
        %v1260 = vmax.f32 %v921, 0.0
        %v1261 = vmax.f32 %v1032, 0.0
        %v1262 = vmax.f32 %v1034, 0.0
        %v1263 = vmax.f32 %v1145, 0.0
        %v1264 = vmax.f32 %v1147, 0.0
        %v1265 = vmax.f32 %v812, 0.0
        %v1266 = vmax.f32 %v814, 0.0
        %v1267 = vmax.f32 %v925, 0.0
        %v1268 = vmax.f32 %v927, 0.0
        %v1269 = vmax.f32 %v1038, 0.0
        %v1270 = vmax.f32 %v1040, 0.0
        %v1271 = vmax.f32 %v1151, 0.0
        %v1272 = vmax.f32 %v1153, 0.0
        %v1273 = vmax.f32 %v816, 0.0
        %v1274 = vmax.f32 %v818, 0.0
        %v1275 = vmax.f32 %v929, 0.0
        %v1276 = vmax.f32 %v931, 0.0
        %v1277 = vmax.f32 %v1042, 0.0
        %v1278 = vmax.f32 %v1044, 0.0
        %v1279 = vmax.f32 %v1155, 0.0
        %v1280 = vmax.f32 %v1157, 0.0
        %v1281 = vmax.f32 %v822, 0.0
        %v1282 = vmax.f32 %v824, 0.0
        %v1283 = vmax.f32 %v935, 0.0
        %v1284 = vmax.f32 %v937, 0.0
        %v1285 = vmax.f32 %v1048, 0.0
        %v1286 = vmax.f32 %v1050, 0.0
        %v1287 = vmax.f32 %v1161, 0.0
        %v1288 = vmax.f32 %v1163, 0.0
        %v1289 = vmax.f32 %v826, 0.0
        %v1290 = vmax.f32 %v828, 0.0
        %v1291 = vmax.f32 %v939, 0.0
        %v1292 = vmax.f32 %v941, 0.0
        %v1293 = vmax.f32 %v1052, 0.0
        %v1294 = vmax.f32 %v1054, 0.0
        %v1295 = vmax.f32 %v1165, 0.0
        %v1296 = vmax.f32 %v1167, 0.0
        %v1297 = vpack.c.bf16 %v1177, %v1169
        %v1298 = vpack.c.bf16 %v1178, %v1170
        %v1299 = vpack.c.bf16 %v1179, %v1171
        %v1300 = vpack.c.bf16 %v1180, %v1172
        %v1301 = vpack.c.bf16 %v1181, %v1173
        %v1302 = vpack.c.bf16 %v1182, %v1174
        %v1303 = vpack.c.bf16 %v1183, %v1175
        %v1304 = vpack.c.bf16 %v1184, %v1176
        %v1305 = vpack.c.bf16 %v1193, %v1185
        %v1306 = vpack.c.bf16 %v1194, %v1186
        %v1307 = vpack.c.bf16 %v1195, %v1187
        %v1308 = vpack.c.bf16 %v1196, %v1188
        %v1309 = vpack.c.bf16 %v1197, %v1189
        %v1310 = vpack.c.bf16 %v1198, %v1190
        %v1311 = vpack.c.bf16 %v1199, %v1191
        %v1312 = vpack.c.bf16 %v1200, %v1192
        %v1313 = vpack.c.bf16 %v1209, %v1201
        %v1314 = vpack.c.bf16 %v1210, %v1202
        %v1315 = vpack.c.bf16 %v1211, %v1203
        %v1316 = vpack.c.bf16 %v1212, %v1204
        %v1317 = vpack.c.bf16 %v1213, %v1205
        %v1318 = vpack.c.bf16 %v1214, %v1206
        %v1319 = vpack.c.bf16 %v1215, %v1207
        %v1320 = vpack.c.bf16 %v1216, %v1208
        %v1321 = vpack.c.bf16 %v1225, %v1217
        %v1322 = vpack.c.bf16 %v1226, %v1218
        %v1323 = vpack.c.bf16 %v1227, %v1219
        %v1324 = vpack.c.bf16 %v1228, %v1220
        %v1325 = vpack.c.bf16 %v1229, %v1221
        %v1326 = vpack.c.bf16 %v1230, %v1222
        %v1327 = vpack.c.bf16 %v1231, %v1223
        %v1328 = vpack.c.bf16 %v1232, %v1224
        %v1329 = vpack.c.bf16 %v1241, %v1233
        %v1330 = vpack.c.bf16 %v1242, %v1234
        %v1331 = vpack.c.bf16 %v1243, %v1235
        %v1332 = vpack.c.bf16 %v1244, %v1236
        %v1333 = vpack.c.bf16 %v1245, %v1237
        %v1334 = vpack.c.bf16 %v1246, %v1238
        %v1335 = vpack.c.bf16 %v1247, %v1239
        %v1336 = vpack.c.bf16 %v1248, %v1240
        %v1337 = vpack.c.bf16 %v1257, %v1249
        %v1338 = vpack.c.bf16 %v1258, %v1250
        %v1339 = vpack.c.bf16 %v1259, %v1251
        %v1340 = vpack.c.bf16 %v1260, %v1252
        %v1341 = vpack.c.bf16 %v1261, %v1253
        %v1342 = vpack.c.bf16 %v1262, %v1254
        %v1343 = vpack.c.bf16 %v1263, %v1255
        %v1344 = vpack.c.bf16 %v1264, %v1256
        %v1345 = vpack.c.bf16 %v1273, %v1265
        %v1346 = vpack.c.bf16 %v1274, %v1266
        %v1347 = vpack.c.bf16 %v1275, %v1267
        %v1348 = vpack.c.bf16 %v1276, %v1268
        %v1349 = vpack.c.bf16 %v1277, %v1269
        %v1350 = vpack.c.bf16 %v1278, %v1270
        %v1351 = vpack.c.bf16 %v1279, %v1271
        %v1352 = vpack.c.bf16 %v1280, %v1272
        %v1353 = vpack.c.bf16 %v1289, %v1281
        %v1354 = vpack.c.bf16 %v1290, %v1282
        %v1355 = vpack.c.bf16 %v1291, %v1283
        %v1356 = vpack.c.bf16 %v1292, %v1284
        %v1357 = vpack.c.bf16 %v1293, %v1285
        %v1358 = vpack.c.bf16 %v1294, %v1286
        %v1359 = vpack.c.bf16 %v1295, %v1287
        %v1360 = vpack.c.bf16 %v1296, %v1288
        %v1361 = vld [vmem:[#allocation6] sm:$0xff]
        %v1362 = vld [vmem:[#allocation6 + $0x8] sm:$0xff]
        %v1363 = vld [vmem:[#allocation6 + $0x10] sm:$0xff]
        %v1364 = vld [vmem:[#allocation6 + $0x18] sm:$0xff]
        %v1365 = vld [vmem:[#allocation6 + $0x20] sm:$0xff]
        %v1366 = vld [vmem:[#allocation6 + $0x28] sm:$0xff]
        %v1367 = vld [vmem:[#allocation6 + $0x30] sm:$0xff]
        %v1368 = vld [vmem:[#allocation6 + $0x38] sm:$0xff]
        %v1369 = vld [vmem:[#allocation6 + $0x40] sm:$0xff]
        %v1370 = vld [vmem:[#allocation6 + $0x48] sm:$0xff]
        %v1371 = vld [vmem:[#allocation6 + $0x50] sm:$0xff]
        %v1372 = vld [vmem:[#allocation6 + $0x58] sm:$0xff]
        %v1373 = vld [vmem:[#allocation6 + $0x60] sm:$0xff]
        %v1374 = vld [vmem:[#allocation6 + $0x68] sm:$0xff]
        %v1375 = vld [vmem:[#allocation6 + $0x70] sm:$0xff]
        %v1376 = vld [vmem:[#allocation6 + $0x78] sm:$0xff]
        %v1377 = vld [vmem:[#allocation6 + $0x80] sm:$0xff]
        %v1378 = vld [vmem:[#allocation6 + $0x88] sm:$0xff]
        %v1379 = vld [vmem:[#allocation6 + $0x90] sm:$0xff]
        %v1380 = vld [vmem:[#allocation6 + $0x98] sm:$0xff]
        %v1381 = vld [vmem:[#allocation6 + $0xa0] sm:$0xff]
        %v1382 = vld [vmem:[#allocation6 + $0xa8] sm:$0xff]
        %v1383 = vld [vmem:[#allocation6 + $0xb0] sm:$0xff]
        %v1384 = vld [vmem:[#allocation6 + $0xb8] sm:$0xff]
        %v1385 = vld [vmem:[#allocation6 + $0xc0] sm:$0xff]
        %v1386 = vld [vmem:[#allocation6 + $0xc8] sm:$0xff]
        %v1387 = vld [vmem:[#allocation6 + $0xd0] sm:$0xff]
        %v1388 = vld [vmem:[#allocation6 + $0xd8] sm:$0xff]
        %v1389 = vld [vmem:[#allocation6 + $0xe0] sm:$0xff]
        %v1390 = vld [vmem:[#allocation6 + $0xe8] sm:$0xff]
        %v1391 = vld [vmem:[#allocation6 + $0xf0] sm:$0xff]
        %v1392 = vld [vmem:[#allocation6 + $0xf8] sm:$0xff]
        %v1393 = vld [vmem:[#allocation6 + $0x100] sm:$0xff]
        %v1394 = vld [vmem:[#allocation6 + $0x108] sm:$0xff]
        %v1395 = vld [vmem:[#allocation6 + $0x110] sm:$0xff]
        %v1396 = vld [vmem:[#allocation6 + $0x118] sm:$0xff]
        %v1397 = vld [vmem:[#allocation6 + $0x120] sm:$0xff]
        %v1398 = vld [vmem:[#allocation6 + $0x128] sm:$0xff]
        %v1399 = vld [vmem:[#allocation6 + $0x130] sm:$0xff]
        %v1400 = vld [vmem:[#allocation6 + $0x138] sm:$0xff]
        %v1401 = vld [vmem:[#allocation6 + $0x140] sm:$0xff]
        %v1402 = vld [vmem:[#allocation6 + $0x148] sm:$0xff]
        %v1403 = vld [vmem:[#allocation6 + $0x150] sm:$0xff]
        %v1404 = vld [vmem:[#allocation6 + $0x158] sm:$0xff]
        %v1405 = vld [vmem:[#allocation6 + $0x160] sm:$0xff]
        %v1406 = vld [vmem:[#allocation6 + $0x168] sm:$0xff]
        %v1407 = vld [vmem:[#allocation6 + $0x170] sm:$0xff]
        %v1408 = vld [vmem:[#allocation6 + $0x178] sm:$0xff]
        %v1409 = vld [vmem:[#allocation6 + $0x180] sm:$0xff]
        %v1410 = vld [vmem:[#allocation6 + $0x188] sm:$0xff]
        %v1411 = vld [vmem:[#allocation6 + $0x190] sm:$0xff]
        %v1412 = vld [vmem:[#allocation6 + $0x198] sm:$0xff]
        %v1413 = vld [vmem:[#allocation6 + $0x1a0] sm:$0xff]
        %v1414 = vld [vmem:[#allocation6 + $0x1a8] sm:$0xff]
        %v1415 = vld [vmem:[#allocation6 + $0x1b0] sm:$0xff]
        %v1416 = vld [vmem:[#allocation6 + $0x1b8] sm:$0xff]
        %v1417 = vld [vmem:[#allocation6 + $0x1c0] sm:$0xff]
        %v1418 = vld [vmem:[#allocation6 + $0x1c8] sm:$0xff]
        %v1419 = vld [vmem:[#allocation6 + $0x1d0] sm:$0xff]
        %v1420 = vld [vmem:[#allocation6 + $0x1d8] sm:$0xff]
        %v1421 = vld [vmem:[#allocation6 + $0x1e0] sm:$0xff]
        %v1422 = vld [vmem:[#allocation6 + $0x1e8] sm:$0xff]
        %v1423 = vld [vmem:[#allocation6 + $0x1f0] sm:$0xff]
        %v1424 = vld [vmem:[#allocation6 + $0x1f8] sm:$0xff]
        %v1425 = vld [vmem:[#allocation6 + $0x200] sm:$0xff]
        %v1426 = vld [vmem:[#allocation6 + $0x208] sm:$0xff]
        %v1427 = vld [vmem:[#allocation6 + $0x210] sm:$0xff]
        %v1428 = vld [vmem:[#allocation6 + $0x218] sm:$0xff]
        %v1429 = vld [vmem:[#allocation6 + $0x220] sm:$0xff]
        %v1430 = vld [vmem:[#allocation6 + $0x228] sm:$0xff]
        %v1431 = vld [vmem:[#allocation6 + $0x230] sm:$0xff]
        %v1432 = vld [vmem:[#allocation6 + $0x238] sm:$0xff]
        %v1433 = vld [vmem:[#allocation6 + $0x240] sm:$0xff]
        %v1434 = vld [vmem:[#allocation6 + $0x248] sm:$0xff]
        %v1435 = vld [vmem:[#allocation6 + $0x250] sm:$0xff]
        %v1436 = vld [vmem:[#allocation6 + $0x258] sm:$0xff]
        %v1437 = vld [vmem:[#allocation6 + $0x260] sm:$0xff]
        %v1438 = vld [vmem:[#allocation6 + $0x268] sm:$0xff]
        %v1439 = vld [vmem:[#allocation6 + $0x270] sm:$0xff]
        %v1440 = vld [vmem:[#allocation6 + $0x278] sm:$0xff]
        %v1441 = vld [vmem:[#allocation6 + $0x280] sm:$0xff]
        %v1442 = vld [vmem:[#allocation6 + $0x288] sm:$0xff]
        %v1443 = vld [vmem:[#allocation6 + $0x290] sm:$0xff]
        %v1444 = vld [vmem:[#allocation6 + $0x298] sm:$0xff]
        %v1445 = vld [vmem:[#allocation6 + $0x2a0] sm:$0xff]
        %v1446 = vld [vmem:[#allocation6 + $0x2a8] sm:$0xff]
        %v1447 = vld [vmem:[#allocation6 + $0x2b0] sm:$0xff]
        %v1448 = vld [vmem:[#allocation6 + $0x2b8] sm:$0xff]
        %v1449 = vld [vmem:[#allocation6 + $0x2c0] sm:$0xff]
        %v1450 = vld [vmem:[#allocation6 + $0x2c8] sm:$0xff]
        %v1451 = vld [vmem:[#allocation6 + $0x2d0] sm:$0xff]
        %v1452 = vld [vmem:[#allocation6 + $0x2d8] sm:$0xff]
        %v1453 = vld [vmem:[#allocation6 + $0x2e0] sm:$0xff]
        %v1454 = vld [vmem:[#allocation6 + $0x2e8] sm:$0xff]
        %v1455 = vld [vmem:[#allocation6 + $0x2f0] sm:$0xff]
        %v1456 = vld [vmem:[#allocation6 + $0x2f8] sm:$0xff]
        %v1457 = vld [vmem:[#allocation6 + $0x300] sm:$0xff]
        %v1458 = vld [vmem:[#allocation6 + $0x308] sm:$0xff]
        %v1459 = vld [vmem:[#allocation6 + $0x310] sm:$0xff]
        %v1460 = vld [vmem:[#allocation6 + $0x318] sm:$0xff]
        %v1461 = vld [vmem:[#allocation6 + $0x320] sm:$0xff]
        %v1462 = vld [vmem:[#allocation6 + $0x328] sm:$0xff]
        %v1463 = vld [vmem:[#allocation6 + $0x330] sm:$0xff]
        %v1464 = vld [vmem:[#allocation6 + $0x338] sm:$0xff]
        %v1465 = vld [vmem:[#allocation6 + $0x340] sm:$0xff]
        %v1466 = vld [vmem:[#allocation6 + $0x348] sm:$0xff]
        %v1467 = vld [vmem:[#allocation6 + $0x350] sm:$0xff]
        %v1468 = vld [vmem:[#allocation6 + $0x358] sm:$0xff]
        %v1469 = vld [vmem:[#allocation6 + $0x360] sm:$0xff]
        %v1470 = vld [vmem:[#allocation6 + $0x368] sm:$0xff]
        %v1471 = vld [vmem:[#allocation6 + $0x370] sm:$0xff]
        %v1472 = vld [vmem:[#allocation6 + $0x378] sm:$0xff]
        %v1473 = vld [vmem:[#allocation6 + $0x380] sm:$0xff]
        %v1474 = vld [vmem:[#allocation6 + $0x388] sm:$0xff]
        %v1475 = vld [vmem:[#allocation6 + $0x390] sm:$0xff]
        %v1476 = vld [vmem:[#allocation6 + $0x398] sm:$0xff]
        %v1477 = vld [vmem:[#allocation6 + $0x3a0] sm:$0xff]
        %v1478 = vld [vmem:[#allocation6 + $0x3a8] sm:$0xff]
        %v1479 = vld [vmem:[#allocation6 + $0x3b0] sm:$0xff]
        %v1480 = vld [vmem:[#allocation6 + $0x3b8] sm:$0xff]
        %v1481 = vld [vmem:[#allocation6 + $0x3c0] sm:$0xff]
        %v1482 = vld [vmem:[#allocation6 + $0x3c8] sm:$0xff]
        %v1483 = vld [vmem:[#allocation6 + $0x3d0] sm:$0xff]
        %v1484 = vld [vmem:[#allocation6 + $0x3d8] sm:$0xff]
        %v1485 = vld [vmem:[#allocation6 + $0x3e0] sm:$0xff]
        %v1486 = vld [vmem:[#allocation6 + $0x3e8] sm:$0xff]
        %v1487 = vld [vmem:[#allocation6 + $0x3f0] sm:$0xff]
        %v1488 = vld [vmem:[#allocation6 + $0x3f8] sm:$0xff]
        %v1489 = vld [vmem:[#allocation6 + $0x400] sm:$0xff]
        %v1490 = vld [vmem:[#allocation6 + $0x408] sm:$0xff]
        %v1491 = vld [vmem:[#allocation6 + $0x410] sm:$0xff]
        %v1492 = vld [vmem:[#allocation6 + $0x418] sm:$0xff]
        %v1493 = vld [vmem:[#allocation6 + $0x420] sm:$0xff]
        %v1494 = vld [vmem:[#allocation6 + $0x428] sm:$0xff]
        %v1495 = vld [vmem:[#allocation6 + $0x430] sm:$0xff]
        %v1496 = vld [vmem:[#allocation6 + $0x438] sm:$0xff]
        %v1497 = vld [vmem:[#allocation6 + $0x440] sm:$0xff]
        %v1498 = vld [vmem:[#allocation6 + $0x448] sm:$0xff]
        %v1499 = vld [vmem:[#allocation6 + $0x450] sm:$0xff]
        %v1500 = vld [vmem:[#allocation6 + $0x458] sm:$0xff]
        %v1501 = vld [vmem:[#allocation6 + $0x460] sm:$0xff]
        %v1502 = vld [vmem:[#allocation6 + $0x468] sm:$0xff]
        %v1503 = vld [vmem:[#allocation6 + $0x470] sm:$0xff]
        %v1504 = vld [vmem:[#allocation6 + $0x478] sm:$0xff]
        %v1505 = vld [vmem:[#allocation6 + $0x480] sm:$0xff]
        %v1506 = vld [vmem:[#allocation6 + $0x488] sm:$0xff]
        %v1507 = vld [vmem:[#allocation6 + $0x490] sm:$0xff]
        %v1508 = vld [vmem:[#allocation6 + $0x498] sm:$0xff]
        %v1509 = vld [vmem:[#allocation6 + $0x4a0] sm:$0xff]
        %v1510 = vld [vmem:[#allocation6 + $0x4a8] sm:$0xff]
        %v1511 = vld [vmem:[#allocation6 + $0x4b0] sm:$0xff]
        %v1512 = vld [vmem:[#allocation6 + $0x4b8] sm:$0xff]
        %v1513 = vld [vmem:[#allocation6 + $0x4c0] sm:$0xff]
        %v1514 = vld [vmem:[#allocation6 + $0x4c8] sm:$0xff]
        %v1515 = vld [vmem:[#allocation6 + $0x4d0] sm:$0xff]
        %v1516 = vld [vmem:[#allocation6 + $0x4d8] sm:$0xff]
        %v1517 = vld [vmem:[#allocation6 + $0x4e0] sm:$0xff]
        %v1518 = vld [vmem:[#allocation6 + $0x4e8] sm:$0xff]
        %v1519 = vld [vmem:[#allocation6 + $0x4f0] sm:$0xff]
        %v1520 = vld [vmem:[#allocation6 + $0x4f8] sm:$0xff]
        %v1521 = vld [vmem:[#allocation6 + $0x500] sm:$0xff]
        %v1522 = vld [vmem:[#allocation6 + $0x508] sm:$0xff]
        %v1523 = vld [vmem:[#allocation6 + $0x510] sm:$0xff]
        %v1524 = vld [vmem:[#allocation6 + $0x518] sm:$0xff]
        %v1525 = vld [vmem:[#allocation6 + $0x520] sm:$0xff]
        %v1526 = vld [vmem:[#allocation6 + $0x528] sm:$0xff]
        %v1527 = vld [vmem:[#allocation6 + $0x530] sm:$0xff]
        %v1528 = vld [vmem:[#allocation6 + $0x538] sm:$0xff]
        %v1529 = vld [vmem:[#allocation6 + $0x540] sm:$0xff]
        %v1530 = vld [vmem:[#allocation6 + $0x548] sm:$0xff]
        %v1531 = vld [vmem:[#allocation6 + $0x550] sm:$0xff]
        %v1532 = vld [vmem:[#allocation6 + $0x558] sm:$0xff]
        %v1533 = vld [vmem:[#allocation6 + $0x560] sm:$0xff]
        %v1534 = vld [vmem:[#allocation6 + $0x568] sm:$0xff]
        %v1535 = vld [vmem:[#allocation6 + $0x570] sm:$0xff]
        %v1536 = vld [vmem:[#allocation6 + $0x578] sm:$0xff]
        %v1537 = vld [vmem:[#allocation6 + $0x580] sm:$0xff]
        %v1538 = vld [vmem:[#allocation6 + $0x588] sm:$0xff]
        %v1539 = vld [vmem:[#allocation6 + $0x590] sm:$0xff]
        %v1540 = vld [vmem:[#allocation6 + $0x598] sm:$0xff]
        %v1541 = vld [vmem:[#allocation6 + $0x5a0] sm:$0xff]
        %v1542 = vld [vmem:[#allocation6 + $0x5a8] sm:$0xff]
        %v1543 = vld [vmem:[#allocation6 + $0x5b0] sm:$0xff]
        %v1544 = vld [vmem:[#allocation6 + $0x5b8] sm:$0xff]
        %v1545 = vld [vmem:[#allocation6 + $0x5c0] sm:$0xff]
        %v1546 = vld [vmem:[#allocation6 + $0x5c8] sm:$0xff]
        %v1547 = vld [vmem:[#allocation6 + $0x5d0] sm:$0xff]
        %v1548 = vld [vmem:[#allocation6 + $0x5d8] sm:$0xff]
        %v1549 = vld [vmem:[#allocation6 + $0x5e0] sm:$0xff]
        %v1550 = vld [vmem:[#allocation6 + $0x5e8] sm:$0xff]
        %v1551 = vld [vmem:[#allocation6 + $0x5f0] sm:$0xff]
        %v1552 = vld [vmem:[#allocation6 + $0x5f8] sm:$0xff]
        %v1553 = vld [vmem:[#allocation6 + $0x600] sm:$0xff]
        %v1554 = vld [vmem:[#allocation6 + $0x608] sm:$0xff]
        %v1555 = vld [vmem:[#allocation6 + $0x610] sm:$0xff]
        %v1556 = vld [vmem:[#allocation6 + $0x618] sm:$0xff]
        %v1557 = vld [vmem:[#allocation6 + $0x620] sm:$0xff]
        %v1558 = vld [vmem:[#allocation6 + $0x628] sm:$0xff]
        %v1559 = vld [vmem:[#allocation6 + $0x630] sm:$0xff]
        %v1560 = vld [vmem:[#allocation6 + $0x638] sm:$0xff]
        %v1561 = vld [vmem:[#allocation6 + $0x640] sm:$0xff]
        %v1562 = vld [vmem:[#allocation6 + $0x648] sm:$0xff]
        %v1563 = vld [vmem:[#allocation6 + $0x650] sm:$0xff]
        %v1564 = vld [vmem:[#allocation6 + $0x658] sm:$0xff]
        %v1565 = vld [vmem:[#allocation6 + $0x660] sm:$0xff]
        %v1566 = vld [vmem:[#allocation6 + $0x668] sm:$0xff]
        %v1567 = vld [vmem:[#allocation6 + $0x670] sm:$0xff]
        %v1568 = vld [vmem:[#allocation6 + $0x678] sm:$0xff]
        %v1569 = vld [vmem:[#allocation6 + $0x680] sm:$0xff]
        %v1570 = vld [vmem:[#allocation6 + $0x688] sm:$0xff]
        %v1571 = vld [vmem:[#allocation6 + $0x690] sm:$0xff]
        %v1572 = vld [vmem:[#allocation6 + $0x698] sm:$0xff]
        %v1573 = vld [vmem:[#allocation6 + $0x6a0] sm:$0xff]
        %v1574 = vld [vmem:[#allocation6 + $0x6a8] sm:$0xff]
        %v1575 = vld [vmem:[#allocation6 + $0x6b0] sm:$0xff]
        %v1576 = vld [vmem:[#allocation6 + $0x6b8] sm:$0xff]
        %v1577 = vld [vmem:[#allocation6 + $0x6c0] sm:$0xff]
        %v1578 = vld [vmem:[#allocation6 + $0x6c8] sm:$0xff]
        %v1579 = vld [vmem:[#allocation6 + $0x6d0] sm:$0xff]
        %v1580 = vld [vmem:[#allocation6 + $0x6d8] sm:$0xff]
        %v1581 = vld [vmem:[#allocation6 + $0x6e0] sm:$0xff]
        %v1582 = vld [vmem:[#allocation6 + $0x6e8] sm:$0xff]
        %v1583 = vld [vmem:[#allocation6 + $0x6f0] sm:$0xff]
        %v1584 = vld [vmem:[#allocation6 + $0x6f8] sm:$0xff]
        %v1585 = vld [vmem:[#allocation6 + $0x700] sm:$0xff]
        %v1586 = vld [vmem:[#allocation6 + $0x708] sm:$0xff]
        %v1587 = vld [vmem:[#allocation6 + $0x710] sm:$0xff]
        %v1588 = vld [vmem:[#allocation6 + $0x718] sm:$0xff]
        %v1589 = vld [vmem:[#allocation6 + $0x720] sm:$0xff]
        %v1590 = vld [vmem:[#allocation6 + $0x728] sm:$0xff]
        %v1591 = vld [vmem:[#allocation6 + $0x730] sm:$0xff]
        %v1592 = vld [vmem:[#allocation6 + $0x738] sm:$0xff]
        %v1593 = vld [vmem:[#allocation6 + $0x740] sm:$0xff]
        %v1594 = vld [vmem:[#allocation6 + $0x748] sm:$0xff]
        %v1595 = vld [vmem:[#allocation6 + $0x750] sm:$0xff]
        %v1596 = vld [vmem:[#allocation6 + $0x758] sm:$0xff]
        %v1597 = vld [vmem:[#allocation6 + $0x760] sm:$0xff]
        %v1598 = vld [vmem:[#allocation6 + $0x768] sm:$0xff]
        %v1599 = vld [vmem:[#allocation6 + $0x770] sm:$0xff]
        %v1600 = vld [vmem:[#allocation6 + $0x778] sm:$0xff]
        %v1601 = vld [vmem:[#allocation6 + $0x780] sm:$0xff]
        %v1602 = vld [vmem:[#allocation6 + $0x788] sm:$0xff]
        %v1603 = vld [vmem:[#allocation6 + $0x790] sm:$0xff]
        %v1604 = vld [vmem:[#allocation6 + $0x798] sm:$0xff]
        %v1605 = vld [vmem:[#allocation6 + $0x7a0] sm:$0xff]
        %v1606 = vld [vmem:[#allocation6 + $0x7a8] sm:$0xff]
        %v1607 = vld [vmem:[#allocation6 + $0x7b0] sm:$0xff]
        %v1608 = vld [vmem:[#allocation6 + $0x7b8] sm:$0xff]
        %v1609 = vld [vmem:[#allocation6 + $0x7c0] sm:$0xff]
        %v1610 = vld [vmem:[#allocation6 + $0x7c8] sm:$0xff]
        %v1611 = vld [vmem:[#allocation6 + $0x7d0] sm:$0xff]
        %v1612 = vld [vmem:[#allocation6 + $0x7d8] sm:$0xff]
        %v1613 = vld [vmem:[#allocation6 + $0x7e0] sm:$0xff]
        %v1614 = vld [vmem:[#allocation6 + $0x7e8] sm:$0xff]
        %v1615 = vld [vmem:[#allocation6 + $0x7f0] sm:$0xff]
        %v1616 = vld [vmem:[#allocation6 + $0x7f8] sm:$0xff]
        %v1617 = vld [vmem:[%s4] sm:$0xf]
        %v1619 = vlaneseq
        %v1620 = vshrl.u32 %v1619, 7
        %v1621 = vsub.s32 0, %v1620
        %v1622 = vrot.slane %v1617, %v1621
        %v1623 = vlaneseq
        %v1624 = vshrl.u32 %v1623, 7
        %v1625 = vsub.s32 1, %v1624
        %v1626 = vrot.slane %v1617, %v1625
        %v1627 = vlaneseq
        %v1628 = vshrl.u32 %v1627, 7
        %v1629 = vsub.s32 2, %v1628
        %v1630 = vrot.slane %v1617, %v1629
        %v1631 = vlaneseq
        %v1632 = vshrl.u32 %v1631, 7
        %v1633 = vsub.s32 3, %v1632
        %v1634 = vrot.slane %v1617, %v1633
        %v1895 = vunpack.c.l.b16 %v1361
        %v1896 = vunpack.c.h.b16 %v1361
        %v1897 = vunpack.c.l.b16 %v1362
        %v1898 = vunpack.c.h.b16 %v1362
        %v1899 = vunpack.c.l.b16 %v1363
        %v1900 = vunpack.c.h.b16 %v1363
        %v1901 = vunpack.c.l.b16 %v1364
        %v1902 = vunpack.c.h.b16 %v1364
        %v1903 = vunpack.c.l.b16 %v1365
        %v1904 = vunpack.c.h.b16 %v1365
        %v1905 = vunpack.c.l.b16 %v1366
        %v1906 = vunpack.c.h.b16 %v1366
        %v1907 = vunpack.c.l.b16 %v1367
        %v1908 = vunpack.c.h.b16 %v1367
        %v1909 = vunpack.c.l.b16 %v1368
        %v1910 = vunpack.c.h.b16 %v1368
        %v1911 = vunpack.c.l.b16 %v1369
        %v1912 = vunpack.c.h.b16 %v1369
        %v1913 = vunpack.c.l.b16 %v1370
        %v1914 = vunpack.c.h.b16 %v1370
        %v1915 = vunpack.c.l.b16 %v1371
        %v1916 = vunpack.c.h.b16 %v1371
        %v1917 = vunpack.c.l.b16 %v1372
        %v1918 = vunpack.c.h.b16 %v1372
        %v1919 = vunpack.c.l.b16 %v1373
        %v1920 = vunpack.c.h.b16 %v1373
        %v1921 = vunpack.c.l.b16 %v1374
        %v1922 = vunpack.c.h.b16 %v1374
        %v1923 = vunpack.c.l.b16 %v1375
        %v1924 = vunpack.c.h.b16 %v1375
        %v1925 = vunpack.c.l.b16 %v1376
        %v1926 = vunpack.c.h.b16 %v1376
        %v1927 = vunpack.c.l.b16 %v1377
        %v1928 = vunpack.c.h.b16 %v1377
        %v1929 = vunpack.c.l.b16 %v1378
        %v1930 = vunpack.c.h.b16 %v1378
        %v1931 = vunpack.c.l.b16 %v1379
        %v1932 = vunpack.c.h.b16 %v1379
        %v1933 = vunpack.c.l.b16 %v1380
        %v1934 = vunpack.c.h.b16 %v1380
        %v1935 = vunpack.c.l.b16 %v1381
        %v1936 = vunpack.c.h.b16 %v1381
        %v1937 = vunpack.c.l.b16 %v1382
        %v1938 = vunpack.c.h.b16 %v1382
        %v1939 = vunpack.c.l.b16 %v1383
        %v1940 = vunpack.c.h.b16 %v1383
        %v1941 = vunpack.c.l.b16 %v1384
        %v1942 = vunpack.c.h.b16 %v1384
        %v1943 = vunpack.c.l.b16 %v1385
        %v1944 = vunpack.c.h.b16 %v1385
        %v1945 = vunpack.c.l.b16 %v1386
        %v1946 = vunpack.c.h.b16 %v1386
        %v1947 = vunpack.c.l.b16 %v1387
        %v1948 = vunpack.c.h.b16 %v1387
        %v1949 = vunpack.c.l.b16 %v1388
        %v1950 = vunpack.c.h.b16 %v1388
        %v1951 = vunpack.c.l.b16 %v1389
        %v1952 = vunpack.c.h.b16 %v1389
        %v1953 = vunpack.c.l.b16 %v1390
        %v1954 = vunpack.c.h.b16 %v1390
        %v1955 = vunpack.c.l.b16 %v1391
        %v1956 = vunpack.c.h.b16 %v1391
        %v1957 = vunpack.c.l.b16 %v1392
        %v1958 = vunpack.c.h.b16 %v1392
        %v1959 = vunpack.c.l.b16 %v1393
        %v1960 = vunpack.c.h.b16 %v1393
        %v1961 = vunpack.c.l.b16 %v1394
        %v1962 = vunpack.c.h.b16 %v1394
        %v1963 = vunpack.c.l.b16 %v1395
        %v1964 = vunpack.c.h.b16 %v1395
        %v1965 = vunpack.c.l.b16 %v1396
        %v1966 = vunpack.c.h.b16 %v1396
        %v1967 = vunpack.c.l.b16 %v1397
        %v1968 = vunpack.c.h.b16 %v1397
        %v1969 = vunpack.c.l.b16 %v1398
        %v1970 = vunpack.c.h.b16 %v1398
        %v1971 = vunpack.c.l.b16 %v1399
        %v1972 = vunpack.c.h.b16 %v1399
        %v1973 = vunpack.c.l.b16 %v1400
        %v1974 = vunpack.c.h.b16 %v1400
        %v1975 = vunpack.c.l.b16 %v1401
        %v1976 = vunpack.c.h.b16 %v1401
        %v1977 = vunpack.c.l.b16 %v1402
        %v1978 = vunpack.c.h.b16 %v1402
        %v1979 = vunpack.c.l.b16 %v1403
        %v1980 = vunpack.c.h.b16 %v1403
        %v1981 = vunpack.c.l.b16 %v1404
        %v1982 = vunpack.c.h.b16 %v1404
        %v1983 = vunpack.c.l.b16 %v1405
        %v1984 = vunpack.c.h.b16 %v1405
        %v1985 = vunpack.c.l.b16 %v1406
        %v1986 = vunpack.c.h.b16 %v1406
        %v1987 = vunpack.c.l.b16 %v1407
        %v1988 = vunpack.c.h.b16 %v1407
        %v1989 = vunpack.c.l.b16 %v1408
        %v1990 = vunpack.c.h.b16 %v1408
        %v1991 = vunpack.c.l.b16 %v1409
        %v1992 = vunpack.c.h.b16 %v1409
        %v1993 = vunpack.c.l.b16 %v1410
        %v1994 = vunpack.c.h.b16 %v1410
        %v1995 = vunpack.c.l.b16 %v1411
        %v1996 = vunpack.c.h.b16 %v1411
        %v1997 = vunpack.c.l.b16 %v1412
        %v1998 = vunpack.c.h.b16 %v1412
        %v1999 = vunpack.c.l.b16 %v1413
        %v2000 = vunpack.c.h.b16 %v1413
        %v2001 = vunpack.c.l.b16 %v1414
        %v2002 = vunpack.c.h.b16 %v1414
        %v2003 = vunpack.c.l.b16 %v1415
        %v2004 = vunpack.c.h.b16 %v1415
        %v2005 = vunpack.c.l.b16 %v1416
        %v2006 = vunpack.c.h.b16 %v1416
        %v2007 = vunpack.c.l.b16 %v1417
        %v2008 = vunpack.c.h.b16 %v1417
        %v2009 = vunpack.c.l.b16 %v1418
        %v2010 = vunpack.c.h.b16 %v1418
        %v2011 = vunpack.c.l.b16 %v1419
        %v2012 = vunpack.c.h.b16 %v1419
        %v2013 = vunpack.c.l.b16 %v1420
        %v2014 = vunpack.c.h.b16 %v1420
        %v2015 = vunpack.c.l.b16 %v1421
        %v2016 = vunpack.c.h.b16 %v1421
        %v2017 = vunpack.c.l.b16 %v1422
        %v2018 = vunpack.c.h.b16 %v1422
        %v2019 = vunpack.c.l.b16 %v1423
        %v2020 = vunpack.c.h.b16 %v1423
        %v2021 = vunpack.c.l.b16 %v1424
        %v2022 = vunpack.c.h.b16 %v1424
        %v2023 = vunpack.c.l.b16 %v1425
        %v2024 = vunpack.c.h.b16 %v1425
        %v2025 = vunpack.c.l.b16 %v1426
        %v2026 = vunpack.c.h.b16 %v1426
        %v2027 = vunpack.c.l.b16 %v1427
        %v2028 = vunpack.c.h.b16 %v1427
        %v2029 = vunpack.c.l.b16 %v1428
        %v2030 = vunpack.c.h.b16 %v1428
        %v2031 = vunpack.c.l.b16 %v1429
        %v2032 = vunpack.c.h.b16 %v1429
        %v2033 = vunpack.c.l.b16 %v1430
        %v2034 = vunpack.c.h.b16 %v1430
        %v2035 = vunpack.c.l.b16 %v1431
        %v2036 = vunpack.c.h.b16 %v1431
        %v2037 = vunpack.c.l.b16 %v1432
        %v2038 = vunpack.c.h.b16 %v1432
        %v2039 = vunpack.c.l.b16 %v1433
        %v2040 = vunpack.c.h.b16 %v1433
        %v2041 = vunpack.c.l.b16 %v1434
        %v2042 = vunpack.c.h.b16 %v1434
        %v2043 = vunpack.c.l.b16 %v1435
        %v2044 = vunpack.c.h.b16 %v1435
        %v2045 = vunpack.c.l.b16 %v1436
        %v2046 = vunpack.c.h.b16 %v1436
        %v2047 = vunpack.c.l.b16 %v1437
        %v2048 = vunpack.c.h.b16 %v1437
        %v2049 = vunpack.c.l.b16 %v1438
        %v2050 = vunpack.c.h.b16 %v1438
        %v2051 = vunpack.c.l.b16 %v1439
        %v2052 = vunpack.c.h.b16 %v1439
        %v2053 = vunpack.c.l.b16 %v1440
        %v2054 = vunpack.c.h.b16 %v1440
        %v2055 = vunpack.c.l.b16 %v1441
        %v2056 = vunpack.c.h.b16 %v1441
        %v2057 = vunpack.c.l.b16 %v1442
        %v2058 = vunpack.c.h.b16 %v1442
        %v2059 = vunpack.c.l.b16 %v1443
        %v2060 = vunpack.c.h.b16 %v1443
        %v2061 = vunpack.c.l.b16 %v1444
        %v2062 = vunpack.c.h.b16 %v1444
        %v2063 = vunpack.c.l.b16 %v1445
        %v2064 = vunpack.c.h.b16 %v1445
        %v2065 = vunpack.c.l.b16 %v1446
        %v2066 = vunpack.c.h.b16 %v1446
        %v2067 = vunpack.c.l.b16 %v1447
        %v2068 = vunpack.c.h.b16 %v1447
        %v2069 = vunpack.c.l.b16 %v1448
        %v2070 = vunpack.c.h.b16 %v1448
        %v2071 = vunpack.c.l.b16 %v1449
        %v2072 = vunpack.c.h.b16 %v1449
        %v2073 = vunpack.c.l.b16 %v1450
        %v2074 = vunpack.c.h.b16 %v1450
        %v2075 = vunpack.c.l.b16 %v1451
        %v2076 = vunpack.c.h.b16 %v1451
        %v2077 = vunpack.c.l.b16 %v1452
        %v2078 = vunpack.c.h.b16 %v1452
        %v2079 = vunpack.c.l.b16 %v1453
        %v2080 = vunpack.c.h.b16 %v1453
        %v2081 = vunpack.c.l.b16 %v1454
        %v2082 = vunpack.c.h.b16 %v1454
        %v2083 = vunpack.c.l.b16 %v1455
        %v2084 = vunpack.c.h.b16 %v1455
        %v2085 = vunpack.c.l.b16 %v1456
        %v2086 = vunpack.c.h.b16 %v1456
        %v2087 = vunpack.c.l.b16 %v1457
        %v2088 = vunpack.c.h.b16 %v1457
        %v2089 = vunpack.c.l.b16 %v1458
        %v2090 = vunpack.c.h.b16 %v1458
        %v2091 = vunpack.c.l.b16 %v1459
        %v2092 = vunpack.c.h.b16 %v1459
        %v2093 = vunpack.c.l.b16 %v1460
        %v2094 = vunpack.c.h.b16 %v1460
        %v2095 = vunpack.c.l.b16 %v1461
        %v2096 = vunpack.c.h.b16 %v1461
        %v2097 = vunpack.c.l.b16 %v1462
        %v2098 = vunpack.c.h.b16 %v1462
        %v2099 = vunpack.c.l.b16 %v1463
        %v2100 = vunpack.c.h.b16 %v1463
        %v2101 = vunpack.c.l.b16 %v1464
        %v2102 = vunpack.c.h.b16 %v1464
        %v2103 = vunpack.c.l.b16 %v1465
        %v2104 = vunpack.c.h.b16 %v1465
        %v2105 = vunpack.c.l.b16 %v1466
        %v2106 = vunpack.c.h.b16 %v1466
        %v2107 = vunpack.c.l.b16 %v1467
        %v2108 = vunpack.c.h.b16 %v1467
        %v2109 = vunpack.c.l.b16 %v1468
        %v2110 = vunpack.c.h.b16 %v1468
        %v2111 = vunpack.c.l.b16 %v1469
        %v2112 = vunpack.c.h.b16 %v1469
        %v2113 = vunpack.c.l.b16 %v1470
        %v2114 = vunpack.c.h.b16 %v1470
        %v2115 = vunpack.c.l.b16 %v1471
        %v2116 = vunpack.c.h.b16 %v1471
        %v2117 = vunpack.c.l.b16 %v1472
        %v2118 = vunpack.c.h.b16 %v1472
        %v2119 = vunpack.c.l.b16 %v1473
        %v2120 = vunpack.c.h.b16 %v1473
        %v2121 = vunpack.c.l.b16 %v1474
        %v2122 = vunpack.c.h.b16 %v1474
        %v2123 = vunpack.c.l.b16 %v1475
        %v2124 = vunpack.c.h.b16 %v1475
        %v2125 = vunpack.c.l.b16 %v1476
        %v2126 = vunpack.c.h.b16 %v1476
        %v2127 = vunpack.c.l.b16 %v1477
        %v2128 = vunpack.c.h.b16 %v1477
        %v2129 = vunpack.c.l.b16 %v1478
        %v2130 = vunpack.c.h.b16 %v1478
        %v2131 = vunpack.c.l.b16 %v1479
        %v2132 = vunpack.c.h.b16 %v1479
        %v2133 = vunpack.c.l.b16 %v1480
        %v2134 = vunpack.c.h.b16 %v1480
        %v2135 = vunpack.c.l.b16 %v1481
        %v2136 = vunpack.c.h.b16 %v1481
        %v2137 = vunpack.c.l.b16 %v1482
        %v2138 = vunpack.c.h.b16 %v1482
        %v2139 = vunpack.c.l.b16 %v1483
        %v2140 = vunpack.c.h.b16 %v1483
        %v2141 = vunpack.c.l.b16 %v1484
        %v2142 = vunpack.c.h.b16 %v1484
        %v2143 = vunpack.c.l.b16 %v1485
        %v2144 = vunpack.c.h.b16 %v1485
        %v2145 = vunpack.c.l.b16 %v1486
        %v2146 = vunpack.c.h.b16 %v1486
        %v2147 = vunpack.c.l.b16 %v1487
        %v2148 = vunpack.c.h.b16 %v1487
        %v2149 = vunpack.c.l.b16 %v1488
        %v2150 = vunpack.c.h.b16 %v1488
        %v2151 = vunpack.c.l.b16 %v1489
        %v2152 = vunpack.c.h.b16 %v1489
        %v2153 = vunpack.c.l.b16 %v1490
        %v2154 = vunpack.c.h.b16 %v1490
        %v2155 = vunpack.c.l.b16 %v1491
        %v2156 = vunpack.c.h.b16 %v1491
        %v2157 = vunpack.c.l.b16 %v1492
        %v2158 = vunpack.c.h.b16 %v1492
        %v2159 = vunpack.c.l.b16 %v1493
        %v2160 = vunpack.c.h.b16 %v1493
        %v2161 = vunpack.c.l.b16 %v1494
        %v2162 = vunpack.c.h.b16 %v1494
        %v2163 = vunpack.c.l.b16 %v1495
        %v2164 = vunpack.c.h.b16 %v1495
        %v2165 = vunpack.c.l.b16 %v1496
        %v2166 = vunpack.c.h.b16 %v1496
        %v2167 = vunpack.c.l.b16 %v1497
        %v2168 = vunpack.c.h.b16 %v1497
        %v2169 = vunpack.c.l.b16 %v1498
        %v2170 = vunpack.c.h.b16 %v1498
        %v2171 = vunpack.c.l.b16 %v1499
        %v2172 = vunpack.c.h.b16 %v1499
        %v2173 = vunpack.c.l.b16 %v1500
        %v2174 = vunpack.c.h.b16 %v1500
        %v2175 = vunpack.c.l.b16 %v1501
        %v2176 = vunpack.c.h.b16 %v1501
        %v2177 = vunpack.c.l.b16 %v1502
        %v2178 = vunpack.c.h.b16 %v1502
        %v2179 = vunpack.c.l.b16 %v1503
        %v2180 = vunpack.c.h.b16 %v1503
        %v2181 = vunpack.c.l.b16 %v1504
        %v2182 = vunpack.c.h.b16 %v1504
        %v2183 = vunpack.c.l.b16 %v1505
        %v2184 = vunpack.c.h.b16 %v1505
        %v2185 = vunpack.c.l.b16 %v1506
        %v2186 = vunpack.c.h.b16 %v1506
        %v2187 = vunpack.c.l.b16 %v1507
        %v2188 = vunpack.c.h.b16 %v1507
        %v2189 = vunpack.c.l.b16 %v1508
        %v2190 = vunpack.c.h.b16 %v1508
        %v2191 = vunpack.c.l.b16 %v1509
        %v2192 = vunpack.c.h.b16 %v1509
        %v2193 = vunpack.c.l.b16 %v1510
        %v2194 = vunpack.c.h.b16 %v1510
        %v2195 = vunpack.c.l.b16 %v1511
        %v2196 = vunpack.c.h.b16 %v1511
        %v2197 = vunpack.c.l.b16 %v1512
        %v2198 = vunpack.c.h.b16 %v1512
        %v2199 = vunpack.c.l.b16 %v1513
        %v2200 = vunpack.c.h.b16 %v1513
        %v2201 = vunpack.c.l.b16 %v1514
        %v2202 = vunpack.c.h.b16 %v1514
        %v2203 = vunpack.c.l.b16 %v1515
        %v2204 = vunpack.c.h.b16 %v1515
        %v2205 = vunpack.c.l.b16 %v1516
        %v2206 = vunpack.c.h.b16 %v1516
        %v2207 = vunpack.c.l.b16 %v1517
        %v2208 = vunpack.c.h.b16 %v1517
        %v2209 = vunpack.c.l.b16 %v1518
        %v2210 = vunpack.c.h.b16 %v1518
        %v2211 = vunpack.c.l.b16 %v1519
        %v2212 = vunpack.c.h.b16 %v1519
        %v2213 = vunpack.c.l.b16 %v1520
        %v2214 = vunpack.c.h.b16 %v1520
        %v2215 = vunpack.c.l.b16 %v1521
        %v2216 = vunpack.c.h.b16 %v1521
        %v2217 = vunpack.c.l.b16 %v1522
        %v2218 = vunpack.c.h.b16 %v1522
        %v2219 = vunpack.c.l.b16 %v1523
        %v2220 = vunpack.c.h.b16 %v1523
        %v2221 = vunpack.c.l.b16 %v1524
        %v2222 = vunpack.c.h.b16 %v1524
        %v2223 = vunpack.c.l.b16 %v1525
        %v2224 = vunpack.c.h.b16 %v1525
        %v2225 = vunpack.c.l.b16 %v1526
        %v2226 = vunpack.c.h.b16 %v1526
        %v2227 = vunpack.c.l.b16 %v1527
        %v2228 = vunpack.c.h.b16 %v1527
        %v2229 = vunpack.c.l.b16 %v1528
        %v2230 = vunpack.c.h.b16 %v1528
        %v2231 = vunpack.c.l.b16 %v1529
        %v2232 = vunpack.c.h.b16 %v1529
        %v2233 = vunpack.c.l.b16 %v1530
        %v2234 = vunpack.c.h.b16 %v1530
        %v2235 = vunpack.c.l.b16 %v1531
        %v2236 = vunpack.c.h.b16 %v1531
        %v2237 = vunpack.c.l.b16 %v1532
        %v2238 = vunpack.c.h.b16 %v1532
        %v2239 = vunpack.c.l.b16 %v1533
        %v2240 = vunpack.c.h.b16 %v1533
        %v2241 = vunpack.c.l.b16 %v1534
        %v2242 = vunpack.c.h.b16 %v1534
        %v2243 = vunpack.c.l.b16 %v1535
        %v2244 = vunpack.c.h.b16 %v1535
        %v2245 = vunpack.c.l.b16 %v1536
        %v2246 = vunpack.c.h.b16 %v1536
        %v2247 = vunpack.c.l.b16 %v1537
        %v2248 = vunpack.c.h.b16 %v1537
        %v2249 = vunpack.c.l.b16 %v1538
        %v2250 = vunpack.c.h.b16 %v1538
        %v2251 = vunpack.c.l.b16 %v1539
        %v2252 = vunpack.c.h.b16 %v1539
        %v2253 = vunpack.c.l.b16 %v1540
        %v2254 = vunpack.c.h.b16 %v1540
        %v2255 = vunpack.c.l.b16 %v1541
        %v2256 = vunpack.c.h.b16 %v1541
        %v2257 = vunpack.c.l.b16 %v1542
        %v2258 = vunpack.c.h.b16 %v1542
        %v2259 = vunpack.c.l.b16 %v1543
        %v2260 = vunpack.c.h.b16 %v1543
        %v2261 = vunpack.c.l.b16 %v1544
        %v2262 = vunpack.c.h.b16 %v1544
        %v2263 = vunpack.c.l.b16 %v1545
        %v2264 = vunpack.c.h.b16 %v1545
        %v2265 = vunpack.c.l.b16 %v1546
        %v2266 = vunpack.c.h.b16 %v1546
        %v2267 = vunpack.c.l.b16 %v1547
        %v2268 = vunpack.c.h.b16 %v1547
        %v2269 = vunpack.c.l.b16 %v1548
        %v2270 = vunpack.c.h.b16 %v1548
        %v2271 = vunpack.c.l.b16 %v1549
        %v2272 = vunpack.c.h.b16 %v1549
        %v2273 = vunpack.c.l.b16 %v1550
        %v2274 = vunpack.c.h.b16 %v1550
        %v2275 = vunpack.c.l.b16 %v1551
        %v2276 = vunpack.c.h.b16 %v1551
        %v2277 = vunpack.c.l.b16 %v1552
        %v2278 = vunpack.c.h.b16 %v1552
        %v2279 = vunpack.c.l.b16 %v1553
        %v2280 = vunpack.c.h.b16 %v1553
        %v2281 = vunpack.c.l.b16 %v1554
        %v2282 = vunpack.c.h.b16 %v1554
        %v2283 = vunpack.c.l.b16 %v1555
        %v2284 = vunpack.c.h.b16 %v1555
        %v2285 = vunpack.c.l.b16 %v1556
        %v2286 = vunpack.c.h.b16 %v1556
        %v2287 = vunpack.c.l.b16 %v1557
        %v2288 = vunpack.c.h.b16 %v1557
        %v2289 = vunpack.c.l.b16 %v1558
        %v2290 = vunpack.c.h.b16 %v1558
        %v2291 = vunpack.c.l.b16 %v1559
        %v2292 = vunpack.c.h.b16 %v1559
        %v2293 = vunpack.c.l.b16 %v1560
        %v2294 = vunpack.c.h.b16 %v1560
        %v2295 = vunpack.c.l.b16 %v1561
        %v2296 = vunpack.c.h.b16 %v1561
        %v2297 = vunpack.c.l.b16 %v1562
        %v2298 = vunpack.c.h.b16 %v1562
        %v2299 = vunpack.c.l.b16 %v1563
        %v2300 = vunpack.c.h.b16 %v1563
        %v2301 = vunpack.c.l.b16 %v1564
        %v2302 = vunpack.c.h.b16 %v1564
        %v2303 = vunpack.c.l.b16 %v1565
        %v2304 = vunpack.c.h.b16 %v1565
        %v2305 = vunpack.c.l.b16 %v1566
        %v2306 = vunpack.c.h.b16 %v1566
        %v2307 = vunpack.c.l.b16 %v1567
        %v2308 = vunpack.c.h.b16 %v1567
        %v2309 = vunpack.c.l.b16 %v1568
        %v2310 = vunpack.c.h.b16 %v1568
        %v2311 = vunpack.c.l.b16 %v1569
        %v2312 = vunpack.c.h.b16 %v1569
        %v2313 = vunpack.c.l.b16 %v1570
        %v2314 = vunpack.c.h.b16 %v1570
        %v2315 = vunpack.c.l.b16 %v1571
        %v2316 = vunpack.c.h.b16 %v1571
        %v2317 = vunpack.c.l.b16 %v1572
        %v2318 = vunpack.c.h.b16 %v1572
        %v2319 = vunpack.c.l.b16 %v1573
        %v2320 = vunpack.c.h.b16 %v1573
        %v2321 = vunpack.c.l.b16 %v1574
        %v2322 = vunpack.c.h.b16 %v1574
        %v2323 = vunpack.c.l.b16 %v1575
        %v2324 = vunpack.c.h.b16 %v1575
        %v2325 = vunpack.c.l.b16 %v1576
        %v2326 = vunpack.c.h.b16 %v1576
        %v2327 = vunpack.c.l.b16 %v1577
        %v2328 = vunpack.c.h.b16 %v1577
        %v2329 = vunpack.c.l.b16 %v1578
        %v2330 = vunpack.c.h.b16 %v1578
        %v2331 = vunpack.c.l.b16 %v1579
        %v2332 = vunpack.c.h.b16 %v1579
        %v2333 = vunpack.c.l.b16 %v1580
        %v2334 = vunpack.c.h.b16 %v1580
        %v2335 = vunpack.c.l.b16 %v1581
        %v2336 = vunpack.c.h.b16 %v1581
        %v2337 = vunpack.c.l.b16 %v1582
        %v2338 = vunpack.c.h.b16 %v1582
        %v2339 = vunpack.c.l.b16 %v1583
        %v2340 = vunpack.c.h.b16 %v1583
        %v2341 = vunpack.c.l.b16 %v1584
        %v2342 = vunpack.c.h.b16 %v1584
        %v2343 = vunpack.c.l.b16 %v1585
        %v2344 = vunpack.c.h.b16 %v1585
        %v2345 = vunpack.c.l.b16 %v1586
        %v2346 = vunpack.c.h.b16 %v1586
        %v2347 = vunpack.c.l.b16 %v1587
        %v2348 = vunpack.c.h.b16 %v1587
        %v2349 = vunpack.c.l.b16 %v1588
        %v2350 = vunpack.c.h.b16 %v1588
        %v2351 = vunpack.c.l.b16 %v1589
        %v2352 = vunpack.c.h.b16 %v1589
        %v2353 = vunpack.c.l.b16 %v1590
        %v2354 = vunpack.c.h.b16 %v1590
        %v2355 = vunpack.c.l.b16 %v1591
        %v2356 = vunpack.c.h.b16 %v1591
        %v2357 = vunpack.c.l.b16 %v1592
        %v2358 = vunpack.c.h.b16 %v1592
        %v2359 = vunpack.c.l.b16 %v1593
        %v2360 = vunpack.c.h.b16 %v1593
        %v2361 = vunpack.c.l.b16 %v1594
        %v2362 = vunpack.c.h.b16 %v1594
        %v2363 = vunpack.c.l.b16 %v1595
        %v2364 = vunpack.c.h.b16 %v1595
        %v2365 = vunpack.c.l.b16 %v1596
        %v2366 = vunpack.c.h.b16 %v1596
        %v2367 = vunpack.c.l.b16 %v1597
        %v2368 = vunpack.c.h.b16 %v1597
        %v2369 = vunpack.c.l.b16 %v1598
        %v2370 = vunpack.c.h.b16 %v1598
        %v2371 = vunpack.c.l.b16 %v1599
        %v2372 = vunpack.c.h.b16 %v1599
        %v2373 = vunpack.c.l.b16 %v1600
        %v2374 = vunpack.c.h.b16 %v1600
        %v2375 = vunpack.c.l.b16 %v1601
        %v2376 = vunpack.c.h.b16 %v1601
        %v2377 = vunpack.c.l.b16 %v1602
        %v2378 = vunpack.c.h.b16 %v1602
        %v2379 = vunpack.c.l.b16 %v1603
        %v2380 = vunpack.c.h.b16 %v1603
        %v2381 = vunpack.c.l.b16 %v1604
        %v2382 = vunpack.c.h.b16 %v1604
        %v2383 = vunpack.c.l.b16 %v1605
        %v2384 = vunpack.c.h.b16 %v1605
        %v2385 = vunpack.c.l.b16 %v1606
        %v2386 = vunpack.c.h.b16 %v1606
        %v2387 = vunpack.c.l.b16 %v1607
        %v2388 = vunpack.c.h.b16 %v1607
        %v2389 = vunpack.c.l.b16 %v1608
        %v2390 = vunpack.c.h.b16 %v1608
        %v2391 = vunpack.c.l.b16 %v1609
        %v2392 = vunpack.c.h.b16 %v1609
        %v2393 = vunpack.c.l.b16 %v1610
        %v2394 = vunpack.c.h.b16 %v1610
        %v2395 = vunpack.c.l.b16 %v1611
        %v2396 = vunpack.c.h.b16 %v1611
        %v2397 = vunpack.c.l.b16 %v1612
        %v2398 = vunpack.c.h.b16 %v1612
        %v2399 = vunpack.c.l.b16 %v1613
        %v2400 = vunpack.c.h.b16 %v1613
        %v2401 = vunpack.c.l.b16 %v1614
        %v2402 = vunpack.c.h.b16 %v1614
        %v2403 = vunpack.c.l.b16 %v1615
        %v2404 = vunpack.c.h.b16 %v1615
        %v2405 = vunpack.c.l.b16 %v1616
        %v2406 = vunpack.c.h.b16 %v1616
        %v2407 = vpack.c.b16 %v1899, %v1895
        %v2408 = vpack.c.b16 %v1900, %v1896
        %v2409 = vpack.c.b16 %v1901, %v1897
        %v2410 = vpack.c.b16 %v1902, %v1898
        %v2411 = vpack.c.b16 %v1907, %v1903
        %v2412 = vpack.c.b16 %v1908, %v1904
        %v2413 = vpack.c.b16 %v1909, %v1905
        %v2414 = vpack.c.b16 %v1910, %v1906
        %v2415 = vpack.c.b16 %v1915, %v1911
        %v2416 = vpack.c.b16 %v1916, %v1912
        %v2417 = vpack.c.b16 %v1917, %v1913
        %v2418 = vpack.c.b16 %v1918, %v1914
        %v2419 = vpack.c.b16 %v1923, %v1919
        %v2420 = vpack.c.b16 %v1924, %v1920
        %v2421 = vpack.c.b16 %v1925, %v1921
        %v2422 = vpack.c.b16 %v1926, %v1922
        %v2423 = vpack.c.b16 %v1931, %v1927
        %v2424 = vpack.c.b16 %v1932, %v1928
        %v2425 = vpack.c.b16 %v1933, %v1929
        %v2426 = vpack.c.b16 %v1934, %v1930
        %v2427 = vpack.c.b16 %v1939, %v1935
        %v2428 = vpack.c.b16 %v1940, %v1936
        %v2429 = vpack.c.b16 %v1941, %v1937
        %v2430 = vpack.c.b16 %v1942, %v1938
        %v2431 = vpack.c.b16 %v1947, %v1943
        %v2432 = vpack.c.b16 %v1948, %v1944
        %v2433 = vpack.c.b16 %v1949, %v1945
        %v2434 = vpack.c.b16 %v1950, %v1946
        %v2435 = vpack.c.b16 %v1955, %v1951
        %v2436 = vpack.c.b16 %v1956, %v1952
        %v2437 = vpack.c.b16 %v1957, %v1953
        %v2438 = vpack.c.b16 %v1958, %v1954
        %v2439 = vpack.c.b16 %v1963, %v1959
        %v2440 = vpack.c.b16 %v1964, %v1960
        %v2441 = vpack.c.b16 %v1965, %v1961
        %v2442 = vpack.c.b16 %v1966, %v1962
        %v2443 = vpack.c.b16 %v1971, %v1967
        %v2444 = vpack.c.b16 %v1972, %v1968
        %v2445 = vpack.c.b16 %v1973, %v1969
        %v2446 = vpack.c.b16 %v1974, %v1970
        %v2447 = vpack.c.b16 %v1979, %v1975
        %v2448 = vpack.c.b16 %v1980, %v1976
        %v2449 = vpack.c.b16 %v1981, %v1977
        %v2450 = vpack.c.b16 %v1982, %v1978
        %v2451 = vpack.c.b16 %v1987, %v1983
        %v2452 = vpack.c.b16 %v1988, %v1984
        %v2453 = vpack.c.b16 %v1989, %v1985
        %v2454 = vpack.c.b16 %v1990, %v1986
        %v2455 = vpack.c.b16 %v1995, %v1991
        %v2456 = vpack.c.b16 %v1996, %v1992
        %v2457 = vpack.c.b16 %v1997, %v1993
        %v2458 = vpack.c.b16 %v1998, %v1994
        %v2459 = vpack.c.b16 %v2003, %v1999
        %v2460 = vpack.c.b16 %v2004, %v2000
        %v2461 = vpack.c.b16 %v2005, %v2001
        %v2462 = vpack.c.b16 %v2006, %v2002
        %v2463 = vpack.c.b16 %v2011, %v2007
        %v2464 = vpack.c.b16 %v2012, %v2008
        %v2465 = vpack.c.b16 %v2013, %v2009
        %v2466 = vpack.c.b16 %v2014, %v2010
        %v2467 = vpack.c.b16 %v2019, %v2015
        %v2468 = vpack.c.b16 %v2020, %v2016
        %v2469 = vpack.c.b16 %v2021, %v2017
        %v2470 = vpack.c.b16 %v2022, %v2018
        %v2471 = vpack.c.b16 %v2027, %v2023
        %v2472 = vpack.c.b16 %v2028, %v2024
        %v2473 = vpack.c.b16 %v2029, %v2025
        %v2474 = vpack.c.b16 %v2030, %v2026
        %v2475 = vpack.c.b16 %v2035, %v2031
        %v2476 = vpack.c.b16 %v2036, %v2032
        %v2477 = vpack.c.b16 %v2037, %v2033
        %v2478 = vpack.c.b16 %v2038, %v2034
        %v2479 = vpack.c.b16 %v2043, %v2039
        %v2480 = vpack.c.b16 %v2044, %v2040
        %v2481 = vpack.c.b16 %v2045, %v2041
        %v2482 = vpack.c.b16 %v2046, %v2042
        %v2483 = vpack.c.b16 %v2051, %v2047
        %v2484 = vpack.c.b16 %v2052, %v2048
        %v2485 = vpack.c.b16 %v2053, %v2049
        %v2486 = vpack.c.b16 %v2054, %v2050
        %v2487 = vpack.c.b16 %v2059, %v2055
        %v2488 = vpack.c.b16 %v2060, %v2056
        %v2489 = vpack.c.b16 %v2061, %v2057
        %v2490 = vpack.c.b16 %v2062, %v2058
        %v2491 = vpack.c.b16 %v2067, %v2063
        %v2492 = vpack.c.b16 %v2068, %v2064
        %v2493 = vpack.c.b16 %v2069, %v2065
        %v2494 = vpack.c.b16 %v2070, %v2066
        %v2495 = vpack.c.b16 %v2075, %v2071
        %v2496 = vpack.c.b16 %v2076, %v2072
        %v2497 = vpack.c.b16 %v2077, %v2073
        %v2498 = vpack.c.b16 %v2078, %v2074
        %v2499 = vpack.c.b16 %v2083, %v2079
        %v2500 = vpack.c.b16 %v2084, %v2080
        %v2501 = vpack.c.b16 %v2085, %v2081
        %v2502 = vpack.c.b16 %v2086, %v2082
        %v2503 = vpack.c.b16 %v2091, %v2087
        %v2504 = vpack.c.b16 %v2092, %v2088
        %v2505 = vpack.c.b16 %v2093, %v2089
        %v2506 = vpack.c.b16 %v2094, %v2090
        %v2507 = vpack.c.b16 %v2099, %v2095
        %v2508 = vpack.c.b16 %v2100, %v2096
        %v2509 = vpack.c.b16 %v2101, %v2097
        %v2510 = vpack.c.b16 %v2102, %v2098
        %v2511 = vpack.c.b16 %v2107, %v2103
        %v2512 = vpack.c.b16 %v2108, %v2104
        %v2513 = vpack.c.b16 %v2109, %v2105
        %v2514 = vpack.c.b16 %v2110, %v2106
        %v2515 = vpack.c.b16 %v2115, %v2111
        %v2516 = vpack.c.b16 %v2116, %v2112
        %v2517 = vpack.c.b16 %v2117, %v2113
        %v2518 = vpack.c.b16 %v2118, %v2114
        %v2519 = vpack.c.b16 %v2123, %v2119
        %v2520 = vpack.c.b16 %v2124, %v2120
        %v2521 = vpack.c.b16 %v2125, %v2121
        %v2522 = vpack.c.b16 %v2126, %v2122
        %v2523 = vpack.c.b16 %v2131, %v2127
        %v2524 = vpack.c.b16 %v2132, %v2128
        %v2525 = vpack.c.b16 %v2133, %v2129
        %v2526 = vpack.c.b16 %v2134, %v2130
        %v2527 = vpack.c.b16 %v2139, %v2135
        %v2528 = vpack.c.b16 %v2140, %v2136
        %v2529 = vpack.c.b16 %v2141, %v2137
        %v2530 = vpack.c.b16 %v2142, %v2138
        %v2531 = vpack.c.b16 %v2147, %v2143
        %v2532 = vpack.c.b16 %v2148, %v2144
        %v2533 = vpack.c.b16 %v2149, %v2145
        %v2534 = vpack.c.b16 %v2150, %v2146
        %v2535 = vpack.c.b16 %v2155, %v2151
        %v2536 = vpack.c.b16 %v2156, %v2152
        %v2537 = vpack.c.b16 %v2157, %v2153
        %v2538 = vpack.c.b16 %v2158, %v2154
        %v2539 = vpack.c.b16 %v2163, %v2159
        %v2540 = vpack.c.b16 %v2164, %v2160
        %v2541 = vpack.c.b16 %v2165, %v2161
        %v2542 = vpack.c.b16 %v2166, %v2162
        %v2543 = vpack.c.b16 %v2171, %v2167
        %v2544 = vpack.c.b16 %v2172, %v2168
        %v2545 = vpack.c.b16 %v2173, %v2169
        %v2546 = vpack.c.b16 %v2174, %v2170
        %v2547 = vpack.c.b16 %v2179, %v2175
        %v2548 = vpack.c.b16 %v2180, %v2176
        %v2549 = vpack.c.b16 %v2181, %v2177
        %v2550 = vpack.c.b16 %v2182, %v2178
        %v2551 = vpack.c.b16 %v2187, %v2183
        %v2552 = vpack.c.b16 %v2188, %v2184
        %v2553 = vpack.c.b16 %v2189, %v2185
        %v2554 = vpack.c.b16 %v2190, %v2186
        %v2555 = vpack.c.b16 %v2195, %v2191
        %v2556 = vpack.c.b16 %v2196, %v2192
        %v2557 = vpack.c.b16 %v2197, %v2193
        %v2558 = vpack.c.b16 %v2198, %v2194
        %v2559 = vpack.c.b16 %v2203, %v2199
        %v2560 = vpack.c.b16 %v2204, %v2200
        %v2561 = vpack.c.b16 %v2205, %v2201
        %v2562 = vpack.c.b16 %v2206, %v2202
        %v2563 = vpack.c.b16 %v2211, %v2207
        %v2564 = vpack.c.b16 %v2212, %v2208
        %v2565 = vpack.c.b16 %v2213, %v2209
        %v2566 = vpack.c.b16 %v2214, %v2210
        %v2567 = vpack.c.b16 %v2219, %v2215
        %v2568 = vpack.c.b16 %v2220, %v2216
        %v2569 = vpack.c.b16 %v2221, %v2217
        %v2570 = vpack.c.b16 %v2222, %v2218
        %v2571 = vpack.c.b16 %v2227, %v2223
        %v2572 = vpack.c.b16 %v2228, %v2224
        %v2573 = vpack.c.b16 %v2229, %v2225
        %v2574 = vpack.c.b16 %v2230, %v2226
        %v2575 = vpack.c.b16 %v2235, %v2231
        %v2576 = vpack.c.b16 %v2236, %v2232
        %v2577 = vpack.c.b16 %v2237, %v2233
        %v2578 = vpack.c.b16 %v2238, %v2234
        %v2579 = vpack.c.b16 %v2243, %v2239
        %v2580 = vpack.c.b16 %v2244, %v2240
        %v2581 = vpack.c.b16 %v2245, %v2241
        %v2582 = vpack.c.b16 %v2246, %v2242
        %v2583 = vpack.c.b16 %v2251, %v2247
        %v2584 = vpack.c.b16 %v2252, %v2248
        %v2585 = vpack.c.b16 %v2253, %v2249
        %v2586 = vpack.c.b16 %v2254, %v2250
        %v2587 = vpack.c.b16 %v2259, %v2255
        %v2588 = vpack.c.b16 %v2260, %v2256
        %v2589 = vpack.c.b16 %v2261, %v2257
        %v2590 = vpack.c.b16 %v2262, %v2258
        %v2591 = vpack.c.b16 %v2267, %v2263
        %v2592 = vpack.c.b16 %v2268, %v2264
        %v2593 = vpack.c.b16 %v2269, %v2265
        %v2594 = vpack.c.b16 %v2270, %v2266
        %v2595 = vpack.c.b16 %v2275, %v2271
        %v2596 = vpack.c.b16 %v2276, %v2272
        %v2597 = vpack.c.b16 %v2277, %v2273
        %v2598 = vpack.c.b16 %v2278, %v2274
        %v2599 = vpack.c.b16 %v2283, %v2279
        %v2600 = vpack.c.b16 %v2284, %v2280
        %v2601 = vpack.c.b16 %v2285, %v2281
        %v2602 = vpack.c.b16 %v2286, %v2282
        %v2603 = vpack.c.b16 %v2291, %v2287
        %v2604 = vpack.c.b16 %v2292, %v2288
        %v2605 = vpack.c.b16 %v2293, %v2289
        %v2606 = vpack.c.b16 %v2294, %v2290
        %v2607 = vpack.c.b16 %v2299, %v2295
        %v2608 = vpack.c.b16 %v2300, %v2296
        %v2609 = vpack.c.b16 %v2301, %v2297
        %v2610 = vpack.c.b16 %v2302, %v2298
        %v2611 = vpack.c.b16 %v2307, %v2303
        %v2612 = vpack.c.b16 %v2308, %v2304
        %v2613 = vpack.c.b16 %v2309, %v2305
        %v2614 = vpack.c.b16 %v2310, %v2306
        %v2615 = vpack.c.b16 %v2315, %v2311
        %v2616 = vpack.c.b16 %v2316, %v2312
        %v2617 = vpack.c.b16 %v2317, %v2313
        %v2618 = vpack.c.b16 %v2318, %v2314
        %v2619 = vpack.c.b16 %v2323, %v2319
        %v2620 = vpack.c.b16 %v2324, %v2320
        %v2621 = vpack.c.b16 %v2325, %v2321
        %v2622 = vpack.c.b16 %v2326, %v2322
        %v2623 = vpack.c.b16 %v2331, %v2327
        %v2624 = vpack.c.b16 %v2332, %v2328
        %v2625 = vpack.c.b16 %v2333, %v2329
        %v2626 = vpack.c.b16 %v2334, %v2330
        %v2627 = vpack.c.b16 %v2339, %v2335
        %v2628 = vpack.c.b16 %v2340, %v2336
        %v2629 = vpack.c.b16 %v2341, %v2337
        %v2630 = vpack.c.b16 %v2342, %v2338
        %v2631 = vpack.c.b16 %v2347, %v2343
        %v2632 = vpack.c.b16 %v2348, %v2344
        %v2633 = vpack.c.b16 %v2349, %v2345
        %v2634 = vpack.c.b16 %v2350, %v2346
        %v2635 = vpack.c.b16 %v2355, %v2351
        %v2636 = vpack.c.b16 %v2356, %v2352
        %v2637 = vpack.c.b16 %v2357, %v2353
        %v2638 = vpack.c.b16 %v2358, %v2354
        %v2639 = vpack.c.b16 %v2363, %v2359
        %v2640 = vpack.c.b16 %v2364, %v2360
        %v2641 = vpack.c.b16 %v2365, %v2361
        %v2642 = vpack.c.b16 %v2366, %v2362
        %v2643 = vpack.c.b16 %v2371, %v2367
        %v2644 = vpack.c.b16 %v2372, %v2368
        %v2645 = vpack.c.b16 %v2373, %v2369
        %v2646 = vpack.c.b16 %v2374, %v2370
        %v2647 = vpack.c.b16 %v2379, %v2375
        %v2648 = vpack.c.b16 %v2380, %v2376
        %v2649 = vpack.c.b16 %v2381, %v2377
        %v2650 = vpack.c.b16 %v2382, %v2378
        %v2651 = vpack.c.b16 %v2387, %v2383
        %v2652 = vpack.c.b16 %v2388, %v2384
        %v2653 = vpack.c.b16 %v2389, %v2385
        %v2654 = vpack.c.b16 %v2390, %v2386
        %v2655 = vpack.c.b16 %v2395, %v2391
        %v2656 = vpack.c.b16 %v2396, %v2392
        %v2657 = vpack.c.b16 %v2397, %v2393
        %v2658 = vpack.c.b16 %v2398, %v2394
        %v2659 = vpack.c.b16 %v2403, %v2399
        %v2660 = vpack.c.b16 %v2404, %v2400
        %v2661 = vpack.c.b16 %v2405, %v2401
        %v2662 = vpack.c.b16 %v2406, %v2402
        %2919 = vmatprep.subr.bf16.mxu0 %v2408
        %2920 = vmatpush1.bf16.msra.mxu0 %v2407
        %2921 = vmatprep.subr.bf16.mxu0 %v2412
        %2922 = vmatpush1.bf16.msra.mxu0 %v2411
        %2923 = vmatprep.subr.bf16.mxu0 %v2416
        %2924 = vmatpush1.bf16.msra.mxu0 %v2415
        %2925 = vmatprep.subr.bf16.mxu0 %v2420
        %2926 = vmatpush1.bf16.msra.mxu0 %v2419
        %2927 = vmatprep.subr.bf16.mxu0 %v2424
        %2928 = vmatpush1.bf16.msra.mxu0 %v2423
        %2929 = vmatprep.subr.bf16.mxu0 %v2428
        %2930 = vmatpush1.bf16.msra.mxu0 %v2427
        %2931 = vmatprep.subr.bf16.mxu0 %v2432
        %2932 = vmatpush1.bf16.msra.mxu0 %v2431
        %2933 = vmatprep.subr.bf16.mxu0 %v2436
        %2934 = vmatpush1.bf16.msra.mxu0 %v2435
        %2935 = vmatprep.subr.bf16.mxu0 %v2440
        %2936 = vmatpush1.bf16.msra.mxu0 %v2439
        %2937 = vmatprep.subr.bf16.mxu0 %v2444
        %2938 = vmatpush1.bf16.msra.mxu0 %v2443
        %2939 = vmatprep.subr.bf16.mxu0 %v2448
        %2940 = vmatpush1.bf16.msra.mxu0 %v2447
        %2941 = vmatprep.subr.bf16.mxu0 %v2452
        %2942 = vmatpush1.bf16.msra.mxu0 %v2451
        %2943 = vmatprep.subr.bf16.mxu0 %v2456
        %2944 = vmatpush1.bf16.msra.mxu0 %v2455
        %2945 = vmatprep.subr.bf16.mxu0 %v2460
        %2946 = vmatpush1.bf16.msra.mxu0 %v2459
        %2947 = vmatprep.subr.bf16.mxu0 %v2464
        %2948 = vmatpush1.bf16.msra.mxu0 %v2463
        %2949 = vmatprep.subr.bf16.mxu0 %v2468
        %2950 = vmatpush1.bf16.msra.mxu0 %v2467
        %2951 = vmatprep.mubr.bf16.mxu0 %v1298
        %2952 = vmatmul.mubr.bf16.gmra.mrb[0].mxu0 %v1297
        %v2953 = vpop.f32.mrb[0].mxu0
        %v2954 = vadd.f32 %v1622, %v2953
        %v2955 = vpop.f32.mrb[0].mxu0
        %v2956 = vadd.f32 %v1626, %v2955
        %v2957 = vpop.f32.mrb[0].mxu0
        %v2958 = vadd.f32 %v1622, %v2957
        %v2959 = vpop.f32.mrb[0].mxu0
        %v2960 = vadd.f32 %v1626, %v2959
        %2961 = vmatprep.mubr.bf16.mxu0 %v1306
        %2962 = vmatmul.mubr.bf16.gmra.mrb[0].mxu0 %v1305
        %v2963 = vpop.f32.mrb[0].mxu0
        %v2964 = vadd.f32 %v1622, %v2963
        %v2965 = vpop.f32.mrb[0].mxu0
        %v2966 = vadd.f32 %v1626, %v2965
        %v2967 = vpop.f32.mrb[0].mxu0
        %v2968 = vadd.f32 %v1622, %v2967
        %v2969 = vpop.f32.mrb[0].mxu0
        %v2970 = vadd.f32 %v1626, %v2969
        %2971 = vmatprep.mubr.bf16.mxu0 %v1314
        %2972 = vmatmul.mubr.bf16.gmra.mrb[0].mxu0 %v1313
        %v2973 = vpop.f32.mrb[0].mxu0
        %v2974 = vadd.f32 %v1622, %v2973
        %v2975 = vpop.f32.mrb[0].mxu0
        %v2976 = vadd.f32 %v1626, %v2975
        %v2977 = vpop.f32.mrb[0].mxu0
        %v2978 = vadd.f32 %v1622, %v2977
        %v2979 = vpop.f32.mrb[0].mxu0
        %v2980 = vadd.f32 %v1626, %v2979
        %2981 = vmatprep.mubr.bf16.mxu0 %v1322
        %2982 = vmatmul.mubr.bf16.gmra.mrb[0].mxu0 %v1321
        %v2983 = vpop.f32.mrb[0].mxu0
        %v2984 = vadd.f32 %v1622, %v2983
        %v2985 = vpop.f32.mrb[0].mxu0
        %v2986 = vadd.f32 %v1626, %v2985
        %v2987 = vpop.f32.mrb[0].mxu0
        %v2988 = vadd.f32 %v1622, %v2987
        %v2989 = vpop.f32.mrb[0].mxu0
        %v2990 = vadd.f32 %v1626, %v2989
        %2991 = vmatprep.mubr.bf16.mxu0 %v1330
        %2992 = vmatmul.mubr.bf16.gmra.mrb[0].mxu0 %v1329
        %v2993 = vpop.f32.mrb[0].mxu0
        %v2994 = vadd.f32 %v1622, %v2993
        %v2995 = vpop.f32.mrb[0].mxu0
        %v2996 = vadd.f32 %v1626, %v2995
        %v2997 = vpop.f32.mrb[0].mxu0
        %v2998 = vadd.f32 %v1622, %v2997
        %v2999 = vpop.f32.mrb[0].mxu0
        %v3000 = vadd.f32 %v1626, %v2999
        %3001 = vmatprep.mubr.bf16.mxu0 %v1338
        %3002 = vmatmul.mubr.bf16.gmra.mrb[0].mxu0 %v1337
        %v3003 = vpop.f32.mrb[0].mxu0
        %v3004 = vadd.f32 %v1622, %v3003
        %v3005 = vpop.f32.mrb[0].mxu0
        %v3006 = vadd.f32 %v1626, %v3005
        %v3007 = vpop.f32.mrb[0].mxu0
        %v3008 = vadd.f32 %v1622, %v3007
        %v3009 = vpop.f32.mrb[0].mxu0
        %v3010 = vadd.f32 %v1626, %v3009
        %3011 = vmatprep.mubr.bf16.mxu0 %v1346
        %3012 = vmatmul.mubr.bf16.gmra.mrb[0].mxu0 %v1345
        %v3013 = vpop.f32.mrb[0].mxu0
        %v3014 = vadd.f32 %v1622, %v3013
        %v3015 = vpop.f32.mrb[0].mxu0
        %v3016 = vadd.f32 %v1626, %v3015
        %v3017 = vpop.f32.mrb[0].mxu0
        %v3018 = vadd.f32 %v1622, %v3017
        %v3019 = vpop.f32.mrb[0].mxu0
        %v3020 = vadd.f32 %v1626, %v3019
        %3021 = vmatprep.mubr.bf16.mxu0 %v1354
        %3022 = vmatmul.mubr.bf16.gmra.mrb[0].mxu0 %v1353
        %v3023 = vpop.f32.mrb[0].mxu0
        %v3024 = vadd.f32 %v1622, %v3023
        %v3025 = vpop.f32.mrb[0].mxu0
        %v3026 = vadd.f32 %v1626, %v3025
        %v3027 = vpop.f32.mrb[0].mxu0
        %v3028 = vadd.f32 %v1622, %v3027
        %v3029 = vpop.f32.mrb[0].mxu0
        %v3030 = vadd.f32 %v1626, %v3029
        %3031 = vdwg.mxu0
        %3032 = vmatprep.subr.bf16.mxu0 %v2472
        %3033 = vmatpush1.bf16.msra.mxu0 %v2471
        %3034 = vmatprep.subr.bf16.mxu0 %v2476
        %3035 = vmatpush1.bf16.msra.mxu0 %v2475
        %3036 = vmatprep.subr.bf16.mxu0 %v2480
        %3037 = vmatpush1.bf16.msra.mxu0 %v2479
        %3038 = vmatprep.subr.bf16.mxu0 %v2484
        %3039 = vmatpush1.bf16.msra.mxu0 %v2483
        %3040 = vmatprep.subr.bf16.mxu0 %v2488
        %3041 = vmatpush1.bf16.msra.mxu0 %v2487
        %3042 = vmatprep.subr.bf16.mxu0 %v2492
        %3043 = vmatpush1.bf16.msra.mxu0 %v2491
        %3044 = vmatprep.subr.bf16.mxu0 %v2496
        %3045 = vmatpush1.bf16.msra.mxu0 %v2495
        %3046 = vmatprep.subr.bf16.mxu0 %v2500
        %3047 = vmatpush1.bf16.msra.mxu0 %v2499
        %3048 = vmatprep.subr.bf16.mxu0 %v2504
        %3049 = vmatpush1.bf16.msra.mxu0 %v2503
        %3050 = vmatprep.subr.bf16.mxu0 %v2508
        %3051 = vmatpush1.bf16.msra.mxu0 %v2507
        %3052 = vmatprep.subr.bf16.mxu0 %v2512
        %3053 = vmatpush1.bf16.msra.mxu0 %v2511
        %3054 = vmatprep.subr.bf16.mxu0 %v2516
        %3055 = vmatpush1.bf16.msra.mxu0 %v2515
        %3056 = vmatprep.subr.bf16.mxu0 %v2520
        %3057 = vmatpush1.bf16.msra.mxu0 %v2519
        %3058 = vmatprep.subr.bf16.mxu0 %v2524
        %3059 = vmatpush1.bf16.msra.mxu0 %v2523
        %3060 = vmatprep.subr.bf16.mxu0 %v2528
        %3061 = vmatpush1.bf16.msra.mxu0 %v2527
        %3062 = vmatprep.subr.bf16.mxu0 %v2532
        %3063 = vmatpush1.bf16.msra.mxu0 %v2531
        %3064 = vmatprep.mubr.bf16.mxu0 %v1300
        %3065 = vmatmul.mubr.bf16.gmra.mrb[0].mxu0 %v1299
        %v3066 = vpop.f32.mrb[0].mxu0
        %v3067 = vadd.f32 %v2954, %v3066
        %v3068 = vpop.f32.mrb[0].mxu0
        %v3069 = vadd.f32 %v2956, %v3068
        %v3070 = vpop.f32.mrb[0].mxu0
        %v3071 = vadd.f32 %v2958, %v3070
        %v3072 = vpop.f32.mrb[0].mxu0
        %v3073 = vadd.f32 %v2960, %v3072
        %3074 = vmatprep.mubr.bf16.mxu0 %v1308
        %3075 = vmatmul.mubr.bf16.gmra.mrb[0].mxu0 %v1307
        %v3076 = vpop.f32.mrb[0].mxu0
        %v3077 = vadd.f32 %v2964, %v3076
        %v3078 = vpop.f32.mrb[0].mxu0
        %v3079 = vadd.f32 %v2966, %v3078
        %v3080 = vpop.f32.mrb[0].mxu0
        %v3081 = vadd.f32 %v2968, %v3080
        %v3082 = vpop.f32.mrb[0].mxu0
        %v3083 = vadd.f32 %v2970, %v3082
        %3084 = vmatprep.mubr.bf16.mxu0 %v1316
        %3085 = vmatmul.mubr.bf16.gmra.mrb[0].mxu0 %v1315
        %v3086 = vpop.f32.mrb[0].mxu0
        %v3087 = vadd.f32 %v2974, %v3086
        %v3088 = vpop.f32.mrb[0].mxu0
        %v3089 = vadd.f32 %v2976, %v3088
        %v3090 = vpop.f32.mrb[0].mxu0
        %v3091 = vadd.f32 %v2978, %v3090
        %v3092 = vpop.f32.mrb[0].mxu0
        %v3093 = vadd.f32 %v2980, %v3092
        %3094 = vmatprep.mubr.bf16.mxu0 %v1324
        %3095 = vmatmul.mubr.bf16.gmra.mrb[0].mxu0 %v1323
        %v3096 = vpop.f32.mrb[0].mxu0
        %v3097 = vadd.f32 %v2984, %v3096
        %v3098 = vpop.f32.mrb[0].mxu0
        %v3099 = vadd.f32 %v2986, %v3098
        %v3100 = vpop.f32.mrb[0].mxu0
        %v3101 = vadd.f32 %v2988, %v3100
        %v3102 = vpop.f32.mrb[0].mxu0
        %v3103 = vadd.f32 %v2990, %v3102
        %3104 = vmatprep.mubr.bf16.mxu0 %v1332
        %3105 = vmatmul.mubr.bf16.gmra.mrb[0].mxu0 %v1331
        %v3106 = vpop.f32.mrb[0].mxu0
        %v3107 = vadd.f32 %v2994, %v3106
        %v3108 = vpop.f32.mrb[0].mxu0
        %v3109 = vadd.f32 %v2996, %v3108
        %v3110 = vpop.f32.mrb[0].mxu0
        %v3111 = vadd.f32 %v2998, %v3110
        %v3112 = vpop.f32.mrb[0].mxu0
        %v3113 = vadd.f32 %v3000, %v3112
        %3114 = vmatprep.mubr.bf16.mxu0 %v1340
        %3115 = vmatmul.mubr.bf16.gmra.mrb[0].mxu0 %v1339
        %v3116 = vpop.f32.mrb[0].mxu0
        %v3117 = vadd.f32 %v3004, %v3116
        %v3118 = vpop.f32.mrb[0].mxu0
        %v3119 = vadd.f32 %v3006, %v3118
        %v3120 = vpop.f32.mrb[0].mxu0
        %v3121 = vadd.f32 %v3008, %v3120
        %v3122 = vpop.f32.mrb[0].mxu0
        %v3123 = vadd.f32 %v3010, %v3122
        %3124 = vmatprep.mubr.bf16.mxu0 %v1348
        %3125 = vmatmul.mubr.bf16.gmra.mrb[0].mxu0 %v1347
        %v3126 = vpop.f32.mrb[0].mxu0
        %v3127 = vadd.f32 %v3014, %v3126
        %v3128 = vpop.f32.mrb[0].mxu0
        %v3129 = vadd.f32 %v3016, %v3128
        %v3130 = vpop.f32.mrb[0].mxu0
        %v3131 = vadd.f32 %v3018, %v3130
        %v3132 = vpop.f32.mrb[0].mxu0
        %v3133 = vadd.f32 %v3020, %v3132
        %3134 = vmatprep.mubr.bf16.mxu0 %v1356
        %3135 = vmatmul.mubr.bf16.gmra.mrb[0].mxu0 %v1355
        %v3136 = vpop.f32.mrb[0].mxu0
        %v3137 = vadd.f32 %v3024, %v3136
        %v3138 = vpop.f32.mrb[0].mxu0
        %v3139 = vadd.f32 %v3026, %v3138
        %v3140 = vpop.f32.mrb[0].mxu0
        %v3141 = vadd.f32 %v3028, %v3140
        %v3142 = vpop.f32.mrb[0].mxu0
        %v3143 = vadd.f32 %v3030, %v3142
        %3144 = vdwg.mxu0
        %3145 = vmatprep.subr.bf16.mxu0 %v2536
        %3146 = vmatpush1.bf16.msra.mxu0 %v2535
        %3147 = vmatprep.subr.bf16.mxu0 %v2540
        %3148 = vmatpush1.bf16.msra.mxu0 %v2539
        %3149 = vmatprep.subr.bf16.mxu0 %v2544
        %3150 = vmatpush1.bf16.msra.mxu0 %v2543
        %3151 = vmatprep.subr.bf16.mxu0 %v2548
        %3152 = vmatpush1.bf16.msra.mxu0 %v2547
        %3153 = vmatprep.subr.bf16.mxu0 %v2552
        %3154 = vmatpush1.bf16.msra.mxu0 %v2551
        %3155 = vmatprep.subr.bf16.mxu0 %v2556
        %3156 = vmatpush1.bf16.msra.mxu0 %v2555
        %3157 = vmatprep.subr.bf16.mxu0 %v2560
        %3158 = vmatpush1.bf16.msra.mxu0 %v2559
        %3159 = vmatprep.subr.bf16.mxu0 %v2564
        %3160 = vmatpush1.bf16.msra.mxu0 %v2563
        %3161 = vmatprep.subr.bf16.mxu0 %v2568
        %3162 = vmatpush1.bf16.msra.mxu0 %v2567
        %3163 = vmatprep.subr.bf16.mxu0 %v2572
        %3164 = vmatpush1.bf16.msra.mxu0 %v2571
        %3165 = vmatprep.subr.bf16.mxu0 %v2576
        %3166 = vmatpush1.bf16.msra.mxu0 %v2575
        %3167 = vmatprep.subr.bf16.mxu0 %v2580
        %3168 = vmatpush1.bf16.msra.mxu0 %v2579
        %3169 = vmatprep.subr.bf16.mxu0 %v2584
        %3170 = vmatpush1.bf16.msra.mxu0 %v2583
        %3171 = vmatprep.subr.bf16.mxu0 %v2588
        %3172 = vmatpush1.bf16.msra.mxu0 %v2587
        %3173 = vmatprep.subr.bf16.mxu0 %v2592
        %3174 = vmatpush1.bf16.msra.mxu0 %v2591
        %3175 = vmatprep.subr.bf16.mxu0 %v2596
        %3176 = vmatpush1.bf16.msra.mxu0 %v2595
        %3177 = vmatprep.mubr.bf16.mxu0 %v1302
        %3178 = vmatmul.mubr.bf16.gmra.mrb[0].mxu0 %v1301
        %v3179 = vpop.f32.mrb[0].mxu0
        %v3180 = vadd.f32 %v3067, %v3179
        %v3181 = vpop.f32.mrb[0].mxu0
        %v3182 = vadd.f32 %v3069, %v3181
        %v3183 = vpop.f32.mrb[0].mxu0
        %v3184 = vadd.f32 %v3071, %v3183
        %v3185 = vpop.f32.mrb[0].mxu0
        %v3186 = vadd.f32 %v3073, %v3185
        %3187 = vmatprep.mubr.bf16.mxu0 %v1310
        %3188 = vmatmul.mubr.bf16.gmra.mrb[0].mxu0 %v1309
        %v3189 = vpop.f32.mrb[0].mxu0
        %v3190 = vadd.f32 %v3077, %v3189
        %v3191 = vpop.f32.mrb[0].mxu0
        %v3192 = vadd.f32 %v3079, %v3191
        %v3193 = vpop.f32.mrb[0].mxu0
        %v3194 = vadd.f32 %v3081, %v3193
        %v3195 = vpop.f32.mrb[0].mxu0
        %v3196 = vadd.f32 %v3083, %v3195
        %3197 = vmatprep.mubr.bf16.mxu0 %v1318
        %3198 = vmatmul.mubr.bf16.gmra.mrb[0].mxu0 %v1317
        %v3199 = vpop.f32.mrb[0].mxu0
        %v3200 = vadd.f32 %v3087, %v3199
        %v3201 = vpop.f32.mrb[0].mxu0
        %v3202 = vadd.f32 %v3089, %v3201
        %v3203 = vpop.f32.mrb[0].mxu0
        %v3204 = vadd.f32 %v3091, %v3203
        %v3205 = vpop.f32.mrb[0].mxu0
        %v3206 = vadd.f32 %v3093, %v3205
        %3207 = vmatprep.mubr.bf16.mxu0 %v1326
        %3208 = vmatmul.mubr.bf16.gmra.mrb[0].mxu0 %v1325
        %v3209 = vpop.f32.mrb[0].mxu0
        %v3210 = vadd.f32 %v3097, %v3209
        %v3211 = vpop.f32.mrb[0].mxu0
        %v3212 = vadd.f32 %v3099, %v3211
        %v3213 = vpop.f32.mrb[0].mxu0
        %v3214 = vadd.f32 %v3101, %v3213
        %v3215 = vpop.f32.mrb[0].mxu0
        %v3216 = vadd.f32 %v3103, %v3215
        %3217 = vmatprep.mubr.bf16.mxu0 %v1334
        %3218 = vmatmul.mubr.bf16.gmra.mrb[0].mxu0 %v1333
        %v3219 = vpop.f32.mrb[0].mxu0
        %v3220 = vadd.f32 %v3107, %v3219
        %v3221 = vpop.f32.mrb[0].mxu0
        %v3222 = vadd.f32 %v3109, %v3221
        %v3223 = vpop.f32.mrb[0].mxu0
        %v3224 = vadd.f32 %v3111, %v3223
        %v3225 = vpop.f32.mrb[0].mxu0
        %v3226 = vadd.f32 %v3113, %v3225
        %3227 = vmatprep.mubr.bf16.mxu0 %v1342
        %3228 = vmatmul.mubr.bf16.gmra.mrb[0].mxu0 %v1341
        %v3229 = vpop.f32.mrb[0].mxu0
        %v3230 = vadd.f32 %v3117, %v3229
        %v3231 = vpop.f32.mrb[0].mxu0
        %v3232 = vadd.f32 %v3119, %v3231
        %v3233 = vpop.f32.mrb[0].mxu0
        %v3234 = vadd.f32 %v3121, %v3233
        %v3235 = vpop.f32.mrb[0].mxu0
        %v3236 = vadd.f32 %v3123, %v3235
        %3237 = vmatprep.mubr.bf16.mxu0 %v1350
        %3238 = vmatmul.mubr.bf16.gmra.mrb[0].mxu0 %v1349
        %v3239 = vpop.f32.mrb[0].mxu0
        %v3240 = vadd.f32 %v3127, %v3239
        %v3241 = vpop.f32.mrb[0].mxu0
        %v3242 = vadd.f32 %v3129, %v3241
        %v3243 = vpop.f32.mrb[0].mxu0
        %v3244 = vadd.f32 %v3131, %v3243
        %v3245 = vpop.f32.mrb[0].mxu0
        %v3246 = vadd.f32 %v3133, %v3245
        %3247 = vmatprep.mubr.bf16.mxu0 %v1358
        %3248 = vmatmul.mubr.bf16.gmra.mrb[0].mxu0 %v1357
        %v3249 = vpop.f32.mrb[0].mxu0
        %v3250 = vadd.f32 %v3137, %v3249
        %v3251 = vpop.f32.mrb[0].mxu0
        %v3252 = vadd.f32 %v3139, %v3251
        %v3253 = vpop.f32.mrb[0].mxu0
        %v3254 = vadd.f32 %v3141, %v3253
        %v3255 = vpop.f32.mrb[0].mxu0
        %v3256 = vadd.f32 %v3143, %v3255
        %3257 = vdwg.mxu0
        %3258 = vmatprep.subr.bf16.mxu0 %v2600
        %3259 = vmatpush1.bf16.msra.mxu0 %v2599
        %3260 = vmatprep.subr.bf16.mxu0 %v2604
        %3261 = vmatpush1.bf16.msra.mxu0 %v2603
        %3262 = vmatprep.subr.bf16.mxu0 %v2608
        %3263 = vmatpush1.bf16.msra.mxu0 %v2607
        %3264 = vmatprep.subr.bf16.mxu0 %v2612
        %3265 = vmatpush1.bf16.msra.mxu0 %v2611
        %3266 = vmatprep.subr.bf16.mxu0 %v2616
        %3267 = vmatpush1.bf16.msra.mxu0 %v2615
        %3268 = vmatprep.subr.bf16.mxu0 %v2620
        %3269 = vmatpush1.bf16.msra.mxu0 %v2619
        %3270 = vmatprep.subr.bf16.mxu0 %v2624
        %3271 = vmatpush1.bf16.msra.mxu0 %v2623
        %3272 = vmatprep.subr.bf16.mxu0 %v2628
        %3273 = vmatpush1.bf16.msra.mxu0 %v2627
        %3274 = vmatprep.subr.bf16.mxu0 %v2632
        %3275 = vmatpush1.bf16.msra.mxu0 %v2631
        %3276 = vmatprep.subr.bf16.mxu0 %v2636
        %3277 = vmatpush1.bf16.msra.mxu0 %v2635
        %3278 = vmatprep.subr.bf16.mxu0 %v2640
        %3279 = vmatpush1.bf16.msra.mxu0 %v2639
        %3280 = vmatprep.subr.bf16.mxu0 %v2644
        %3281 = vmatpush1.bf16.msra.mxu0 %v2643
        %3282 = vmatprep.subr.bf16.mxu0 %v2648
        %3283 = vmatpush1.bf16.msra.mxu0 %v2647
        %3284 = vmatprep.subr.bf16.mxu0 %v2652
        %3285 = vmatpush1.bf16.msra.mxu0 %v2651
        %3286 = vmatprep.subr.bf16.mxu0 %v2656
        %3287 = vmatpush1.bf16.msra.mxu0 %v2655
        %3288 = vmatprep.subr.bf16.mxu0 %v2660
        %3289 = vmatpush1.bf16.msra.mxu0 %v2659
        %3290 = vmatprep.mubr.bf16.mxu0 %v1304
        %3291 = vmatmul.mubr.bf16.gmra.mrb[0].mxu0 %v1303
        %v3292 = vpop.f32.mrb[0].mxu0
        %v3293 = vadd.f32 %v3180, %v3292
        %v3294 = vpop.f32.mrb[0].mxu0
        %v3295 = vadd.f32 %v3182, %v3294
        %v3296 = vpop.f32.mrb[0].mxu0
        %v3297 = vadd.f32 %v3184, %v3296
        %v3298 = vpop.f32.mrb[0].mxu0
        %v3299 = vadd.f32 %v3186, %v3298
        %3300 = vmatprep.mubr.bf16.mxu0 %v1312
        %3301 = vmatmul.mubr.bf16.gmra.mrb[0].mxu0 %v1311
        %v3302 = vpop.f32.mrb[0].mxu0
        %v3303 = vadd.f32 %v3190, %v3302
        %v3304 = vpop.f32.mrb[0].mxu0
        %v3305 = vadd.f32 %v3192, %v3304
        %v3306 = vpop.f32.mrb[0].mxu0
        %v3307 = vadd.f32 %v3194, %v3306
        %v3308 = vpop.f32.mrb[0].mxu0
        %v3309 = vadd.f32 %v3196, %v3308
        %3310 = vmatprep.mubr.bf16.mxu0 %v1320
        %3311 = vmatmul.mubr.bf16.gmra.mrb[0].mxu0 %v1319
        %v3312 = vpop.f32.mrb[0].mxu0
        %v3313 = vadd.f32 %v3200, %v3312
        %v3314 = vpop.f32.mrb[0].mxu0
        %v3315 = vadd.f32 %v3202, %v3314
        %v3316 = vpop.f32.mrb[0].mxu0
        %v3317 = vadd.f32 %v3204, %v3316
        %v3318 = vpop.f32.mrb[0].mxu0
        %v3319 = vadd.f32 %v3206, %v3318
        %3320 = vmatprep.mubr.bf16.mxu0 %v1328
        %3321 = vmatmul.mubr.bf16.gmra.mrb[0].mxu0 %v1327
        %v3322 = vpop.f32.mrb[0].mxu0
        %v3323 = vadd.f32 %v3210, %v3322
        %v3324 = vpop.f32.mrb[0].mxu0
        %v3325 = vadd.f32 %v3212, %v3324
        %v3326 = vpop.f32.mrb[0].mxu0
        %v3327 = vadd.f32 %v3214, %v3326
        %v3328 = vpop.f32.mrb[0].mxu0
        %v3329 = vadd.f32 %v3216, %v3328
        %3330 = vmatprep.mubr.bf16.mxu0 %v1336
        %3331 = vmatmul.mubr.bf16.gmra.mrb[0].mxu0 %v1335
        %v3332 = vpop.f32.mrb[0].mxu0
        %v3333 = vadd.f32 %v3220, %v3332
        %v3334 = vpop.f32.mrb[0].mxu0
        %v3335 = vadd.f32 %v3222, %v3334
        %v3336 = vpop.f32.mrb[0].mxu0
        %v3337 = vadd.f32 %v3224, %v3336
        %v3338 = vpop.f32.mrb[0].mxu0
        %v3339 = vadd.f32 %v3226, %v3338
        %3340 = vmatprep.mubr.bf16.mxu0 %v1344
        %3341 = vmatmul.mubr.bf16.gmra.mrb[0].mxu0 %v1343
        %v3342 = vpop.f32.mrb[0].mxu0
        %v3343 = vadd.f32 %v3230, %v3342
        %v3344 = vpop.f32.mrb[0].mxu0
        %v3345 = vadd.f32 %v3232, %v3344
        %v3346 = vpop.f32.mrb[0].mxu0
        %v3347 = vadd.f32 %v3234, %v3346
        %v3348 = vpop.f32.mrb[0].mxu0
        %v3349 = vadd.f32 %v3236, %v3348
        %3350 = vmatprep.mubr.bf16.mxu0 %v1352
        %3351 = vmatmul.mubr.bf16.gmra.mrb[0].mxu0 %v1351
        %v3352 = vpop.f32.mrb[0].mxu0
        %v3353 = vadd.f32 %v3240, %v3352
        %v3354 = vpop.f32.mrb[0].mxu0
        %v3355 = vadd.f32 %v3242, %v3354
        %v3356 = vpop.f32.mrb[0].mxu0
        %v3357 = vadd.f32 %v3244, %v3356
        %v3358 = vpop.f32.mrb[0].mxu0
        %v3359 = vadd.f32 %v3246, %v3358
        %3360 = vmatprep.mubr.bf16.mxu0 %v1360
        %3361 = vmatmul.mubr.bf16.gmra.mrb[0].mxu0 %v1359
        %v3362 = vpop.f32.mrb[0].mxu0
        %v3363 = vadd.f32 %v3250, %v3362
        %v3364 = vpop.f32.mrb[0].mxu0
        %v3365 = vadd.f32 %v3252, %v3364
        %v3366 = vpop.f32.mrb[0].mxu0
        %v3367 = vadd.f32 %v3254, %v3366
        %v3368 = vpop.f32.mrb[0].mxu0
        %v3369 = vadd.f32 %v3256, %v3368
        %3370 = vdwg.mxu0
        %3371 = vmatprep.subr.bf16.mxu0 %v2410
        %3372 = vmatpush1.bf16.msra.mxu0 %v2409
        %3373 = vmatprep.subr.bf16.mxu0 %v2414
        %3374 = vmatpush1.bf16.msra.mxu0 %v2413
        %3375 = vmatprep.subr.bf16.mxu0 %v2418
        %3376 = vmatpush1.bf16.msra.mxu0 %v2417
        %3377 = vmatprep.subr.bf16.mxu0 %v2422
        %3378 = vmatpush1.bf16.msra.mxu0 %v2421
        %3379 = vmatprep.subr.bf16.mxu0 %v2426
        %3380 = vmatpush1.bf16.msra.mxu0 %v2425
        %3381 = vmatprep.subr.bf16.mxu0 %v2430
        %3382 = vmatpush1.bf16.msra.mxu0 %v2429
        %3383 = vmatprep.subr.bf16.mxu0 %v2434
        %3384 = vmatpush1.bf16.msra.mxu0 %v2433
        %3385 = vmatprep.subr.bf16.mxu0 %v2438
        %3386 = vmatpush1.bf16.msra.mxu0 %v2437
        %3387 = vmatprep.subr.bf16.mxu0 %v2442
        %3388 = vmatpush1.bf16.msra.mxu0 %v2441
        %3389 = vmatprep.subr.bf16.mxu0 %v2446
        %3390 = vmatpush1.bf16.msra.mxu0 %v2445
        %3391 = vmatprep.subr.bf16.mxu0 %v2450
        %3392 = vmatpush1.bf16.msra.mxu0 %v2449
        %3393 = vmatprep.subr.bf16.mxu0 %v2454
        %3394 = vmatpush1.bf16.msra.mxu0 %v2453
        %3395 = vmatprep.subr.bf16.mxu0 %v2458
        %3396 = vmatpush1.bf16.msra.mxu0 %v2457
        %3397 = vmatprep.subr.bf16.mxu0 %v2462
        %3398 = vmatpush1.bf16.msra.mxu0 %v2461
        %3399 = vmatprep.subr.bf16.mxu0 %v2466
        %3400 = vmatpush1.bf16.msra.mxu0 %v2465
        %3401 = vmatprep.subr.bf16.mxu0 %v2470
        %3402 = vmatpush1.bf16.msra.mxu0 %v2469
        %3403 = vmatprep.mubr.bf16.mxu0 %v1298
        %3404 = vmatmul.mubr.bf16.gmra.mrb[0].mxu0 %v1297
        %v3405 = vpop.f32.mrb[0].mxu0
        %v3406 = vadd.f32 %v1630, %v3405
        %v3407 = vpop.f32.mrb[0].mxu0
        %v3408 = vadd.f32 %v1634, %v3407
        %v3409 = vpop.f32.mrb[0].mxu0
        %v3410 = vadd.f32 %v1630, %v3409
        %v3411 = vpop.f32.mrb[0].mxu0
        %v3412 = vadd.f32 %v1634, %v3411
        %3413 = vmatprep.mubr.bf16.mxu0 %v1306
        %3414 = vmatmul.mubr.bf16.gmra.mrb[0].mxu0 %v1305
        %v3415 = vpop.f32.mrb[0].mxu0
        %v3416 = vadd.f32 %v1630, %v3415
        %v3417 = vpop.f32.mrb[0].mxu0
        %v3418 = vadd.f32 %v1634, %v3417
        %v3419 = vpop.f32.mrb[0].mxu0
        %v3420 = vadd.f32 %v1630, %v3419
        %v3421 = vpop.f32.mrb[0].mxu0
        %v3422 = vadd.f32 %v1634, %v3421
        %3423 = vmatprep.mubr.bf16.mxu0 %v1314
        %3424 = vmatmul.mubr.bf16.gmra.mrb[0].mxu0 %v1313
        %v3425 = vpop.f32.mrb[0].mxu0
        %v3426 = vadd.f32 %v1630, %v3425
        %v3427 = vpop.f32.mrb[0].mxu0
        %v3428 = vadd.f32 %v1634, %v3427
        %v3429 = vpop.f32.mrb[0].mxu0
        %v3430 = vadd.f32 %v1630, %v3429
        %v3431 = vpop.f32.mrb[0].mxu0
        %v3432 = vadd.f32 %v1634, %v3431
        %3433 = vmatprep.mubr.bf16.mxu0 %v1322
        %3434 = vmatmul.mubr.bf16.gmra.mrb[0].mxu0 %v1321
        %v3435 = vpop.f32.mrb[0].mxu0
        %v3436 = vadd.f32 %v1630, %v3435
        %v3437 = vpop.f32.mrb[0].mxu0
        %v3438 = vadd.f32 %v1634, %v3437
        %v3439 = vpop.f32.mrb[0].mxu0
        %v3440 = vadd.f32 %v1630, %v3439
        %v3441 = vpop.f32.mrb[0].mxu0
        %v3442 = vadd.f32 %v1634, %v3441
        %3443 = vmatprep.mubr.bf16.mxu0 %v1330
        %3444 = vmatmul.mubr.bf16.gmra.mrb[0].mxu0 %v1329
        %v3445 = vpop.f32.mrb[0].mxu0
        %v3446 = vadd.f32 %v1630, %v3445
        %v3447 = vpop.f32.mrb[0].mxu0
        %v3448 = vadd.f32 %v1634, %v3447
        %v3449 = vpop.f32.mrb[0].mxu0
        %v3450 = vadd.f32 %v1630, %v3449
        %v3451 = vpop.f32.mrb[0].mxu0
        %v3452 = vadd.f32 %v1634, %v3451
        %3453 = vmatprep.mubr.bf16.mxu0 %v1338
        %3454 = vmatmul.mubr.bf16.gmra.mrb[0].mxu0 %v1337
        %v3455 = vpop.f32.mrb[0].mxu0
        %v3456 = vadd.f32 %v1630, %v3455
        %v3457 = vpop.f32.mrb[0].mxu0
        %v3458 = vadd.f32 %v1634, %v3457
        %v3459 = vpop.f32.mrb[0].mxu0
        %v3460 = vadd.f32 %v1630, %v3459
        %v3461 = vpop.f32.mrb[0].mxu0
        %v3462 = vadd.f32 %v1634, %v3461
        %3463 = vmatprep.mubr.bf16.mxu0 %v1346
        %3464 = vmatmul.mubr.bf16.gmra.mrb[0].mxu0 %v1345
        %v3465 = vpop.f32.mrb[0].mxu0
        %v3466 = vadd.f32 %v1630, %v3465
        %v3467 = vpop.f32.mrb[0].mxu0
        %v3468 = vadd.f32 %v1634, %v3467
        %v3469 = vpop.f32.mrb[0].mxu0
        %v3470 = vadd.f32 %v1630, %v3469
        %v3471 = vpop.f32.mrb[0].mxu0
        %v3472 = vadd.f32 %v1634, %v3471
        %3473 = vmatprep.mubr.bf16.mxu0 %v1354
        %3474 = vmatmul.mubr.bf16.gmra.mrb[0].mxu0 %v1353
        %v3475 = vpop.f32.mrb[0].mxu0
        %v3476 = vadd.f32 %v1630, %v3475
        %v3477 = vpop.f32.mrb[0].mxu0
        %v3478 = vadd.f32 %v1634, %v3477
        %v3479 = vpop.f32.mrb[0].mxu0
        %v3480 = vadd.f32 %v1630, %v3479
        %v3481 = vpop.f32.mrb[0].mxu0
        %v3482 = vadd.f32 %v1634, %v3481
        %3483 = vdwg.mxu0
        %3484 = vmatprep.subr.bf16.mxu0 %v2474
        %3485 = vmatpush1.bf16.msra.mxu0 %v2473
        %3486 = vmatprep.subr.bf16.mxu0 %v2478
        %3487 = vmatpush1.bf16.msra.mxu0 %v2477
        %3488 = vmatprep.subr.bf16.mxu0 %v2482
        %3489 = vmatpush1.bf16.msra.mxu0 %v2481
        %3490 = vmatprep.subr.bf16.mxu0 %v2486
        %3491 = vmatpush1.bf16.msra.mxu0 %v2485
        %3492 = vmatprep.subr.bf16.mxu0 %v2490
        %3493 = vmatpush1.bf16.msra.mxu0 %v2489
        %3494 = vmatprep.subr.bf16.mxu0 %v2494
        %3495 = vmatpush1.bf16.msra.mxu0 %v2493
        %3496 = vmatprep.subr.bf16.mxu0 %v2498
        %3497 = vmatpush1.bf16.msra.mxu0 %v2497
        %3498 = vmatprep.subr.bf16.mxu0 %v2502
        %3499 = vmatpush1.bf16.msra.mxu0 %v2501
        %3500 = vmatprep.subr.bf16.mxu0 %v2506
        %3501 = vmatpush1.bf16.msra.mxu0 %v2505
        %3502 = vmatprep.subr.bf16.mxu0 %v2510
        %3503 = vmatpush1.bf16.msra.mxu0 %v2509
        %3504 = vmatprep.subr.bf16.mxu0 %v2514
        %3505 = vmatpush1.bf16.msra.mxu0 %v2513
        %3506 = vmatprep.subr.bf16.mxu0 %v2518
        %3507 = vmatpush1.bf16.msra.mxu0 %v2517
        %3508 = vmatprep.subr.bf16.mxu0 %v2522
        %3509 = vmatpush1.bf16.msra.mxu0 %v2521
        %3510 = vmatprep.subr.bf16.mxu0 %v2526
        %3511 = vmatpush1.bf16.msra.mxu0 %v2525
        %3512 = vmatprep.subr.bf16.mxu0 %v2530
        %3513 = vmatpush1.bf16.msra.mxu0 %v2529
        %3514 = vmatprep.subr.bf16.mxu0 %v2534
        %3515 = vmatpush1.bf16.msra.mxu0 %v2533
        %3516 = vmatprep.mubr.bf16.mxu0 %v1300
        %3517 = vmatmul.mubr.bf16.gmra.mrb[0].mxu0 %v1299
        %v3518 = vpop.f32.mrb[0].mxu0
        %v3519 = vadd.f32 %v3406, %v3518
        %v3520 = vpop.f32.mrb[0].mxu0
        %v3521 = vadd.f32 %v3408, %v3520
        %v3522 = vpop.f32.mrb[0].mxu0
        %v3523 = vadd.f32 %v3410, %v3522
        %v3524 = vpop.f32.mrb[0].mxu0
        %v3525 = vadd.f32 %v3412, %v3524
        %3526 = vmatprep.mubr.bf16.mxu0 %v1308
        %3527 = vmatmul.mubr.bf16.gmra.mrb[0].mxu0 %v1307
        %v3528 = vpop.f32.mrb[0].mxu0
        %v3529 = vadd.f32 %v3416, %v3528
        %v3530 = vpop.f32.mrb[0].mxu0
        %v3531 = vadd.f32 %v3418, %v3530
        %v3532 = vpop.f32.mrb[0].mxu0
        %v3533 = vadd.f32 %v3420, %v3532
        %v3534 = vpop.f32.mrb[0].mxu0
        %v3535 = vadd.f32 %v3422, %v3534
        %3536 = vmatprep.mubr.bf16.mxu0 %v1316
        %3537 = vmatmul.mubr.bf16.gmra.mrb[0].mxu0 %v1315
        %v3538 = vpop.f32.mrb[0].mxu0
        %v3539 = vadd.f32 %v3426, %v3538
        %v3540 = vpop.f32.mrb[0].mxu0
        %v3541 = vadd.f32 %v3428, %v3540
        %v3542 = vpop.f32.mrb[0].mxu0
        %v3543 = vadd.f32 %v3430, %v3542
        %v3544 = vpop.f32.mrb[0].mxu0
        %v3545 = vadd.f32 %v3432, %v3544
        %3546 = vmatprep.mubr.bf16.mxu0 %v1324
        %3547 = vmatmul.mubr.bf16.gmra.mrb[0].mxu0 %v1323
        %v3548 = vpop.f32.mrb[0].mxu0
        %v3549 = vadd.f32 %v3436, %v3548
        %v3550 = vpop.f32.mrb[0].mxu0
        %v3551 = vadd.f32 %v3438, %v3550
        %v3552 = vpop.f32.mrb[0].mxu0
        %v3553 = vadd.f32 %v3440, %v3552
        %v3554 = vpop.f32.mrb[0].mxu0
        %v3555 = vadd.f32 %v3442, %v3554
        %3556 = vmatprep.mubr.bf16.mxu0 %v1332
        %3557 = vmatmul.mubr.bf16.gmra.mrb[0].mxu0 %v1331
        %v3558 = vpop.f32.mrb[0].mxu0
        %v3559 = vadd.f32 %v3446, %v3558
        %v3560 = vpop.f32.mrb[0].mxu0
        %v3561 = vadd.f32 %v3448, %v3560
        %v3562 = vpop.f32.mrb[0].mxu0
        %v3563 = vadd.f32 %v3450, %v3562
        %v3564 = vpop.f32.mrb[0].mxu0
        %v3565 = vadd.f32 %v3452, %v3564
        %3566 = vmatprep.mubr.bf16.mxu0 %v1340
        %3567 = vmatmul.mubr.bf16.gmra.mrb[0].mxu0 %v1339
        %v3568 = vpop.f32.mrb[0].mxu0
        %v3569 = vadd.f32 %v3456, %v3568
        %v3570 = vpop.f32.mrb[0].mxu0
        %v3571 = vadd.f32 %v3458, %v3570
        %v3572 = vpop.f32.mrb[0].mxu0
        %v3573 = vadd.f32 %v3460, %v3572
        %v3574 = vpop.f32.mrb[0].mxu0
        %v3575 = vadd.f32 %v3462, %v3574
        %3576 = vmatprep.mubr.bf16.mxu0 %v1348
        %3577 = vmatmul.mubr.bf16.gmra.mrb[0].mxu0 %v1347
        %v3578 = vpop.f32.mrb[0].mxu0
        %v3579 = vadd.f32 %v3466, %v3578
        %v3580 = vpop.f32.mrb[0].mxu0
        %v3581 = vadd.f32 %v3468, %v3580
        %v3582 = vpop.f32.mrb[0].mxu0
        %v3583 = vadd.f32 %v3470, %v3582
        %v3584 = vpop.f32.mrb[0].mxu0
        %v3585 = vadd.f32 %v3472, %v3584
        %3586 = vmatprep.mubr.bf16.mxu0 %v1356
        %3587 = vmatmul.mubr.bf16.gmra.mrb[0].mxu0 %v1355
        %v3588 = vpop.f32.mrb[0].mxu0
        %v3589 = vadd.f32 %v3476, %v3588
        %v3590 = vpop.f32.mrb[0].mxu0
        %v3591 = vadd.f32 %v3478, %v3590
        %v3592 = vpop.f32.mrb[0].mxu0
        %v3593 = vadd.f32 %v3480, %v3592
        %v3594 = vpop.f32.mrb[0].mxu0
        %v3595 = vadd.f32 %v3482, %v3594
        %3596 = vdwg.mxu0
        %3597 = vmatprep.subr.bf16.mxu0 %v2538
        %3598 = vmatpush1.bf16.msra.mxu0 %v2537
        %3599 = vmatprep.subr.bf16.mxu0 %v2542
        %3600 = vmatpush1.bf16.msra.mxu0 %v2541
        %3601 = vmatprep.subr.bf16.mxu0 %v2546
        %3602 = vmatpush1.bf16.msra.mxu0 %v2545
        %3603 = vmatprep.subr.bf16.mxu0 %v2550
        %3604 = vmatpush1.bf16.msra.mxu0 %v2549
        %3605 = vmatprep.subr.bf16.mxu0 %v2554
        %3606 = vmatpush1.bf16.msra.mxu0 %v2553
        %3607 = vmatprep.subr.bf16.mxu0 %v2558
        %3608 = vmatpush1.bf16.msra.mxu0 %v2557
        %3609 = vmatprep.subr.bf16.mxu0 %v2562
        %3610 = vmatpush1.bf16.msra.mxu0 %v2561
        %3611 = vmatprep.subr.bf16.mxu0 %v2566
        %3612 = vmatpush1.bf16.msra.mxu0 %v2565
        %3613 = vmatprep.subr.bf16.mxu0 %v2570
        %3614 = vmatpush1.bf16.msra.mxu0 %v2569
        %3615 = vmatprep.subr.bf16.mxu0 %v2574
        %3616 = vmatpush1.bf16.msra.mxu0 %v2573
        %3617 = vmatprep.subr.bf16.mxu0 %v2578
        %3618 = vmatpush1.bf16.msra.mxu0 %v2577
        %3619 = vmatprep.subr.bf16.mxu0 %v2582
        %3620 = vmatpush1.bf16.msra.mxu0 %v2581
        %3621 = vmatprep.subr.bf16.mxu0 %v2586
        %3622 = vmatpush1.bf16.msra.mxu0 %v2585
        %3623 = vmatprep.subr.bf16.mxu0 %v2590
        %3624 = vmatpush1.bf16.msra.mxu0 %v2589
        %3625 = vmatprep.subr.bf16.mxu0 %v2594
        %3626 = vmatpush1.bf16.msra.mxu0 %v2593
        %3627 = vmatprep.subr.bf16.mxu0 %v2598
        %3628 = vmatpush1.bf16.msra.mxu0 %v2597
        %3629 = vmatprep.mubr.bf16.mxu0 %v1302
        %3630 = vmatmul.mubr.bf16.gmra.mrb[0].mxu0 %v1301
        %v3631 = vpop.f32.mrb[0].mxu0
        %v3632 = vadd.f32 %v3519, %v3631
        %v3633 = vpop.f32.mrb[0].mxu0
        %v3634 = vadd.f32 %v3521, %v3633
        %v3635 = vpop.f32.mrb[0].mxu0
        %v3636 = vadd.f32 %v3523, %v3635
        %v3637 = vpop.f32.mrb[0].mxu0
        %v3638 = vadd.f32 %v3525, %v3637
        %3639 = vmatprep.mubr.bf16.mxu0 %v1310
        %3640 = vmatmul.mubr.bf16.gmra.mrb[0].mxu0 %v1309
        %v3641 = vpop.f32.mrb[0].mxu0
        %v3642 = vadd.f32 %v3529, %v3641
        %v3643 = vpop.f32.mrb[0].mxu0
        %v3644 = vadd.f32 %v3531, %v3643
        %v3645 = vpop.f32.mrb[0].mxu0
        %v3646 = vadd.f32 %v3533, %v3645
        %v3647 = vpop.f32.mrb[0].mxu0
        %v3648 = vadd.f32 %v3535, %v3647
        %3649 = vmatprep.mubr.bf16.mxu0 %v1318
        %3650 = vmatmul.mubr.bf16.gmra.mrb[0].mxu0 %v1317
        %v3651 = vpop.f32.mrb[0].mxu0
        %v3652 = vadd.f32 %v3539, %v3651
        %v3653 = vpop.f32.mrb[0].mxu0
        %v3654 = vadd.f32 %v3541, %v3653
        %v3655 = vpop.f32.mrb[0].mxu0
        %v3656 = vadd.f32 %v3543, %v3655
        %v3657 = vpop.f32.mrb[0].mxu0
        %v3658 = vadd.f32 %v3545, %v3657
        %3659 = vmatprep.mubr.bf16.mxu0 %v1326
        %3660 = vmatmul.mubr.bf16.gmra.mrb[0].mxu0 %v1325
        %v3661 = vpop.f32.mrb[0].mxu0
        %v3662 = vadd.f32 %v3549, %v3661
        %v3663 = vpop.f32.mrb[0].mxu0
        %v3664 = vadd.f32 %v3551, %v3663
        %v3665 = vpop.f32.mrb[0].mxu0
        %v3666 = vadd.f32 %v3553, %v3665
        %v3667 = vpop.f32.mrb[0].mxu0
        %v3668 = vadd.f32 %v3555, %v3667
        %3669 = vmatprep.mubr.bf16.mxu0 %v1334
        %3670 = vmatmul.mubr.bf16.gmra.mrb[0].mxu0 %v1333
        %v3671 = vpop.f32.mrb[0].mxu0
        %v3672 = vadd.f32 %v3559, %v3671
        %v3673 = vpop.f32.mrb[0].mxu0
        %v3674 = vadd.f32 %v3561, %v3673
        %v3675 = vpop.f32.mrb[0].mxu0
        %v3676 = vadd.f32 %v3563, %v3675
        %v3677 = vpop.f32.mrb[0].mxu0
        %v3678 = vadd.f32 %v3565, %v3677
        %3679 = vmatprep.mubr.bf16.mxu0 %v1342
        %3680 = vmatmul.mubr.bf16.gmra.mrb[0].mxu0 %v1341
        %v3681 = vpop.f32.mrb[0].mxu0
        %v3682 = vadd.f32 %v3569, %v3681
        %v3683 = vpop.f32.mrb[0].mxu0
        %v3684 = vadd.f32 %v3571, %v3683
        %v3685 = vpop.f32.mrb[0].mxu0
        %v3686 = vadd.f32 %v3573, %v3685
        %v3687 = vpop.f32.mrb[0].mxu0
        %v3688 = vadd.f32 %v3575, %v3687
        %3689 = vmatprep.mubr.bf16.mxu0 %v1350
        %3690 = vmatmul.mubr.bf16.gmra.mrb[0].mxu0 %v1349
        %v3691 = vpop.f32.mrb[0].mxu0
        %v3692 = vadd.f32 %v3579, %v3691
        %v3693 = vpop.f32.mrb[0].mxu0
        %v3694 = vadd.f32 %v3581, %v3693
        %v3695 = vpop.f32.mrb[0].mxu0
        %v3696 = vadd.f32 %v3583, %v3695
        %v3697 = vpop.f32.mrb[0].mxu0
        %v3698 = vadd.f32 %v3585, %v3697
        %3699 = vmatprep.mubr.bf16.mxu0 %v1358
        %3700 = vmatmul.mubr.bf16.gmra.mrb[0].mxu0 %v1357
        %v3701 = vpop.f32.mrb[0].mxu0
        %v3702 = vadd.f32 %v3589, %v3701
        %v3703 = vpop.f32.mrb[0].mxu0
        %v3704 = vadd.f32 %v3591, %v3703
        %v3705 = vpop.f32.mrb[0].mxu0
        %v3706 = vadd.f32 %v3593, %v3705
        %v3707 = vpop.f32.mrb[0].mxu0
        %v3708 = vadd.f32 %v3595, %v3707
        %3709 = vdwg.mxu0
        %3710 = vmatprep.subr.bf16.mxu0 %v2602
        %3711 = vmatpush1.bf16.msra.mxu0 %v2601
        %3712 = vmatprep.subr.bf16.mxu0 %v2606
        %3713 = vmatpush1.bf16.msra.mxu0 %v2605
        %3714 = vmatprep.subr.bf16.mxu0 %v2610
        %3715 = vmatpush1.bf16.msra.mxu0 %v2609
        %3716 = vmatprep.subr.bf16.mxu0 %v2614
        %3717 = vmatpush1.bf16.msra.mxu0 %v2613
        %3718 = vmatprep.subr.bf16.mxu0 %v2618
        %3719 = vmatpush1.bf16.msra.mxu0 %v2617
        %3720 = vmatprep.subr.bf16.mxu0 %v2622
        %3721 = vmatpush1.bf16.msra.mxu0 %v2621
        %3722 = vmatprep.subr.bf16.mxu0 %v2626
        %3723 = vmatpush1.bf16.msra.mxu0 %v2625
        %3724 = vmatprep.subr.bf16.mxu0 %v2630
        %3725 = vmatpush1.bf16.msra.mxu0 %v2629
        %3726 = vmatprep.subr.bf16.mxu0 %v2634
        %3727 = vmatpush1.bf16.msra.mxu0 %v2633
        %3728 = vmatprep.subr.bf16.mxu0 %v2638
        %3729 = vmatpush1.bf16.msra.mxu0 %v2637
        %3730 = vmatprep.subr.bf16.mxu0 %v2642
        %3731 = vmatpush1.bf16.msra.mxu0 %v2641
        %3732 = vmatprep.subr.bf16.mxu0 %v2646
        %3733 = vmatpush1.bf16.msra.mxu0 %v2645
        %3734 = vmatprep.subr.bf16.mxu0 %v2650
        %3735 = vmatpush1.bf16.msra.mxu0 %v2649
        %3736 = vmatprep.subr.bf16.mxu0 %v2654
        %3737 = vmatpush1.bf16.msra.mxu0 %v2653
        %3738 = vmatprep.subr.bf16.mxu0 %v2658
        %3739 = vmatpush1.bf16.msra.mxu0 %v2657
        %3740 = vmatprep.subr.bf16.mxu0 %v2662
        %3741 = vmatpush1.bf16.msra.mxu0 %v2661
        %3742 = vmatprep.mubr.bf16.mxu0 %v1304
        %3743 = vmatmul.mubr.bf16.gmra.mrb[0].mxu0 %v1303
        %v3744 = vpop.f32.mrb[0].mxu0
        %v3745 = vadd.f32 %v3632, %v3744
        %v3746 = vpop.f32.mrb[0].mxu0
        %v3747 = vadd.f32 %v3634, %v3746
        %v3748 = vpop.f32.mrb[0].mxu0
        %v3749 = vadd.f32 %v3636, %v3748
        %v3750 = vpop.f32.mrb[0].mxu0
        %v3751 = vadd.f32 %v3638, %v3750
        %3752 = vmatprep.mubr.bf16.mxu0 %v1312
        %3753 = vmatmul.mubr.bf16.gmra.mrb[0].mxu0 %v1311
        %v3754 = vpop.f32.mrb[0].mxu0
        %v3755 = vadd.f32 %v3642, %v3754
        %v3756 = vpop.f32.mrb[0].mxu0
        %v3757 = vadd.f32 %v3644, %v3756
        %v3758 = vpop.f32.mrb[0].mxu0
        %v3759 = vadd.f32 %v3646, %v3758
        %v3760 = vpop.f32.mrb[0].mxu0
        %v3761 = vadd.f32 %v3648, %v3760
        %3762 = vmatprep.mubr.bf16.mxu0 %v1320
        %3763 = vmatmul.mubr.bf16.gmra.mrb[0].mxu0 %v1319
        %v3764 = vpop.f32.mrb[0].mxu0
        %v3765 = vadd.f32 %v3652, %v3764
        %v3766 = vpop.f32.mrb[0].mxu0
        %v3767 = vadd.f32 %v3654, %v3766
        %v3768 = vpop.f32.mrb[0].mxu0
        %v3769 = vadd.f32 %v3656, %v3768
        %v3770 = vpop.f32.mrb[0].mxu0
        %v3771 = vadd.f32 %v3658, %v3770
        %3772 = vmatprep.mubr.bf16.mxu0 %v1328
        %3773 = vmatmul.mubr.bf16.gmra.mrb[0].mxu0 %v1327
        %v3774 = vpop.f32.mrb[0].mxu0
        %v3775 = vadd.f32 %v3662, %v3774
        %v3776 = vpop.f32.mrb[0].mxu0
        %v3777 = vadd.f32 %v3664, %v3776
        %v3778 = vpop.f32.mrb[0].mxu0
        %v3779 = vadd.f32 %v3666, %v3778
        %v3780 = vpop.f32.mrb[0].mxu0
        %v3781 = vadd.f32 %v3668, %v3780
        %3782 = vmatprep.mubr.bf16.mxu0 %v1336
        %3783 = vmatmul.mubr.bf16.gmra.mrb[0].mxu0 %v1335
        %v3784 = vpop.f32.mrb[0].mxu0
        %v3785 = vadd.f32 %v3672, %v3784
        %v3786 = vpop.f32.mrb[0].mxu0
        %v3787 = vadd.f32 %v3674, %v3786
        %v3788 = vpop.f32.mrb[0].mxu0
        %v3789 = vadd.f32 %v3676, %v3788
        %v3790 = vpop.f32.mrb[0].mxu0
        %v3791 = vadd.f32 %v3678, %v3790
        %3792 = vmatprep.mubr.bf16.mxu0 %v1344
        %3793 = vmatmul.mubr.bf16.gmra.mrb[0].mxu0 %v1343
        %v3794 = vpop.f32.mrb[0].mxu0
        %v3795 = vadd.f32 %v3682, %v3794
        %v3796 = vpop.f32.mrb[0].mxu0
        %v3797 = vadd.f32 %v3684, %v3796
        %v3798 = vpop.f32.mrb[0].mxu0
        %v3799 = vadd.f32 %v3686, %v3798
        %v3800 = vpop.f32.mrb[0].mxu0
        %v3801 = vadd.f32 %v3688, %v3800
        %3802 = vmatprep.mubr.bf16.mxu0 %v1352
        %3803 = vmatmul.mubr.bf16.gmra.mrb[0].mxu0 %v1351
        %v3804 = vpop.f32.mrb[0].mxu0
        %v3805 = vadd.f32 %v3692, %v3804
        %v3806 = vpop.f32.mrb[0].mxu0
        %v3807 = vadd.f32 %v3694, %v3806
        %v3808 = vpop.f32.mrb[0].mxu0
        %v3809 = vadd.f32 %v3696, %v3808
        %v3810 = vpop.f32.mrb[0].mxu0
        %v3811 = vadd.f32 %v3698, %v3810
        %3812 = vmatprep.mubr.bf16.mxu0 %v1360
        %3813 = vmatmul.mubr.bf16.gmra.mrb[0].mxu0 %v1359
        %v3814 = vpop.f32.mrb[0].mxu0
        %v3815 = vadd.f32 %v3702, %v3814
        %v3816 = vpop.f32.mrb[0].mxu0
        %v3817 = vadd.f32 %v3704, %v3816
        %v3818 = vpop.f32.mrb[0].mxu0
        %v3819 = vadd.f32 %v3706, %v3818
        %v3820 = vpop.f32.mrb[0].mxu0
        %v3821 = vadd.f32 %v3708, %v3820
        %3822 = vdwg.mxu0
        %v3823 = vmax.f32 %v3293, 0.0
        %v3824 = vmax.f32 %v3295, 0.0
        %v3825 = vmax.f32 %v3745, 0.0
        %v3826 = vmax.f32 %v3747, 0.0
        %v3827 = vmax.f32 %v3297, 0.0
        %v3828 = vmax.f32 %v3299, 0.0
        %v3829 = vmax.f32 %v3749, 0.0
        %v3830 = vmax.f32 %v3751, 0.0
        %v3831 = vmax.f32 %v3303, 0.0
        %v3832 = vmax.f32 %v3305, 0.0
        %v3833 = vmax.f32 %v3755, 0.0
        %v3834 = vmax.f32 %v3757, 0.0
        %v3835 = vmax.f32 %v3307, 0.0
        %v3836 = vmax.f32 %v3309, 0.0
        %v3837 = vmax.f32 %v3759, 0.0
        %v3838 = vmax.f32 %v3761, 0.0
        %v3839 = vmax.f32 %v3313, 0.0
        %v3840 = vmax.f32 %v3315, 0.0
        %v3841 = vmax.f32 %v3765, 0.0
        %v3842 = vmax.f32 %v3767, 0.0
        %v3843 = vmax.f32 %v3317, 0.0
        %v3844 = vmax.f32 %v3319, 0.0
        %v3845 = vmax.f32 %v3769, 0.0
        %v3846 = vmax.f32 %v3771, 0.0
        %v3847 = vmax.f32 %v3323, 0.0
        %v3848 = vmax.f32 %v3325, 0.0
        %v3849 = vmax.f32 %v3775, 0.0
        %v3850 = vmax.f32 %v3777, 0.0
        %v3851 = vmax.f32 %v3327, 0.0
        %v3852 = vmax.f32 %v3329, 0.0
        %v3853 = vmax.f32 %v3779, 0.0
        %v3854 = vmax.f32 %v3781, 0.0
        %v3855 = vmax.f32 %v3333, 0.0
        %v3856 = vmax.f32 %v3335, 0.0
        %v3857 = vmax.f32 %v3785, 0.0
        %v3858 = vmax.f32 %v3787, 0.0
        %v3859 = vmax.f32 %v3337, 0.0
        %v3860 = vmax.f32 %v3339, 0.0
        %v3861 = vmax.f32 %v3789, 0.0
        %v3862 = vmax.f32 %v3791, 0.0
        %v3863 = vmax.f32 %v3343, 0.0
        %v3864 = vmax.f32 %v3345, 0.0
        %v3865 = vmax.f32 %v3795, 0.0
        %v3866 = vmax.f32 %v3797, 0.0
        %v3867 = vmax.f32 %v3347, 0.0
        %v3868 = vmax.f32 %v3349, 0.0
        %v3869 = vmax.f32 %v3799, 0.0
        %v3870 = vmax.f32 %v3801, 0.0
        %v3871 = vmax.f32 %v3353, 0.0
        %v3872 = vmax.f32 %v3355, 0.0
        %v3873 = vmax.f32 %v3805, 0.0
        %v3874 = vmax.f32 %v3807, 0.0
        %v3875 = vmax.f32 %v3357, 0.0
        %v3876 = vmax.f32 %v3359, 0.0
        %v3877 = vmax.f32 %v3809, 0.0
        %v3878 = vmax.f32 %v3811, 0.0
        %v3879 = vmax.f32 %v3363, 0.0
        %v3880 = vmax.f32 %v3365, 0.0
        %v3881 = vmax.f32 %v3815, 0.0
        %v3882 = vmax.f32 %v3817, 0.0
        %v3883 = vmax.f32 %v3367, 0.0
        %v3884 = vmax.f32 %v3369, 0.0
        %v3885 = vmax.f32 %v3819, 0.0
        %v3886 = vmax.f32 %v3821, 0.0
        %v3887 = vpack.c.bf16 %v3827, %v3823
        %v3888 = vpack.c.bf16 %v3828, %v3824
        %v3889 = vpack.c.bf16 %v3829, %v3825
        %v3890 = vpack.c.bf16 %v3830, %v3826
        %v3891 = vpack.c.bf16 %v3835, %v3831
        %v3892 = vpack.c.bf16 %v3836, %v3832
        %v3893 = vpack.c.bf16 %v3837, %v3833
        %v3894 = vpack.c.bf16 %v3838, %v3834
        %v3895 = vpack.c.bf16 %v3843, %v3839
        %v3896 = vpack.c.bf16 %v3844, %v3840
        %v3897 = vpack.c.bf16 %v3845, %v3841
        %v3898 = vpack.c.bf16 %v3846, %v3842
        %v3899 = vpack.c.bf16 %v3851, %v3847
        %v3900 = vpack.c.bf16 %v3852, %v3848
        %v3901 = vpack.c.bf16 %v3853, %v3849
        %v3902 = vpack.c.bf16 %v3854, %v3850
        %v3903 = vpack.c.bf16 %v3859, %v3855
        %v3904 = vpack.c.bf16 %v3860, %v3856
        %v3905 = vpack.c.bf16 %v3861, %v3857
        %v3906 = vpack.c.bf16 %v3862, %v3858
        %v3907 = vpack.c.bf16 %v3867, %v3863
        %v3908 = vpack.c.bf16 %v3868, %v3864
        %v3909 = vpack.c.bf16 %v3869, %v3865
        %v3910 = vpack.c.bf16 %v3870, %v3866
        %v3911 = vpack.c.bf16 %v3875, %v3871
        %v3912 = vpack.c.bf16 %v3876, %v3872
        %v3913 = vpack.c.bf16 %v3877, %v3873
        %v3914 = vpack.c.bf16 %v3878, %v3874
        %v3915 = vpack.c.bf16 %v3883, %v3879
        %v3916 = vpack.c.bf16 %v3884, %v3880
        %v3917 = vpack.c.bf16 %v3885, %v3881
        %v3918 = vpack.c.bf16 %v3886, %v3882
        %v3919 = vld [vmem:[#allocation8] sm:$0xff]
        %v3920 = vld [vmem:[#allocation8 + $0x8] sm:$0xff]
        %v3921 = vld [vmem:[#allocation8 + $0x10] sm:$0xff]
        %v3922 = vld [vmem:[#allocation8 + $0x18] sm:$0xff]
        %v3923 = vld [vmem:[#allocation8 + $0x20] sm:$0xff]
        %v3924 = vld [vmem:[#allocation8 + $0x28] sm:$0xff]
        %v3925 = vld [vmem:[#allocation8 + $0x30] sm:$0xff]
        %v3926 = vld [vmem:[#allocation8 + $0x38] sm:$0xff]
        %v3927 = vld [vmem:[#allocation8 + $0x40] sm:$0xff]
        %v3928 = vld [vmem:[#allocation8 + $0x48] sm:$0xff]
        %v3929 = vld [vmem:[#allocation8 + $0x50] sm:$0xff]
        %v3930 = vld [vmem:[#allocation8 + $0x58] sm:$0xff]
        %v3931 = vld [vmem:[#allocation8 + $0x60] sm:$0xff]
        %v3932 = vld [vmem:[#allocation8 + $0x68] sm:$0xff]
        %v3933 = vld [vmem:[#allocation8 + $0x70] sm:$0xff]
        %v3934 = vld [vmem:[#allocation8 + $0x78] sm:$0xff]
        %v3935 = vld [vmem:[#allocation8 + $0x80] sm:$0xff]
        %v3936 = vld [vmem:[#allocation8 + $0x88] sm:$0xff]
        %v3937 = vld [vmem:[#allocation8 + $0x90] sm:$0xff]
        %v3938 = vld [vmem:[#allocation8 + $0x98] sm:$0xff]
        %v3939 = vld [vmem:[#allocation8 + $0xa0] sm:$0xff]
        %v3940 = vld [vmem:[#allocation8 + $0xa8] sm:$0xff]
        %v3941 = vld [vmem:[#allocation8 + $0xb0] sm:$0xff]
        %v3942 = vld [vmem:[#allocation8 + $0xb8] sm:$0xff]
        %v3943 = vld [vmem:[#allocation8 + $0xc0] sm:$0xff]
        %v3944 = vld [vmem:[#allocation8 + $0xc8] sm:$0xff]
        %v3945 = vld [vmem:[#allocation8 + $0xd0] sm:$0xff]
        %v3946 = vld [vmem:[#allocation8 + $0xd8] sm:$0xff]
        %v3947 = vld [vmem:[#allocation8 + $0xe0] sm:$0xff]
        %v3948 = vld [vmem:[#allocation8 + $0xe8] sm:$0xff]
        %v3949 = vld [vmem:[#allocation8 + $0xf0] sm:$0xff]
        %v3950 = vld [vmem:[#allocation8 + $0xf8] sm:$0xff]
        %v3951 = vld [vmem:[#allocation8 + $0x100] sm:$0xff]
        %v3952 = vld [vmem:[#allocation8 + $0x108] sm:$0xff]
        %v3953 = vld [vmem:[#allocation8 + $0x110] sm:$0xff]
        %v3954 = vld [vmem:[#allocation8 + $0x118] sm:$0xff]
        %v3955 = vld [vmem:[#allocation8 + $0x120] sm:$0xff]
        %v3956 = vld [vmem:[#allocation8 + $0x128] sm:$0xff]
        %v3957 = vld [vmem:[#allocation8 + $0x130] sm:$0xff]
        %v3958 = vld [vmem:[#allocation8 + $0x138] sm:$0xff]
        %v3959 = vld [vmem:[#allocation8 + $0x140] sm:$0xff]
        %v3960 = vld [vmem:[#allocation8 + $0x148] sm:$0xff]
        %v3961 = vld [vmem:[#allocation8 + $0x150] sm:$0xff]
        %v3962 = vld [vmem:[#allocation8 + $0x158] sm:$0xff]
        %v3963 = vld [vmem:[#allocation8 + $0x160] sm:$0xff]
        %v3964 = vld [vmem:[#allocation8 + $0x168] sm:$0xff]
        %v3965 = vld [vmem:[#allocation8 + $0x170] sm:$0xff]
        %v3966 = vld [vmem:[#allocation8 + $0x178] sm:$0xff]
        %v3967 = vld [vmem:[#allocation8 + $0x180] sm:$0xff]
        %v3968 = vld [vmem:[#allocation8 + $0x188] sm:$0xff]
        %v3969 = vld [vmem:[#allocation8 + $0x190] sm:$0xff]
        %v3970 = vld [vmem:[#allocation8 + $0x198] sm:$0xff]
        %v3971 = vld [vmem:[#allocation8 + $0x1a0] sm:$0xff]
        %v3972 = vld [vmem:[#allocation8 + $0x1a8] sm:$0xff]
        %v3973 = vld [vmem:[#allocation8 + $0x1b0] sm:$0xff]
        %v3974 = vld [vmem:[#allocation8 + $0x1b8] sm:$0xff]
        %v3975 = vld [vmem:[#allocation8 + $0x1c0] sm:$0xff]
        %v3976 = vld [vmem:[#allocation8 + $0x1c8] sm:$0xff]
        %v3977 = vld [vmem:[#allocation8 + $0x1d0] sm:$0xff]
        %v3978 = vld [vmem:[#allocation8 + $0x1d8] sm:$0xff]
        %v3979 = vld [vmem:[#allocation8 + $0x1e0] sm:$0xff]
        %v3980 = vld [vmem:[#allocation8 + $0x1e8] sm:$0xff]
        %v3981 = vld [vmem:[#allocation8 + $0x1f0] sm:$0xff]
        %v3982 = vld [vmem:[#allocation8 + $0x1f8] sm:$0xff]
        %v3983 = vld [vmem:[#allocation9] sm:$0x3]
        %v3985 = vlaneseq
        %v3986 = vshrl.u32 %v3985, 7
        %v3987 = vsub.s32 0, %v3986
        %v3988 = vrot.slane %v3983, %v3987
        %v3989 = vlaneseq
        %v3990 = vshrl.u32 %v3989, 7
        %v3991 = vsub.s32 1, %v3990
        %v3992 = vrot.slane %v3983, %v3991
        %v4059 = vunpack.c.l.b16 %v3919
        %v4060 = vunpack.c.h.b16 %v3919
        %v4061 = vunpack.c.l.b16 %v3920
        %v4062 = vunpack.c.h.b16 %v3920
        %v4063 = vunpack.c.l.b16 %v3921
        %v4064 = vunpack.c.h.b16 %v3921
        %v4065 = vunpack.c.l.b16 %v3922
        %v4066 = vunpack.c.h.b16 %v3922
        %v4067 = vunpack.c.l.b16 %v3923
        %v4068 = vunpack.c.h.b16 %v3923
        %v4069 = vunpack.c.l.b16 %v3924
        %v4070 = vunpack.c.h.b16 %v3924
        %v4071 = vunpack.c.l.b16 %v3925
        %v4072 = vunpack.c.h.b16 %v3925
        %v4073 = vunpack.c.l.b16 %v3926
        %v4074 = vunpack.c.h.b16 %v3926
        %v4075 = vunpack.c.l.b16 %v3927
        %v4076 = vunpack.c.h.b16 %v3927
        %v4077 = vunpack.c.l.b16 %v3928
        %v4078 = vunpack.c.h.b16 %v3928
        %v4079 = vunpack.c.l.b16 %v3929
        %v4080 = vunpack.c.h.b16 %v3929
        %v4081 = vunpack.c.l.b16 %v3930
        %v4082 = vunpack.c.h.b16 %v3930
        %v4083 = vunpack.c.l.b16 %v3931
        %v4084 = vunpack.c.h.b16 %v3931
        %v4085 = vunpack.c.l.b16 %v3932
        %v4086 = vunpack.c.h.b16 %v3932
        %v4087 = vunpack.c.l.b16 %v3933
        %v4088 = vunpack.c.h.b16 %v3933
        %v4089 = vunpack.c.l.b16 %v3934
        %v4090 = vunpack.c.h.b16 %v3934
        %v4091 = vunpack.c.l.b16 %v3935
        %v4092 = vunpack.c.h.b16 %v3935
        %v4093 = vunpack.c.l.b16 %v3936
        %v4094 = vunpack.c.h.b16 %v3936
        %v4095 = vunpack.c.l.b16 %v3937
        %v4096 = vunpack.c.h.b16 %v3937
        %v4097 = vunpack.c.l.b16 %v3938
        %v4098 = vunpack.c.h.b16 %v3938
        %v4099 = vunpack.c.l.b16 %v3939
        %v4100 = vunpack.c.h.b16 %v3939
        %v4101 = vunpack.c.l.b16 %v3940
        %v4102 = vunpack.c.h.b16 %v3940
        %v4103 = vunpack.c.l.b16 %v3941
        %v4104 = vunpack.c.h.b16 %v3941
        %v4105 = vunpack.c.l.b16 %v3942
        %v4106 = vunpack.c.h.b16 %v3942
        %v4107 = vunpack.c.l.b16 %v3943
        %v4108 = vunpack.c.h.b16 %v3943
        %v4109 = vunpack.c.l.b16 %v3944
        %v4110 = vunpack.c.h.b16 %v3944
        %v4111 = vunpack.c.l.b16 %v3945
        %v4112 = vunpack.c.h.b16 %v3945
        %v4113 = vunpack.c.l.b16 %v3946
        %v4114 = vunpack.c.h.b16 %v3946
        %v4115 = vunpack.c.l.b16 %v3947
        %v4116 = vunpack.c.h.b16 %v3947
        %v4117 = vunpack.c.l.b16 %v3948
        %v4118 = vunpack.c.h.b16 %v3948
        %v4119 = vunpack.c.l.b16 %v3949
        %v4120 = vunpack.c.h.b16 %v3949
        %v4121 = vunpack.c.l.b16 %v3950
        %v4122 = vunpack.c.h.b16 %v3950
        %v4123 = vunpack.c.l.b16 %v3951
        %v4124 = vunpack.c.h.b16 %v3951
        %v4125 = vunpack.c.l.b16 %v3952
        %v4126 = vunpack.c.h.b16 %v3952
        %v4127 = vunpack.c.l.b16 %v3953
        %v4128 = vunpack.c.h.b16 %v3953
        %v4129 = vunpack.c.l.b16 %v3954
        %v4130 = vunpack.c.h.b16 %v3954
        %v4131 = vunpack.c.l.b16 %v3955
        %v4132 = vunpack.c.h.b16 %v3955
        %v4133 = vunpack.c.l.b16 %v3956
        %v4134 = vunpack.c.h.b16 %v3956
        %v4135 = vunpack.c.l.b16 %v3957
        %v4136 = vunpack.c.h.b16 %v3957
        %v4137 = vunpack.c.l.b16 %v3958
        %v4138 = vunpack.c.h.b16 %v3958
        %v4139 = vunpack.c.l.b16 %v3959
        %v4140 = vunpack.c.h.b16 %v3959
        %v4141 = vunpack.c.l.b16 %v3960
        %v4142 = vunpack.c.h.b16 %v3960
        %v4143 = vunpack.c.l.b16 %v3961
        %v4144 = vunpack.c.h.b16 %v3961
        %v4145 = vunpack.c.l.b16 %v3962
        %v4146 = vunpack.c.h.b16 %v3962
        %v4147 = vunpack.c.l.b16 %v3963
        %v4148 = vunpack.c.h.b16 %v3963
        %v4149 = vunpack.c.l.b16 %v3964
        %v4150 = vunpack.c.h.b16 %v3964
        %v4151 = vunpack.c.l.b16 %v3965
        %v4152 = vunpack.c.h.b16 %v3965
        %v4153 = vunpack.c.l.b16 %v3966
        %v4154 = vunpack.c.h.b16 %v3966
        %v4155 = vunpack.c.l.b16 %v3967
        %v4156 = vunpack.c.h.b16 %v3967
        %v4157 = vunpack.c.l.b16 %v3968
        %v4158 = vunpack.c.h.b16 %v3968
        %v4159 = vunpack.c.l.b16 %v3969
        %v4160 = vunpack.c.h.b16 %v3969
        %v4161 = vunpack.c.l.b16 %v3970
        %v4162 = vunpack.c.h.b16 %v3970
        %v4163 = vunpack.c.l.b16 %v3971
        %v4164 = vunpack.c.h.b16 %v3971
        %v4165 = vunpack.c.l.b16 %v3972
        %v4166 = vunpack.c.h.b16 %v3972
        %v4167 = vunpack.c.l.b16 %v3973
        %v4168 = vunpack.c.h.b16 %v3973
        %v4169 = vunpack.c.l.b16 %v3974
        %v4170 = vunpack.c.h.b16 %v3974
        %v4171 = vunpack.c.l.b16 %v3975
        %v4172 = vunpack.c.h.b16 %v3975
        %v4173 = vunpack.c.l.b16 %v3976
        %v4174 = vunpack.c.h.b16 %v3976
        %v4175 = vunpack.c.l.b16 %v3977
        %v4176 = vunpack.c.h.b16 %v3977
        %v4177 = vunpack.c.l.b16 %v3978
        %v4178 = vunpack.c.h.b16 %v3978
        %v4179 = vunpack.c.l.b16 %v3979
        %v4180 = vunpack.c.h.b16 %v3979
        %v4181 = vunpack.c.l.b16 %v3980
        %v4182 = vunpack.c.h.b16 %v3980
        %v4183 = vunpack.c.l.b16 %v3981
        %v4184 = vunpack.c.h.b16 %v3981
        %v4185 = vunpack.c.l.b16 %v3982
        %v4186 = vunpack.c.h.b16 %v3982
        %v4187 = vpack.c.b16 %v4061, %v4059
        %v4188 = vpack.c.b16 %v4062, %v4060
        %v4189 = vpack.c.b16 %v4065, %v4063
        %v4190 = vpack.c.b16 %v4066, %v4064
        %v4191 = vpack.c.b16 %v4069, %v4067
        %v4192 = vpack.c.b16 %v4070, %v4068
        %v4193 = vpack.c.b16 %v4073, %v4071
        %v4194 = vpack.c.b16 %v4074, %v4072
        %v4195 = vpack.c.b16 %v4077, %v4075
        %v4196 = vpack.c.b16 %v4078, %v4076
        %v4197 = vpack.c.b16 %v4081, %v4079
        %v4198 = vpack.c.b16 %v4082, %v4080
        %v4199 = vpack.c.b16 %v4085, %v4083
        %v4200 = vpack.c.b16 %v4086, %v4084
        %v4201 = vpack.c.b16 %v4089, %v4087
        %v4202 = vpack.c.b16 %v4090, %v4088
        %v4203 = vpack.c.b16 %v4093, %v4091
        %v4204 = vpack.c.b16 %v4094, %v4092
        %v4205 = vpack.c.b16 %v4097, %v4095
        %v4206 = vpack.c.b16 %v4098, %v4096
        %v4207 = vpack.c.b16 %v4101, %v4099
        %v4208 = vpack.c.b16 %v4102, %v4100
        %v4209 = vpack.c.b16 %v4105, %v4103
        %v4210 = vpack.c.b16 %v4106, %v4104
        %v4211 = vpack.c.b16 %v4109, %v4107
        %v4212 = vpack.c.b16 %v4110, %v4108
        %v4213 = vpack.c.b16 %v4113, %v4111
        %v4214 = vpack.c.b16 %v4114, %v4112
        %v4215 = vpack.c.b16 %v4117, %v4115
        %v4216 = vpack.c.b16 %v4118, %v4116
        %v4217 = vpack.c.b16 %v4121, %v4119
        %v4218 = vpack.c.b16 %v4122, %v4120
        %v4219 = vpack.c.b16 %v4125, %v4123
        %v4220 = vpack.c.b16 %v4126, %v4124
        %v4221 = vpack.c.b16 %v4129, %v4127
        %v4222 = vpack.c.b16 %v4130, %v4128
        %v4223 = vpack.c.b16 %v4133, %v4131
        %v4224 = vpack.c.b16 %v4134, %v4132
        %v4225 = vpack.c.b16 %v4137, %v4135
        %v4226 = vpack.c.b16 %v4138, %v4136
        %v4227 = vpack.c.b16 %v4141, %v4139
        %v4228 = vpack.c.b16 %v4142, %v4140
        %v4229 = vpack.c.b16 %v4145, %v4143
        %v4230 = vpack.c.b16 %v4146, %v4144
        %v4231 = vpack.c.b16 %v4149, %v4147
        %v4232 = vpack.c.b16 %v4150, %v4148
        %v4233 = vpack.c.b16 %v4153, %v4151
        %v4234 = vpack.c.b16 %v4154, %v4152
        %v4235 = vpack.c.b16 %v4157, %v4155
        %v4236 = vpack.c.b16 %v4158, %v4156
        %v4237 = vpack.c.b16 %v4161, %v4159
        %v4238 = vpack.c.b16 %v4162, %v4160
        %v4239 = vpack.c.b16 %v4165, %v4163
        %v4240 = vpack.c.b16 %v4166, %v4164
        %v4241 = vpack.c.b16 %v4169, %v4167
        %v4242 = vpack.c.b16 %v4170, %v4168
        %v4243 = vpack.c.b16 %v4173, %v4171
        %v4244 = vpack.c.b16 %v4174, %v4172
        %v4245 = vpack.c.b16 %v4177, %v4175
        %v4246 = vpack.c.b16 %v4178, %v4176
        %v4247 = vpack.c.b16 %v4181, %v4179
        %v4248 = vpack.c.b16 %v4182, %v4180
        %v4249 = vpack.c.b16 %v4185, %v4183
        %v4250 = vpack.c.b16 %v4186, %v4184
        %4315 = vmatprep.subr.bf16.mxu0 %v4188
        %4316 = vmatpush1.bf16.msra.mxu0 %v4187
        %4317 = vmatprep.subr.bf16.mxu0 %v4190
        %4318 = vmatpush1.bf16.msra.mxu0 %v4189
        %4319 = vmatprep.subr.bf16.mxu0 %v4192
        %4320 = vmatpush1.bf16.msra.mxu0 %v4191
        %4321 = vmatprep.subr.bf16.mxu0 %v4194
        %4322 = vmatpush1.bf16.msra.mxu0 %v4193
        %4323 = vmatprep.subr.bf16.mxu0 %v4196
        %4324 = vmatpush1.bf16.msra.mxu0 %v4195
        %4325 = vmatprep.subr.bf16.mxu0 %v4198
        %4326 = vmatpush1.bf16.msra.mxu0 %v4197
        %4327 = vmatprep.subr.bf16.mxu0 %v4200
        %4328 = vmatpush1.bf16.msra.mxu0 %v4199
        %4329 = vmatprep.subr.bf16.mxu0 %v4202
        %4330 = vmatpush1.bf16.msra.mxu0 %v4201
        %4331 = vmatprep.subr.bf16.mxu0 %v4204
        %4332 = vmatpush1.bf16.msra.mxu0 %v4203
        %4333 = vmatprep.subr.bf16.mxu0 %v4206
        %4334 = vmatpush1.bf16.msra.mxu0 %v4205
        %4335 = vmatprep.subr.bf16.mxu0 %v4208
        %4336 = vmatpush1.bf16.msra.mxu0 %v4207
        %4337 = vmatprep.subr.bf16.mxu0 %v4210
        %4338 = vmatpush1.bf16.msra.mxu0 %v4209
        %4339 = vmatprep.subr.bf16.mxu0 %v4212
        %4340 = vmatpush1.bf16.msra.mxu0 %v4211
        %4341 = vmatprep.subr.bf16.mxu0 %v4214
        %4342 = vmatpush1.bf16.msra.mxu0 %v4213
        %4343 = vmatprep.subr.bf16.mxu0 %v4216
        %4344 = vmatpush1.bf16.msra.mxu0 %v4215
        %4345 = vmatprep.subr.bf16.mxu0 %v4218
        %4346 = vmatpush1.bf16.msra.mxu0 %v4217
        %4347 = vmatprep.mubr.bf16.mxu0 %v3888
        %4348 = vmatmul.mubr.bf16.gmra.mrb[0].mxu0 %v3887
        %v4349 = vpop.f32.mrb[0].mxu0
        %v4350 = vadd.f32 %v3988, %v4349
        %v4351 = vpop.f32.mrb[0].mxu0
        %v4352 = vadd.f32 %v3992, %v4351
        %v4353 = vpop.f32.mrb[0].mxu0
        %v4354 = vadd.f32 %v3988, %v4353
        %v4355 = vpop.f32.mrb[0].mxu0
        %v4356 = vadd.f32 %v3992, %v4355
        %4357 = vmatprep.mubr.bf16.mxu0 %v3892
        %4358 = vmatmul.mubr.bf16.gmra.mrb[0].mxu0 %v3891
        %v4359 = vpop.f32.mrb[0].mxu0
        %v4360 = vadd.f32 %v3988, %v4359
        %v4361 = vpop.f32.mrb[0].mxu0
        %v4362 = vadd.f32 %v3992, %v4361
        %v4363 = vpop.f32.mrb[0].mxu0
        %v4364 = vadd.f32 %v3988, %v4363
        %v4365 = vpop.f32.mrb[0].mxu0
        %v4366 = vadd.f32 %v3992, %v4365
        %4367 = vmatprep.mubr.bf16.mxu0 %v3896
        %4368 = vmatmul.mubr.bf16.gmra.mrb[0].mxu0 %v3895
        %v4369 = vpop.f32.mrb[0].mxu0
        %v4370 = vadd.f32 %v3988, %v4369
        %v4371 = vpop.f32.mrb[0].mxu0
        %v4372 = vadd.f32 %v3992, %v4371
        %v4373 = vpop.f32.mrb[0].mxu0
        %v4374 = vadd.f32 %v3988, %v4373
        %v4375 = vpop.f32.mrb[0].mxu0
        %v4376 = vadd.f32 %v3992, %v4375
        %4377 = vmatprep.mubr.bf16.mxu0 %v3900
        %4378 = vmatmul.mubr.bf16.gmra.mrb[0].mxu0 %v3899
        %v4379 = vpop.f32.mrb[0].mxu0
        %v4380 = vadd.f32 %v3988, %v4379
        %v4381 = vpop.f32.mrb[0].mxu0
        %v4382 = vadd.f32 %v3992, %v4381
        %v4383 = vpop.f32.mrb[0].mxu0
        %v4384 = vadd.f32 %v3988, %v4383
        %v4385 = vpop.f32.mrb[0].mxu0
        %v4386 = vadd.f32 %v3992, %v4385
        %4387 = vmatprep.mubr.bf16.mxu0 %v3904
        %4388 = vmatmul.mubr.bf16.gmra.mrb[0].mxu0 %v3903
        %v4389 = vpop.f32.mrb[0].mxu0
        %v4390 = vadd.f32 %v3988, %v4389
        %v4391 = vpop.f32.mrb[0].mxu0
        %v4392 = vadd.f32 %v3992, %v4391
        %v4393 = vpop.f32.mrb[0].mxu0
        %v4394 = vadd.f32 %v3988, %v4393
        %v4395 = vpop.f32.mrb[0].mxu0
        %v4396 = vadd.f32 %v3992, %v4395
        %4397 = vmatprep.mubr.bf16.mxu0 %v3908
        %4398 = vmatmul.mubr.bf16.gmra.mrb[0].mxu0 %v3907
        %v4399 = vpop.f32.mrb[0].mxu0
        %v4400 = vadd.f32 %v3988, %v4399
        %v4401 = vpop.f32.mrb[0].mxu0
        %v4402 = vadd.f32 %v3992, %v4401
        %v4403 = vpop.f32.mrb[0].mxu0
        %v4404 = vadd.f32 %v3988, %v4403
        %v4405 = vpop.f32.mrb[0].mxu0
        %v4406 = vadd.f32 %v3992, %v4405
        %4407 = vmatprep.mubr.bf16.mxu0 %v3912
        %4408 = vmatmul.mubr.bf16.gmra.mrb[0].mxu0 %v3911
        %v4409 = vpop.f32.mrb[0].mxu0
        %v4410 = vadd.f32 %v3988, %v4409
        %v4411 = vpop.f32.mrb[0].mxu0
        %v4412 = vadd.f32 %v3992, %v4411
        %v4413 = vpop.f32.mrb[0].mxu0
        %v4414 = vadd.f32 %v3988, %v4413
        %v4415 = vpop.f32.mrb[0].mxu0
        %v4416 = vadd.f32 %v3992, %v4415
        %4417 = vmatprep.mubr.bf16.mxu0 %v3916
        %4418 = vmatmul.mubr.bf16.gmra.mrb[0].mxu0 %v3915
        %v4419 = vpop.f32.mrb[0].mxu0
        %v4420 = vadd.f32 %v3988, %v4419
        %v4421 = vpop.f32.mrb[0].mxu0
        %v4422 = vadd.f32 %v3992, %v4421
        %v4423 = vpop.f32.mrb[0].mxu0
        %v4424 = vadd.f32 %v3988, %v4423
        %v4425 = vpop.f32.mrb[0].mxu0
        %v4426 = vadd.f32 %v3992, %v4425
        %4427 = vdwg.mxu0
        %4428 = vmatprep.subr.bf16.mxu0 %v4220
        %4429 = vmatpush1.bf16.msra.mxu0 %v4219
        %4430 = vmatprep.subr.bf16.mxu0 %v4222
        %4431 = vmatpush1.bf16.msra.mxu0 %v4221
        %4432 = vmatprep.subr.bf16.mxu0 %v4224
        %4433 = vmatpush1.bf16.msra.mxu0 %v4223
        %4434 = vmatprep.subr.bf16.mxu0 %v4226
        %4435 = vmatpush1.bf16.msra.mxu0 %v4225
        %4436 = vmatprep.subr.bf16.mxu0 %v4228
        %4437 = vmatpush1.bf16.msra.mxu0 %v4227
        %4438 = vmatprep.subr.bf16.mxu0 %v4230
        %4439 = vmatpush1.bf16.msra.mxu0 %v4229
        %4440 = vmatprep.subr.bf16.mxu0 %v4232
        %4441 = vmatpush1.bf16.msra.mxu0 %v4231
        %4442 = vmatprep.subr.bf16.mxu0 %v4234
        %4443 = vmatpush1.bf16.msra.mxu0 %v4233
        %4444 = vmatprep.subr.bf16.mxu0 %v4236
        %4445 = vmatpush1.bf16.msra.mxu0 %v4235
        %4446 = vmatprep.subr.bf16.mxu0 %v4238
        %4447 = vmatpush1.bf16.msra.mxu0 %v4237
        %4448 = vmatprep.subr.bf16.mxu0 %v4240
        %4449 = vmatpush1.bf16.msra.mxu0 %v4239
        %4450 = vmatprep.subr.bf16.mxu0 %v4242
        %4451 = vmatpush1.bf16.msra.mxu0 %v4241
        %4452 = vmatprep.subr.bf16.mxu0 %v4244
        %4453 = vmatpush1.bf16.msra.mxu0 %v4243
        %4454 = vmatprep.subr.bf16.mxu0 %v4246
        %4455 = vmatpush1.bf16.msra.mxu0 %v4245
        %4456 = vmatprep.subr.bf16.mxu0 %v4248
        %4457 = vmatpush1.bf16.msra.mxu0 %v4247
        %4458 = vmatprep.subr.bf16.mxu0 %v4250
        %4459 = vmatpush1.bf16.msra.mxu0 %v4249
        %4460 = vmatprep.mubr.bf16.mxu0 %v3890
        %4461 = vmatmul.mubr.bf16.gmra.mrb[0].mxu0 %v3889
        %v4462 = vpop.f32.mrb[0].mxu0
        %v4463 = vadd.f32 %v4350, %v4462
        %v4464 = vpop.f32.mrb[0].mxu0
        %v4465 = vadd.f32 %v4352, %v4464
        %v4466 = vpop.f32.mrb[0].mxu0
        %v4467 = vadd.f32 %v4354, %v4466
        %v4468 = vpop.f32.mrb[0].mxu0
        %v4469 = vadd.f32 %v4356, %v4468
        %4470 = vmatprep.mubr.bf16.mxu0 %v3894
        %4471 = vmatmul.mubr.bf16.gmra.mrb[0].mxu0 %v3893
        %v4472 = vpop.f32.mrb[0].mxu0
        %v4473 = vadd.f32 %v4360, %v4472
        %v4474 = vpop.f32.mrb[0].mxu0
        %v4475 = vadd.f32 %v4362, %v4474
        %v4476 = vpop.f32.mrb[0].mxu0
        %v4477 = vadd.f32 %v4364, %v4476
        %v4478 = vpop.f32.mrb[0].mxu0
        %v4479 = vadd.f32 %v4366, %v4478
        %4480 = vmatprep.mubr.bf16.mxu0 %v3898
        %4481 = vmatmul.mubr.bf16.gmra.mrb[0].mxu0 %v3897
        %v4482 = vpop.f32.mrb[0].mxu0
        %v4483 = vadd.f32 %v4370, %v4482
        %v4484 = vpop.f32.mrb[0].mxu0
        %v4485 = vadd.f32 %v4372, %v4484
        %v4486 = vpop.f32.mrb[0].mxu0
        %v4487 = vadd.f32 %v4374, %v4486
        %v4488 = vpop.f32.mrb[0].mxu0
        %v4489 = vadd.f32 %v4376, %v4488
        %4490 = vmatprep.mubr.bf16.mxu0 %v3902
        %4491 = vmatmul.mubr.bf16.gmra.mrb[0].mxu0 %v3901
        %v4492 = vpop.f32.mrb[0].mxu0
        %v4493 = vadd.f32 %v4380, %v4492
        %v4494 = vpop.f32.mrb[0].mxu0
        %v4495 = vadd.f32 %v4382, %v4494
        %v4496 = vpop.f32.mrb[0].mxu0
        %v4497 = vadd.f32 %v4384, %v4496
        %v4498 = vpop.f32.mrb[0].mxu0
        %v4499 = vadd.f32 %v4386, %v4498
        %4500 = vmatprep.mubr.bf16.mxu0 %v3906
        %4501 = vmatmul.mubr.bf16.gmra.mrb[0].mxu0 %v3905
        %v4502 = vpop.f32.mrb[0].mxu0
        %v4503 = vadd.f32 %v4390, %v4502
        %v4504 = vpop.f32.mrb[0].mxu0
        %v4505 = vadd.f32 %v4392, %v4504
        %v4506 = vpop.f32.mrb[0].mxu0
        %v4507 = vadd.f32 %v4394, %v4506
        %v4508 = vpop.f32.mrb[0].mxu0
        %v4509 = vadd.f32 %v4396, %v4508
        %4510 = vmatprep.mubr.bf16.mxu0 %v3910
        %4511 = vmatmul.mubr.bf16.gmra.mrb[0].mxu0 %v3909
        %v4512 = vpop.f32.mrb[0].mxu0
        %v4513 = vadd.f32 %v4400, %v4512
        %v4514 = vpop.f32.mrb[0].mxu0
        %v4515 = vadd.f32 %v4402, %v4514
        %v4516 = vpop.f32.mrb[0].mxu0
        %v4517 = vadd.f32 %v4404, %v4516
        %v4518 = vpop.f32.mrb[0].mxu0
        %v4519 = vadd.f32 %v4406, %v4518
        %4520 = vmatprep.mubr.bf16.mxu0 %v3914
        %4521 = vmatmul.mubr.bf16.gmra.mrb[0].mxu0 %v3913
        %v4522 = vpop.f32.mrb[0].mxu0
        %v4523 = vadd.f32 %v4410, %v4522
        %v4524 = vpop.f32.mrb[0].mxu0
        %v4525 = vadd.f32 %v4412, %v4524
        %v4526 = vpop.f32.mrb[0].mxu0
        %v4527 = vadd.f32 %v4414, %v4526
        %v4528 = vpop.f32.mrb[0].mxu0
        %v4529 = vadd.f32 %v4416, %v4528
        %4530 = vmatprep.mubr.bf16.mxu0 %v3918
        %4531 = vmatmul.mubr.bf16.gmra.mrb[0].mxu0 %v3917
        %v4532 = vpop.f32.mrb[0].mxu0
        %v4533 = vadd.f32 %v4420, %v4532
        %v4534 = vpop.f32.mrb[0].mxu0
        %v4535 = vadd.f32 %v4422, %v4534
        %v4536 = vpop.f32.mrb[0].mxu0
        %v4537 = vadd.f32 %v4424, %v4536
        %v4538 = vpop.f32.mrb[0].mxu0
        %v4539 = vadd.f32 %v4426, %v4538
        %4540 = vdwg.mxu0
        %v4541 = vmax.f32 %v4463, 0.0
        %v4542 = vmax.f32 %v4465, 0.0
        %v4543 = vmax.f32 %v4467, 0.0
        %v4544 = vmax.f32 %v4469, 0.0
        %v4545 = vmax.f32 %v4473, 0.0
        %v4546 = vmax.f32 %v4475, 0.0
        %v4547 = vmax.f32 %v4477, 0.0
        %v4548 = vmax.f32 %v4479, 0.0
        %v4549 = vmax.f32 %v4483, 0.0
        %v4550 = vmax.f32 %v4485, 0.0
        %v4551 = vmax.f32 %v4487, 0.0
        %v4552 = vmax.f32 %v4489, 0.0
        %v4553 = vmax.f32 %v4493, 0.0
        %v4554 = vmax.f32 %v4495, 0.0
        %v4555 = vmax.f32 %v4497, 0.0
        %v4556 = vmax.f32 %v4499, 0.0
        %v4557 = vmax.f32 %v4503, 0.0
        %v4558 = vmax.f32 %v4505, 0.0
        %v4559 = vmax.f32 %v4507, 0.0
        %v4560 = vmax.f32 %v4509, 0.0
        %v4561 = vmax.f32 %v4513, 0.0
        %v4562 = vmax.f32 %v4515, 0.0
        %v4563 = vmax.f32 %v4517, 0.0
        %v4564 = vmax.f32 %v4519, 0.0
        %v4565 = vmax.f32 %v4523, 0.0
        %v4566 = vmax.f32 %v4525, 0.0
        %v4567 = vmax.f32 %v4527, 0.0
        %v4568 = vmax.f32 %v4529, 0.0
        %v4569 = vmax.f32 %v4533, 0.0
        %v4570 = vmax.f32 %v4535, 0.0
        %v4571 = vmax.f32 %v4537, 0.0
        %v4572 = vmax.f32 %v4539, 0.0
        %v4573 = vpack.c.bf16 %v4543, %v4541
        %v4574 = vpack.c.bf16 %v4544, %v4542
        %v4575 = vpack.c.bf16 %v4547, %v4545
        %v4576 = vpack.c.bf16 %v4548, %v4546
        %v4577 = vpack.c.bf16 %v4551, %v4549
        %v4578 = vpack.c.bf16 %v4552, %v4550
        %v4579 = vpack.c.bf16 %v4555, %v4553
        %v4580 = vpack.c.bf16 %v4556, %v4554
        %v4581 = vpack.c.bf16 %v4559, %v4557
        %v4582 = vpack.c.bf16 %v4560, %v4558
        %v4583 = vpack.c.bf16 %v4563, %v4561
        %v4584 = vpack.c.bf16 %v4564, %v4562
        %v4585 = vpack.c.bf16 %v4567, %v4565
        %v4586 = vpack.c.bf16 %v4568, %v4566
        %v4587 = vpack.c.bf16 %v4571, %v4569
        %v4588 = vpack.c.bf16 %v4572, %v4570
        %v4589 = vld [vmem:[%s7] sm:$0xf]
        %v4590 = vld [vmem:[%s7 + $0x4] sm:$0xf]
        %v4591 = vld [vmem:[%s7 + $0x8] sm:$0xf]
        %v4592 = vld [vmem:[%s7 + $0xc] sm:$0xf]
        %v4593 = vld [vmem:[%s7 + $0x10] sm:$0xf]
        %v4594 = vld [vmem:[%s7 + $0x14] sm:$0xf]
        %v4595 = vld [vmem:[%s7 + $0x18] sm:$0xf]
        %v4596 = vld [vmem:[%s7 + $0x1c] sm:$0xf]
        %v4597 = vld [vmem:[%s7 + $0x20] sm:$0xf]
        %v4598 = vld [vmem:[%s7 + $0x24] sm:$0xf]
        %v4599 = vld [vmem:[%s7 + $0x28] sm:$0xf]
        %v4600 = vld [vmem:[%s7 + $0x2c] sm:$0xf]
        %v4601 = vld [vmem:[%s7 + $0x30] sm:$0xf]
        %v4602 = vld [vmem:[%s7 + $0x34] sm:$0xf]
        %v4603 = vld [vmem:[%s7 + $0x38] sm:$0xf]
        %v4604 = vld [vmem:[%s7 + $0x3c] sm:$0xf]
        %v4605 = vld [vmem:[%s7 + $0x40] sm:$0xf]
        %v4606 = vld [vmem:[%s7 + $0x44] sm:$0xf]
        %v4607 = vld [vmem:[%s7 + $0x48] sm:$0xf]
        %v4608 = vld [vmem:[%s7 + $0x4c] sm:$0xf]
        %v4609 = vld [vmem:[%s7 + $0x50] sm:$0xf]
        %v4610 = vld [vmem:[%s7 + $0x54] sm:$0xf]
        %v4611 = vld [vmem:[%s7 + $0x58] sm:$0xf]
        %v4612 = vld [vmem:[%s7 + $0x5c] sm:$0xf]
        %v4613 = vld [vmem:[%s7 + $0x60] sm:$0xf]
        %v4614 = vld [vmem:[%s7 + $0x64] sm:$0xf]
        %v4615 = vld [vmem:[%s7 + $0x68] sm:$0xf]
        %v4616 = vld [vmem:[%s7 + $0x6c] sm:$0xf]
        %v4617 = vld [vmem:[%s7 + $0x70] sm:$0xf]
        %v4618 = vld [vmem:[%s7 + $0x74] sm:$0xf]
        %v4619 = vld [vmem:[%s7 + $0x78] sm:$0xf]
        %v4620 = vld [vmem:[%s7 + $0x7c] sm:$0xf]
        %v4621 = vld [vmem:[%s8] sm:$0x1]
        %v4623 = vlaneseq
        %v4624 = vshrl.u32 %v4623, 7
        %v4625 = vsub.s32 0, %v4624
        %v4626 = vrot.slane %v4621, %v4625
        %v4660 = vunpack.c.l.b16 %v4589
        %v4661 = vunpack.c.l.b16 %v4590
        %v4662 = vunpack.c.l.b16 %v4591
        %v4663 = vunpack.c.l.b16 %v4592
        %v4664 = vunpack.c.l.b16 %v4593
        %v4665 = vunpack.c.l.b16 %v4594
        %v4666 = vunpack.c.l.b16 %v4595
        %v4667 = vunpack.c.l.b16 %v4596
        %v4668 = vunpack.c.l.b16 %v4597
        %v4669 = vunpack.c.l.b16 %v4598
        %v4670 = vunpack.c.l.b16 %v4599
        %v4671 = vunpack.c.l.b16 %v4600
        %v4672 = vunpack.c.l.b16 %v4601
        %v4673 = vunpack.c.l.b16 %v4602
        %v4674 = vunpack.c.l.b16 %v4603
        %v4675 = vunpack.c.l.b16 %v4604
        %v4676 = vunpack.c.l.b16 %v4605
        %v4677 = vunpack.c.l.b16 %v4606
        %v4678 = vunpack.c.l.b16 %v4607
        %v4679 = vunpack.c.l.b16 %v4608
        %v4680 = vunpack.c.l.b16 %v4609
        %v4681 = vunpack.c.l.b16 %v4610
        %v4682 = vunpack.c.l.b16 %v4611
        %v4683 = vunpack.c.l.b16 %v4612
        %v4684 = vunpack.c.l.b16 %v4613
        %v4685 = vunpack.c.l.b16 %v4614
        %v4686 = vunpack.c.l.b16 %v4615
        %v4687 = vunpack.c.l.b16 %v4616
        %v4688 = vunpack.c.l.b16 %v4617
        %v4689 = vunpack.c.l.b16 %v4618
        %v4690 = vunpack.c.l.b16 %v4619
        %v4691 = vunpack.c.l.b16 %v4620
        %v4692 = vpack.c.b16 %v4661, %v4660
        %v4693 = vpack.c.b16 %v4663, %v4662
        %v4694 = vpack.c.b16 %v4665, %v4664
        %v4695 = vpack.c.b16 %v4667, %v4666
        %v4696 = vpack.c.b16 %v4669, %v4668
        %v4697 = vpack.c.b16 %v4671, %v4670
        %v4698 = vpack.c.b16 %v4673, %v4672
        %v4699 = vpack.c.b16 %v4675, %v4674
        %v4700 = vpack.c.b16 %v4677, %v4676
        %v4701 = vpack.c.b16 %v4679, %v4678
        %v4702 = vpack.c.b16 %v4681, %v4680
        %v4703 = vpack.c.b16 %v4683, %v4682
        %v4704 = vpack.c.b16 %v4685, %v4684
        %v4705 = vpack.c.b16 %v4687, %v4686
        %v4706 = vpack.c.b16 %v4689, %v4688
        %v4707 = vpack.c.b16 %v4691, %v4690
        %4724 = vmatprep.subr.bf16.mxu0 0
        %4725 = vmatpush1.bf16.msra.mxu0 %v4692
        %4726 = vmatprep.subr.bf16.mxu0 0
        %4727 = vmatpush1.bf16.msra.mxu0 %v4693
        %4728 = vmatprep.subr.bf16.mxu0 0
        %4729 = vmatpush1.bf16.msra.mxu0 %v4694
        %4730 = vmatprep.subr.bf16.mxu0 0
        %4731 = vmatpush1.bf16.msra.mxu0 %v4695
        %4732 = vmatprep.subr.bf16.mxu0 0
        %4733 = vmatpush1.bf16.msra.mxu0 %v4696
        %4734 = vmatprep.subr.bf16.mxu0 0
        %4735 = vmatpush1.bf16.msra.mxu0 %v4697
        %4736 = vmatprep.subr.bf16.mxu0 0
        %4737 = vmatpush1.bf16.msra.mxu0 %v4698
        %4738 = vmatprep.subr.bf16.mxu0 0
        %4739 = vmatpush1.bf16.msra.mxu0 %v4699
        %4740 = vmatprep.subr.bf16.mxu0 0
        %4741 = vmatpush1.bf16.msra.mxu0 %v4700
        %4742 = vmatprep.subr.bf16.mxu0 0
        %4743 = vmatpush1.bf16.msra.mxu0 %v4701
        %4744 = vmatprep.subr.bf16.mxu0 0
        %4745 = vmatpush1.bf16.msra.mxu0 %v4702
        %4746 = vmatprep.subr.bf16.mxu0 0
        %4747 = vmatpush1.bf16.msra.mxu0 %v4703
        %4748 = vmatprep.subr.bf16.mxu0 0
        %4749 = vmatpush1.bf16.msra.mxu0 %v4704
        %4750 = vmatprep.subr.bf16.mxu0 0
        %4751 = vmatpush1.bf16.msra.mxu0 %v4705
        %4752 = vmatprep.subr.bf16.mxu0 0
        %4753 = vmatpush1.bf16.msra.mxu0 %v4706
        %4754 = vmatprep.subr.bf16.mxu0 0
        %4755 = vmatpush1.bf16.msra.mxu0 %v4707
        %4756 = vmatprep.mubr.bf16.mxu0 %v4574
        %4757 = vmatmul.mubr.bf16.gmra.mrb[0].mxu0 %v4573
        %v4758 = vpop.f32.mrb[0].mxu0
        %v4759 = vadd.f32 %v4626, %v4758
        %v4760 = vpop.f32.mrb[0].mxu0
        %v4761 = vpop.f32.mrb[0].mxu0
        %v4762 = vadd.f32 %v4626, %v4761
        %v4763 = vpop.f32.mrb[0].mxu0
        %4764 = vmatprep.mubr.bf16.mxu0 %v4576
        %4765 = vmatmul.mubr.bf16.gmra.mrb[0].mxu0 %v4575
        %v4766 = vpop.f32.mrb[0].mxu0
        %v4767 = vadd.f32 %v4626, %v4766
        %v4768 = vpop.f32.mrb[0].mxu0
        %v4769 = vpop.f32.mrb[0].mxu0
        %v4770 = vadd.f32 %v4626, %v4769
        %v4771 = vpop.f32.mrb[0].mxu0
        %4772 = vmatprep.mubr.bf16.mxu0 %v4578
        %4773 = vmatmul.mubr.bf16.gmra.mrb[0].mxu0 %v4577
        %v4774 = vpop.f32.mrb[0].mxu0
        %v4775 = vadd.f32 %v4626, %v4774
        %v4776 = vpop.f32.mrb[0].mxu0
        %v4777 = vpop.f32.mrb[0].mxu0
        %v4778 = vadd.f32 %v4626, %v4777
        %v4779 = vpop.f32.mrb[0].mxu0
        %4780 = vmatprep.mubr.bf16.mxu0 %v4580
        %4781 = vmatmul.mubr.bf16.gmra.mrb[0].mxu0 %v4579
        %v4782 = vpop.f32.mrb[0].mxu0
        %v4783 = vadd.f32 %v4626, %v4782
        %v4784 = vpop.f32.mrb[0].mxu0
        %v4785 = vpop.f32.mrb[0].mxu0
        %v4786 = vadd.f32 %v4626, %v4785
        %v4787 = vpop.f32.mrb[0].mxu0
        %4788 = vmatprep.mubr.bf16.mxu0 %v4582
        %4789 = vmatmul.mubr.bf16.gmra.mrb[0].mxu0 %v4581
        %v4790 = vpop.f32.mrb[0].mxu0
        %v4791 = vadd.f32 %v4626, %v4790
        %v4792 = vpop.f32.mrb[0].mxu0
        %v4793 = vpop.f32.mrb[0].mxu0
        %v4794 = vadd.f32 %v4626, %v4793
        %v4795 = vpop.f32.mrb[0].mxu0
        %4796 = vmatprep.mubr.bf16.mxu0 %v4584
        %4797 = vmatmul.mubr.bf16.gmra.mrb[0].mxu0 %v4583
        %v4798 = vpop.f32.mrb[0].mxu0
        %v4799 = vadd.f32 %v4626, %v4798
        %v4800 = vpop.f32.mrb[0].mxu0
        %v4801 = vpop.f32.mrb[0].mxu0
        %v4802 = vadd.f32 %v4626, %v4801
        %v4803 = vpop.f32.mrb[0].mxu0
        %4804 = vmatprep.mubr.bf16.mxu0 %v4586
        %4805 = vmatmul.mubr.bf16.gmra.mrb[0].mxu0 %v4585
        %v4806 = vpop.f32.mrb[0].mxu0
        %v4807 = vadd.f32 %v4626, %v4806
        %v4808 = vpop.f32.mrb[0].mxu0
        %v4809 = vpop.f32.mrb[0].mxu0
        %v4810 = vadd.f32 %v4626, %v4809
        %v4811 = vpop.f32.mrb[0].mxu0
        %4812 = vmatprep.mubr.bf16.mxu0 %v4588
        %4813 = vmatmul.mubr.bf16.gmra.mrb[0].mxu0 %v4587
        %v4814 = vpop.f32.mrb[0].mxu0
        %v4815 = vadd.f32 %v4626, %v4814
        %v4816 = vpop.f32.mrb[0].mxu0
        %v4817 = vpop.f32.mrb[0].mxu0
        %v4818 = vadd.f32 %v4626, %v4817
        %v4819 = vpop.f32.mrb[0].mxu0
        %4820 = vdwg.mxu0
        %v4821 = vmax.f32 %v4759, 0.0
        %v4822 = vmax.f32 %v4762, 0.0
        %v4823 = vmax.f32 %v4767, 0.0
        %v4824 = vmax.f32 %v4770, 0.0
        %v4825 = vmax.f32 %v4775, 0.0
        %v4826 = vmax.f32 %v4778, 0.0
        %v4827 = vmax.f32 %v4783, 0.0
        %v4828 = vmax.f32 %v4786, 0.0
        %v4829 = vmax.f32 %v4791, 0.0
        %v4830 = vmax.f32 %v4794, 0.0
        %v4831 = vmax.f32 %v4799, 0.0
        %v4832 = vmax.f32 %v4802, 0.0
        %v4833 = vmax.f32 %v4807, 0.0
        %v4834 = vmax.f32 %v4810, 0.0
        %v4835 = vmax.f32 %v4815, 0.0
        %v4836 = vmax.f32 %v4818, 0.0
        %v4837 = vpack.c.bf16 %v4822, %v4821
        %v4838 = vpack.c.bf16 %v4824, %v4823
        %v4839 = vpack.c.bf16 %v4826, %v4825
        %v4840 = vpack.c.bf16 %v4828, %v4827
        %v4841 = vpack.c.bf16 %v4830, %v4829
        %v4842 = vpack.c.bf16 %v4832, %v4831
        %v4843 = vpack.c.bf16 %v4834, %v4833
        %v4844 = vpack.c.bf16 %v4836, %v4835
        %v4845 = vld [vmem:[%s9] sm:$0xf]
        %v4846 = vld [vmem:[%s9 + $0x4] sm:$0xf]
        %v4847 = vld [vmem:[%s9 + $0x8] sm:$0xf]
        %v4848 = vld [vmem:[%s9 + $0xc] sm:$0xf]
        %v4849 = vld [vmem:[%s9 + $0x10] sm:$0xf]
        %v4850 = vld [vmem:[%s9 + $0x14] sm:$0xf]
        %v4851 = vld [vmem:[%s9 + $0x18] sm:$0xf]
        %v4852 = vld [vmem:[%s9 + $0x1c] sm:$0xf]
        %v4853 = vld [vmem:[%s9 + $0x20] sm:$0xf]
        %v4854 = vld [vmem:[%s9 + $0x24] sm:$0xf]
        %v4855 = vld [vmem:[%s9 + $0x28] sm:$0xf]
        %v4856 = vld [vmem:[%s9 + $0x2c] sm:$0xf]
        %v4857 = vld [vmem:[%s9 + $0x30] sm:$0xf]
        %v4858 = vld [vmem:[%s9 + $0x34] sm:$0xf]
        %v4859 = vld [vmem:[%s9 + $0x38] sm:$0xf]
        %v4860 = vld [vmem:[%s9 + $0x3c] sm:$0xf]
        %v4861 = vld [vmem:[%s10] sm:$0x1]
        %v4863 = vlaneseq
        %v4864 = vshrl.u32 %v4863, 7
        %v4865 = vsub.s32 0, %v4864
        %v4866 = vrot.slane %v4861, %v4865
        %v4884 = vunpack.c.l.b16 %v4845
        %v4885 = vunpack.c.l.b16 %v4846
        %v4886 = vunpack.c.l.b16 %v4847
        %v4887 = vunpack.c.l.b16 %v4848
        %v4888 = vunpack.c.l.b16 %v4849
        %v4889 = vunpack.c.l.b16 %v4850
        %v4890 = vunpack.c.l.b16 %v4851
        %v4891 = vunpack.c.l.b16 %v4852
        %v4892 = vunpack.c.l.b16 %v4853
        %v4893 = vunpack.c.l.b16 %v4854
        %v4894 = vunpack.c.l.b16 %v4855
        %v4895 = vunpack.c.l.b16 %v4856
        %v4896 = vunpack.c.l.b16 %v4857
        %v4897 = vunpack.c.l.b16 %v4858
        %v4898 = vunpack.c.l.b16 %v4859
        %v4899 = vunpack.c.l.b16 %v4860
        %v4900 = vpack.c.b16 %v4885, %v4884
        %v4901 = vpack.c.b16 %v4887, %v4886
        %v4902 = vpack.c.b16 %v4889, %v4888
        %v4903 = vpack.c.b16 %v4891, %v4890
        %v4904 = vpack.c.b16 %v4893, %v4892
        %v4905 = vpack.c.b16 %v4895, %v4894
        %v4906 = vpack.c.b16 %v4897, %v4896
        %v4907 = vpack.c.b16 %v4899, %v4898
        %4916 = vmatprep.subr.bf16.mxu0 0
        %4917 = vmatpush1.bf16.msra.mxu0 %v4900
        %4918 = vmatprep.subr.bf16.mxu0 0
        %4919 = vmatpush1.bf16.msra.mxu0 %v4901
        %4920 = vmatprep.subr.bf16.mxu0 0
        %4921 = vmatpush1.bf16.msra.mxu0 %v4902
        %4922 = vmatprep.subr.bf16.mxu0 0
        %4923 = vmatpush1.bf16.msra.mxu0 %v4903
        %4924 = vmatprep.subr.bf16.mxu0 0
        %4925 = vmatpush1.bf16.msra.mxu0 %v4904
        %4926 = vmatprep.subr.bf16.mxu0 0
        %4927 = vmatpush1.bf16.msra.mxu0 %v4905
        %4928 = vmatprep.subr.bf16.mxu0 0
        %4929 = vmatpush1.bf16.msra.mxu0 %v4906
        %4930 = vmatprep.subr.bf16.mxu0 0
        %4931 = vmatpush1.bf16.msra.mxu0 %v4907
        %4932 = vmatprep.subr.bf16.mxu0 0
        %4933 = vmatpush1.bf16.msra.mxu0 0
        %4934 = vmatprep.subr.bf16.mxu0 0
        %4935 = vmatpush1.bf16.msra.mxu0 0
        %4936 = vmatprep.subr.bf16.mxu0 0
        %4937 = vmatpush1.bf16.msra.mxu0 0
        %4938 = vmatprep.subr.bf16.mxu0 0
        %4939 = vmatpush1.bf16.msra.mxu0 0
        %4940 = vmatprep.subr.bf16.mxu0 0
        %4941 = vmatpush1.bf16.msra.mxu0 0
        %4942 = vmatprep.subr.bf16.mxu0 0
        %4943 = vmatpush1.bf16.msra.mxu0 0
        %4944 = vmatprep.subr.bf16.mxu0 0
        %4945 = vmatpush1.bf16.msra.mxu0 0
        %4946 = vmatprep.subr.bf16.mxu0 0
        %4947 = vmatpush1.bf16.msra.mxu0 0
        %4948 = vmatprep.mubr.bf16.mxu0 0
        %4949 = vmatmul.mubr.bf16.gmra.mrb[0].mxu0 %v4837
        %v4950 = vpop.f32.mrb[0].mxu0
        %v4951 = vadd.f32 %v4866, %v4950
        %v4952 = vpop.f32.mrb[0].mxu0
        %v4953 = vpop.f32.mrb[0].mxu0
        %v4954 = vadd.f32 %v4866, %v4953
        %v4955 = vpop.f32.mrb[0].mxu0
        %4956 = vmatprep.mubr.bf16.mxu0 0
        %4957 = vmatmul.mubr.bf16.gmra.mrb[0].mxu0 %v4838
        %v4958 = vpop.f32.mrb[0].mxu0
        %v4959 = vadd.f32 %v4866, %v4958
        %v4960 = vpop.f32.mrb[0].mxu0
        %v4961 = vpop.f32.mrb[0].mxu0
        %v4962 = vadd.f32 %v4866, %v4961
        %v4963 = vpop.f32.mrb[0].mxu0
        %4964 = vmatprep.mubr.bf16.mxu0 0
        %4965 = vmatmul.mubr.bf16.gmra.mrb[0].mxu0 %v4839
        %v4966 = vpop.f32.mrb[0].mxu0
        %v4967 = vadd.f32 %v4866, %v4966
        %v4968 = vpop.f32.mrb[0].mxu0
        %v4969 = vpop.f32.mrb[0].mxu0
        %v4970 = vadd.f32 %v4866, %v4969
        %v4971 = vpop.f32.mrb[0].mxu0
        %4972 = vmatprep.mubr.bf16.mxu0 0
        %4973 = vmatmul.mubr.bf16.gmra.mrb[0].mxu0 %v4840
        %v4974 = vpop.f32.mrb[0].mxu0
        %v4975 = vadd.f32 %v4866, %v4974
        %v4976 = vpop.f32.mrb[0].mxu0
        %v4977 = vpop.f32.mrb[0].mxu0
        %v4978 = vadd.f32 %v4866, %v4977
        %v4979 = vpop.f32.mrb[0].mxu0
        %4980 = vmatprep.mubr.bf16.mxu0 0
        %4981 = vmatmul.mubr.bf16.gmra.mrb[0].mxu0 %v4841
        %v4982 = vpop.f32.mrb[0].mxu0
        %v4983 = vadd.f32 %v4866, %v4982
        %v4984 = vpop.f32.mrb[0].mxu0
        %v4985 = vpop.f32.mrb[0].mxu0
        %v4986 = vadd.f32 %v4866, %v4985
        %v4987 = vpop.f32.mrb[0].mxu0
        %4988 = vmatprep.mubr.bf16.mxu0 0
        %4989 = vmatmul.mubr.bf16.gmra.mrb[0].mxu0 %v4842
        %v4990 = vpop.f32.mrb[0].mxu0
        %v4991 = vadd.f32 %v4866, %v4990
        %v4992 = vpop.f32.mrb[0].mxu0
        %v4993 = vpop.f32.mrb[0].mxu0
        %v4994 = vadd.f32 %v4866, %v4993
        %v4995 = vpop.f32.mrb[0].mxu0
        %4996 = vmatprep.mubr.bf16.mxu0 0
        %4997 = vmatmul.mubr.bf16.gmra.mrb[0].mxu0 %v4843
        %v4998 = vpop.f32.mrb[0].mxu0
        %v4999 = vadd.f32 %v4866, %v4998
        %v5000 = vpop.f32.mrb[0].mxu0
        %v5001 = vpop.f32.mrb[0].mxu0
        %v5002 = vadd.f32 %v4866, %v5001
        %v5003 = vpop.f32.mrb[0].mxu0
        %5004 = vmatprep.mubr.bf16.mxu0 0
        %5005 = vmatmul.mubr.bf16.gmra.mrb[0].mxu0 %v4844
        %v5006 = vpop.f32.mrb[0].mxu0
        %v5007 = vadd.f32 %v4866, %v5006
        %v5008 = vpop.f32.mrb[0].mxu0
        %v5009 = vpop.f32.mrb[0].mxu0
        %v5010 = vadd.f32 %v4866, %v5009
        %v5011 = vpop.f32.mrb[0].mxu0
        %5012 = vdwg.mxu0
        %v5013 = vmax.f32 %v4951, 0.0
        %v5014 = vmax.f32 %v4954, 0.0
        %v5015 = vmax.f32 %v4959, 0.0
        %v5016 = vmax.f32 %v4962, 0.0
        %v5017 = vmax.f32 %v4967, 0.0
        %v5018 = vmax.f32 %v4970, 0.0
        %v5019 = vmax.f32 %v4975, 0.0
        %v5020 = vmax.f32 %v4978, 0.0
        %v5021 = vmax.f32 %v4983, 0.0
        %v5022 = vmax.f32 %v4986, 0.0
        %v5023 = vmax.f32 %v4991, 0.0
        %v5024 = vmax.f32 %v4994, 0.0
        %v5025 = vmax.f32 %v4999, 0.0
        %v5026 = vmax.f32 %v5002, 0.0
        %v5027 = vmax.f32 %v5007, 0.0
        %v5028 = vmax.f32 %v5010, 0.0
        %v5029 = vpack.c.bf16 %v5014, %v5013
        %v5030 = vpack.c.bf16 %v5016, %v5015
        %v5031 = vpack.c.bf16 %v5018, %v5017
        %v5032 = vpack.c.bf16 %v5020, %v5019
        %v5033 = vpack.c.bf16 %v5022, %v5021
        %v5034 = vpack.c.bf16 %v5024, %v5023
        %v5035 = vpack.c.bf16 %v5026, %v5025
        %v5036 = vpack.c.bf16 %v5028, %v5027
        %v5037 = vld [vmem:[%s11] sm:$0x1]
        %v5038 = vld [vmem:[#allocation2] sm:$0x1]
        %5040 = vset.pattern.permute.xlu0 0
        %5041 = vperm.xlu0 %5040, %v5038
        %v5042 = vpop.permute.xlu0 %5041
        %v5044 = vlaneseq
        %v5045 = vshrl.u32 %v5044, 7
        %v5046 = vsub.s32 0, %v5045
        %v5047 = vrot.slane %v5042, %v5046
        %vm5048 = vcmask 523264
        %v5050 = vsel %vm5048, %v5037, 0
        %v5053 = vsel %vm5048, %v5029, 0
        %v5056 = vsel %vm5048, %v5030, 0
        %v5059 = vsel %vm5048, %v5031, 0
        %v5062 = vsel %vm5048, %v5032, 0
        %v5065 = vsel %vm5048, %v5033, 0
        %v5068 = vsel %vm5048, %v5034, 0
        %v5071 = vsel %vm5048, %v5035, 0
        %v5074 = vsel %vm5048, %v5036, 0
        %5076 = vmatprep.subr.bf16.mxu0 0
        %5077 = vmatpush1.bf16.xpose.msra.mxu0 %v5053
        %5078 = vmatprep.subr.bf16.mxu0 0
        %5079 = vmatpush1.bf16.xpose.msra.mxu0 %v5056
        %5080 = vmatprep.subr.bf16.mxu0 0
        %5081 = vmatpush1.bf16.xpose.msra.mxu0 %v5059
        %5082 = vmatprep.subr.bf16.mxu0 0
        %5083 = vmatpush1.bf16.xpose.msra.mxu0 %v5062
        %5084 = vmatprep.subr.bf16.mxu0 0
        %5085 = vmatpush1.bf16.xpose.msra.mxu0 %v5065
        %5086 = vmatprep.subr.bf16.mxu0 0
        %5087 = vmatpush1.bf16.xpose.msra.mxu0 %v5068
        %5088 = vmatprep.subr.bf16.mxu0 0
        %5089 = vmatpush1.bf16.xpose.msra.mxu0 %v5071
        %5090 = vmatprep.subr.bf16.mxu0 0
        %5091 = vmatpush1.bf16.xpose.msra.mxu0 %v5074
        %5092 = vmatprep.subr.bf16.mxu0 0
        %5093 = vmatpush1.bf16.xpose.msra.mxu0 0
        %5094 = vmatprep.subr.bf16.mxu0 0
        %5095 = vmatpush1.bf16.xpose.msra.mxu0 0
        %5096 = vmatprep.subr.bf16.mxu0 0
        %5097 = vmatpush1.bf16.xpose.msra.mxu0 0
        %5098 = vmatprep.subr.bf16.mxu0 0
        %5099 = vmatpush1.bf16.xpose.msra.mxu0 0
        %5100 = vmatprep.subr.bf16.mxu0 0
        %5101 = vmatpush1.bf16.xpose.msra.mxu0 0
        %5102 = vmatprep.subr.bf16.mxu0 0
        %5103 = vmatpush1.bf16.xpose.msra.mxu0 0
        %5104 = vmatprep.subr.bf16.mxu0 0
        %5105 = vmatpush1.bf16.xpose.msra.mxu0 0
        %5106 = vmatprep.subr.bf16.mxu0 0
        %5107 = vmatpush1.bf16.xpose.msra.mxu0 0
        %5108 = vmatprep.mubr.bf16.mxu0 0
        %5109 = vmatmul.mubr.bf16.gmra.mrb[0].mxu0 %v5050
        %v5110 = vpop.f32.mrb[0].mxu0
        %v5111 = vadd.f32 %v5047, %v5110
        %v5112 = vpop.f32.mrb[0].mxu0
        %v5113 = vpop.f32.mrb[0].mxu0
        %v5114 = vpop.f32.mrb[0].mxu0
        %5115 = vdwg.mxu0
        %5116 = vst [vmem:[%s490] sm:$0x1] %v5111
        %s5117 = sand.u32 %s318, 1
        %s5118 = scalar_lea.sflag [#allocation5], %s5117
        %s5119 = sand.u32 %s318, 1
        %s5120 = scalar_lea.vmem [#allocation11], %s5119
        // Predicated region
        $region89: #{tpu_custom_call.1} parent=71 // pred_check
          %p5121 = pneg %p328
        $region90: #{tpu_custom_call.1} parent=71 // pred_check_branch
          %5123 = sbr.rel (%p5121) target = $region92
        $region91: #{tpu_custom_call.1} parent=71 // pred_region
          %s5125 = ssub.s32 16, 16
          %5126 = vsyncadd %s5118, %s5125
          %s5127 = smul.addr %s32, 16
          %s5128 = scalar_lea.hbm %s13, %s5127
          %s5130 = sshll.u32 %s5120, 4
          %s5131 = int_to_ptr.vmem [resolvable:$true] %s5130
          %5133 = dma.vmem_to_hbm [thread:$0]  %s5131, 16, %s5128, %s5118
        $region92: #{tpu_custom_call.1} parent=71 // pred_fallthru
          _
      $region72: #{tpu_custom_call.1} parent=5 // pred_fallthru
        _
      %p5134 = scmp.le.s32.totalorder 2, %s27
      // Predicated region
      $region93: #{tpu_custom_call.1} parent=5 // pred_check
        %p5135 = pneg %p5134
      $region94: #{tpu_custom_call.1} parent=5 // pred_check_branch
        %5137 = sbr.rel (%p5135) target = $region96
      $region95: #{tpu_custom_call.1} parent=5 // pred_region
        %s5138 = ssub.s32 %s27, 2
        // Predicated region
        $region97: #{tpu_custom_call.1} parent=95 // pred_check
          %p5139 = pneg %p334
        $region98: #{tpu_custom_call.1} parent=95 // pred_check_branch
          %5141 = sbr.rel (%p5139) target = $region100
        $region99: #{tpu_custom_call.1} parent=95 // pred_region
          %s5142 = sand.u32 %s319, 1
          %s5143 = scalar_lea.sflag [#allocation5], %s5142
          %s5144 = sand.u32 %s319, 1
          %s5145 = scalar_lea.vmem [#allocation11], %s5144
          %5146 = dma.done %s5143, 16
        $region100: #{tpu_custom_call.1} parent=95 // pred_fallthru
          _
      $region96: #{tpu_custom_call.1} parent=5 // pred_fallthru
        _
    $region6: #{tpu_custom_call.1} parent=1 // loop_footer
      %s31 = sadd.s32 1, %s27
    $region7: #{tpu_custom_call.1} parent=1 // loop_footer_branch
      %26 = sbr.rel target = $region3
    $region8: #{tpu_custom_call.1} parent=1 // loop_exit
      _
    %5147 = vsyncpa [#allocation4], 1
    %s5148 = scalar_lea.sflag [#allocation4], 1
    %5149 = vsyncpa %s5148, 1
    %5150 = vsyncpa [#allocation7], 1
    %5151 = vsyncpa [#allocation10], 1
    %5152 = vsyncpa [#allocation5], 1
    %s5153 = scalar_lea.sflag [#allocation5], 1
    %5154 = vsyncpa %s5153, 1

</llo_original>
